<compile_context>
chip_gen: v5e
topology: v5e:2x2
jax: 0.10.0
libtpu: 0.0.40
codegen_flags: <defaults>
</compile_context>

<pallas_src>
import functools

import jax
import jax.numpy as jnp
from jax.experimental import pallas as pl
from jax.experimental.pallas import tpu as pltpu


def _round_up(x, m):
    return ((x + m - 1) // m) * m


# ----------------------------------------------------------------------------
# Pallas kernel: fused per-pixel MLP stack, channel-major, for one tile of
# `tile_hw` pixel columns of one batch element.
# ----------------------------------------------------------------------------
def _pix_transform_kernel(
    x_ref,       # (1, 6, TM)     pixel columns: channels = [color(3) | spatial(3)]
    w1_ref,      # (64, 6)        block-diag: rows 0:32 = wc1^T, rows 32:64 = ws1^T
    b1_ref,      # (64, 1)        [bc1^T ; bs1^T]
    w2_ref,      # (2048, 64)     [wc2^T | ws2^T]   (f32 or bf16)
    b2_ref,      # (2048, 1)      (bc2 + bs2)^T
    wh1_ref,     # (32, 2048)     head conv1 weight^T (f32 or bf16)
    bh1_ref,     # (32, 1)
    wh2_ref,     # (1, 32)
    bh2_ref,     # (1, 1)
    head_ref,    # out: (1, 1, TM)
    merged_ref,  # out: (1, 2048, TM)
    *,
    use_bf16,
):
    x = x_ref[0]                                              # (6, TM) f32

    # Fused first layers of color_net / spatial_net (block-diagonal weight):
    #   h[0:32]  = ReLU(wc1^T @ x_color  + bc1^T)
    #   h[32:64] = ReLU(ws1^T @ x_spatial + bs1^T)
    h = jnp.maximum(
        jnp.dot(w1_ref[...], x, preferred_element_type=jnp.float32)
        + b1_ref[...], 0.0)                                   # (64, TM)

    # Fused second layers: merged^T = wc2^T h_c^T + ws2^T h_s^T + (bc2+bs2)^T
    if use_bf16:
        merged = jnp.dot(w2_ref[...].astype(jnp.bfloat16),
                         h.astype(jnp.bfloat16),
                         preferred_element_type=jnp.float32) + b2_ref[...]
    else:
        merged = jnp.dot(w2_ref[...], h,
                         preferred_element_type=jnp.float32) + b2_ref[...]
    merged_ref[0] = merged                                    # (2048, TM)

    # head_net: ReLU -> Conv(2048->32) -> ReLU -> Conv(32->1)
    h0 = jnp.maximum(merged, 0.0)
    if use_bf16:
        h1p = jnp.dot(wh1_ref[...].astype(jnp.bfloat16),
                      h0.astype(jnp.bfloat16),
                      preferred_element_type=jnp.float32)
    else:
        h1p = jnp.dot(wh1_ref[...], h0, preferred_element_type=jnp.float32)
    h1 = jnp.maximum(h1p + bh1_ref[...], 0.0)                 # (32, TM)
    head_ref[0] = jnp.dot(wh2_ref[...], h1,
                          preferred_element_type=jnp.float32) + bh2_ref[...]


def _const_spec(shape):
    # Parameter fully resident for every grid step (constant index_map).
    return pl.BlockSpec(shape, lambda n, i: tuple(0 for _ in shape))


def _fuse_params(p, use_bf16):
    """Build fused, transposed (channel-major) weights for both branches."""
    w1_t = jnp.zeros((64, 6), jnp.float32)
    w1_t = w1_t.at[0:32, 0:3].set(p["wc1"].T)      # color branch  (chans 0:3)
    w1_t = w1_t.at[32:64, 3:6].set(p["ws1"].T)     # spatial branch(chans 3:6)
    b1_t = jnp.concatenate([p["bc1"], p["bs1"]], axis=1).T    # (64, 1)
    w2_t = jnp.concatenate([p["wc2"].T, p["ws2"].T], axis=1)  # (2048, 64)
    b2_t = (p["bc2"] + p["bs2"]).T                            # (2048, 1)
    wh1_t = p["wh1"].T                                        # (32, 2048)
    bh1_t = p["bh1"].T                                        # (32, 1)
    wh2_t = p["wh2"].T                                        # (1, 32)
    bh2_t = p["bh2"].T                                        # (1, 1)
    if use_bf16:
        # Dominant-matmul weights shipped as bf16 (accumulation stays f32).
        w2_t = w2_t.astype(jnp.bfloat16)
        wh1_t = wh1_t.astype(jnp.bfloat16)
    return (w1_t, b1_t, w2_t, b2_t, wh1_t, bh1_t, wh2_t, bh2_t)


def default_tile_config(batch, height, width):
    """Pick (tile_hw, vmem_limit_bytes) per TPU generation (call outside jit)."""
    try:
        kind = jax.devices()[0].device_kind.lower()
    except Exception:  # pragma: no cover
        kind = ""
    hw = height * width
    hw_pad = _round_up(max(hw, 1), 128)
    if ("v5" in kind) or ("v6" in kind):
        tile, vmem = 1024, 80 * 1024 * 1024     # 128 MiB physical VMEM
    else:
        tile, vmem = 1024, 48 * 1024 * 1024     # v7x: 64 MiB VMEM per TC
    tile = min(tile, hw_pad)
    # v7x has 2 TensorCores: make sure the "parallel" grid has >= 2 steps.
    if ("v7" in kind) and batch * (hw_pad // tile) < 2 and hw_pad >= 256:
        tile = max(128, ((hw_pad // 2) // 128) * 128)
    return tile, vmem


@functools.partial(
    jax.jit,
    static_argnames=("tile_hw", "vmem_limit_bytes", "use_bf16_matmul"))
def pix_transform_forward(x_nchw, params, tile_hw=1024,
                          vmem_limit_bytes=48 * 1024 * 1024,
                          use_bf16_matmul=False):
    """Forward pass.

    x_nchw: [N, 6, H, W] float32 (NCHW like the PyTorch module; channels_in=6
            -> 3 color + 3 spatial).
    Returns (head [N, 1, H, W], merged [N, 2048, H, W]) in NCHW, exactly like
    the PyTorch module (no wrapper transposes: the kernel writes NCHW).
    """
    N, C, H, W = x_nchw.shape
    assert C == 6, "channels_in=6 (3 color + 3 spatial) required for Conv2d(3,32)"

    HW = H * W
    x = x_nchw.reshape(N, C, HW)                    # NCHW, no transpose

    tile = max(128, min(int(tile_hw), _round_up(HW, 128)))
    tile = _round_up(tile, 128)
    HW_pad = _round_up(HW, tile)
    if HW_pad != HW:
        x = jnp.pad(x, ((0, 0), (0, 0), (0, HW_pad - HW)))

    grid = (N, HW_pad // tile)

    param_vals = _fuse_params(params, use_bf16_matmul)
    param_specs = [_const_spec(p.shape) for p in param_vals]

    x_spec = pl.BlockSpec((1, 6, tile), lambda n, i: (n, 0, i))
    out_head_spec = pl.BlockSpec((1, 1, tile), lambda n, i: (n, 0, i))
    out_merged_spec = pl.BlockSpec((1, 2048, tile), lambda n, i: (n, 0, i))

    head_flat, merged_flat = pl.pallas_call(
        functools.partial(_pix_transform_kernel, use_bf16=use_bf16_matmul),
        out_shape=(
            jax.ShapeDtypeStruct((N, 1, HW_pad), jnp.float32),
            jax.ShapeDtypeStruct((N, 2048, HW_pad), jnp.float32),
        ),
        grid_spec=pltpu.PrefetchScalarGridSpec(
            num_scalar_prefetch=0,
            grid=grid,
            in_specs=[x_spec] + param_specs,
            out_specs=[out_head_spec, out_merged_spec],
        ),
        compiler_params=pltpu.CompilerParams(
            dimension_semantics=("parallel", "parallel"),
            vmem_limit_bytes=vmem_limit_bytes,
        ),
    )(x, *param_vals)

    head = head_flat[:, :, :HW].reshape(N, 1, H, W)
    merged = merged_flat[:, :, :HW].reshape(N, 2048, H, W)
    return head, merged


# ----------------------------------------------------------------------------
# Deterministic parameter init (PyTorch Conv2d shapes with kernel_size=1;
# weights [Cout, Cin, 1, 1] are stored here as [Cin, Cout]).
# ----------------------------------------------------------------------------
def init_params(key):
    def mk(key, cin, cout):
        kw, kb = jax.random.split(key)
        bound = 1.0 / jnp.sqrt(cin)
        w = jax.random.uniform(kw, (cin, cout), jnp.float32, -bound, bound)
        b = jax.random.uniform(kb, (1, cout), jnp.float32, -bound, bound)
        return w, b

    keys = jax.random.split(key, 6)
    ws1, bs1 = mk(keys[0], 3, 32)
    ws2, bs2 = mk(keys[1], 32, 2048)
    wc1, bc1 = mk(keys[2], 3, 32)
    wc2, bc2 = mk(keys[3], 32, 2048)
    wh1, bh1 = mk(keys[4], 2048, 32)
    wh2, bh2 = mk(keys[5], 32, 1)
    return dict(ws1=ws1, bs1=bs1, ws2=ws2, bs2=bs2,
                wc1=wc1, bc1=bc1, wc2=wc2, bc2=bc2,
                wh1=wh1, bh1=bh1, wh2=wh2, bh2=bh2)


def reference_forward(x_nchw, p):
    """Plain-JAX reference matching the PyTorch forward semantics."""
    N, C, H, W = x_nchw.shape
    x = jnp.transpose(x_nchw, (0, 2, 3, 1)).reshape(-1, C)
    xc, xs = x[:, 0:3], x[:, 3:6]
    f_s = jnp.maximum(xs @ p["ws1"] + p["bs1"], 0.0) @ p["ws2"] + p["bs2"]
    f_c = jnp.maximum(xc @ p["wc1"] + p["bc1"], 0.0) @ p["wc2"] + p["bc2"]
    merged = f_s + f_c
    h1 = jnp.maximum(jnp.maximum(merged, 0.0) @ p["wh1"] + p["bh1"], 0.0)
    head = h1 @ p["wh2"] + p["bh2"]
    head = jnp.transpose(head.reshape(N, H, W, 1), (0, 3, 1, 2))
    merged = jnp.transpose(merged.reshape(N, H, W, 2048), (0, 3, 1, 2))
    return head, merged


if __name__ == "__main__":
    key = jax.random.PRNGKey(0)
    k_x, k_p = jax.random.split(key)

    # Small, module-consistent shapes: batch=2, channels=6 (3 color +
    # 3 spatial), spatial=16x16.
    N, C, H, W = 2, 6, 16, 16
    x = jax.random.normal(k_x, (N, C, H, W), jnp.float32)
    params = init_params(k_p)

    tile_hw, vmem_bytes = default_tile_config(N, H, W)

    # Exact f32 path.
    head, merged = pix_transform_forward(
        x, params, tile_hw=tile_hw, vmem_limit_bytes=vmem_bytes,
        use_bf16_matmul=False)
    jax.block_until_ready((head, merged))

    head_ref, merged_ref = reference_forward(x, params)
    assert head.shape == (N, 1, H, W)
    assert merged.shape == (N, 2048, H, W)
    assert jnp.allclose(head, head_ref, atol=1e-4, rtol=1e-4)
    assert jnp.allclose(merged, merged_ref, atol=1e-4, rtol=1e-4)

    # bf16-operand fast path for the two dominant matmuls (f32 accumulation);
    # looser tolerance as flagged in the review.
    head_bf, merged_bf = pix_transform_forward(
        x, params, tile_hw=tile_hw, vmem_limit_bytes=vmem_bytes,
        use_bf16_matmul=True)
    jax.block_until_ready((head_bf, merged_bf))

    def max_rel(a, b):
        return float(jnp.max(jnp.abs(a - b)) / (jnp.max(jnp.abs(b)) + 1e-6))

    assert max_rel(merged_bf, merged_ref) < 3e-2
    assert max_rel(head_bf, head_ref) < 3e-2

    print("KERNEL_OK")
</pallas_src>

<mosaic_0001>
module attributes {stable_mosaic.version = 11 : i64} {
  func.func @_pix_transform_kernel(%arg0: i32, %arg1: i32, %arg2: memref<1x6x256xf32, #tpu.memory_space<vmem>>, %arg3: memref<64x6xf32, #tpu.memory_space<vmem>>, %arg4: memref<64x1xf32, #tpu.memory_space<vmem>>, %arg5: memref<2048x64xf32, #tpu.memory_space<vmem>>, %arg6: memref<2048x1xf32, #tpu.memory_space<vmem>>, %arg7: memref<32x2048xf32, #tpu.memory_space<vmem>>, %arg8: memref<32x1xf32, #tpu.memory_space<vmem>>, %arg9: memref<1x32xf32, #tpu.memory_space<vmem>>, %arg10: memref<1x1xf32, #tpu.memory_space<vmem>>, %arg11: memref<1x1x256xf32, #tpu.memory_space<vmem>>, %arg12: memref<1x2048x256xf32, #tpu.memory_space<vmem>>) attributes {dimension_semantics = [#tpu.dimension_semantics<parallel>, #tpu.dimension_semantics<parallel>], iteration_bounds = array<i64: 2, 1>, scalar_prefetch = 0 : i64, scratch_operands = 0 : i64, tpu.core_type = #tpu.core_type<tc>, window_params = [{transform_indices = @transform_0, window_bounds = array<i64: 1, 6, 256>}, {pipeline_mode = #tpu.pipeline_mode<synchronous>, transform_indices = @transform_1, window_bounds = array<i64: 64, 6>}, {pipeline_mode = #tpu.pipeline_mode<synchronous>, transform_indices = @transform_2, window_bounds = array<i64: 64, 1>}, {pipeline_mode = #tpu.pipeline_mode<synchronous>, transform_indices = @transform_3, window_bounds = array<i64: 2048, 64>}, {pipeline_mode = #tpu.pipeline_mode<synchronous>, transform_indices = @transform_4, window_bounds = array<i64: 2048, 1>}, {pipeline_mode = #tpu.pipeline_mode<synchronous>, transform_indices = @transform_5, window_bounds = array<i64: 32, 2048>}, {pipeline_mode = #tpu.pipeline_mode<synchronous>, transform_indices = @transform_6, window_bounds = array<i64: 32, 1>}, {pipeline_mode = #tpu.pipeline_mode<synchronous>, transform_indices = @transform_7, window_bounds = array<i64: 1, 32>}, {pipeline_mode = #tpu.pipeline_mode<synchronous>, transform_indices = @transform_8, window_bounds = array<i64: 1, 1>}, {transform_indices = @transform_9, window_bounds = array<i64: 1, 1, 256>}, {transform_indices = @transform_10, window_bounds = array<i64: 1, 2048, 256>}]} {
    %c0 = arith.constant 0 : index
    %c0_0 = arith.constant 0 : index
    %c0_1 = arith.constant 0 : index
    %0 = vector.load %arg2[%c0, %c0_0, %c0_1] : memref<1x6x256xf32, #tpu.memory_space<vmem>>, vector<1x6x256xf32>
    %1 = vector.shape_cast %0 : vector<1x6x256xf32> to vector<6x256xf32>
    %c0_2 = arith.constant 0 : index
    %c0_3 = arith.constant 0 : index
    %2 = vector.load %arg3[%c0_2, %c0_3] : memref<64x6xf32, #tpu.memory_space<vmem>>, vector<64x6xf32>
    %cst = arith.constant dense<0.000000e+00> : vector<64x256xf32>
    %3 = tpu.matmul %2, %1, %cst {dimension_numbers = #tpu.dot_dimension_numbers<[1], [0], [0], [1], [0, 0, 1, 1], [], []>} : vector<64x6xf32>, vector<6x256xf32>, vector<64x256xf32> -> vector<64x256xf32>
    %c0_4 = arith.constant 0 : index
    %c0_5 = arith.constant 0 : index
    %4 = vector.load %arg4[%c0_4, %c0_5] : memref<64x1xf32, #tpu.memory_space<vmem>>, vector<64x1xf32>
    %5 = vector.broadcast %4 : vector<64x1xf32> to vector<64x256xf32>
    %6 = arith.addf %3, %5 : vector<64x256xf32>
    %cst_6 = arith.constant 0.000000e+00 : f32
    %7 = vector.broadcast %cst_6 : f32 to vector<64x256xf32>
    %8 = arith.maximumf %6, %7 : vector<64x256xf32>
    %c0_7 = arith.constant 0 : index
    %c0_8 = arith.constant 0 : index
    %9 = vector.load %arg5[%c0_7, %c0_8] : memref<2048x64xf32, #tpu.memory_space<vmem>>, vector<2048x64xf32>
    %cst_9 = arith.constant dense<0.000000e+00> : vector<2048x256xf32>
    %10 = tpu.matmul %9, %8, %cst_9 {dimension_numbers = #tpu.dot_dimension_numbers<[1], [0], [0], [1], [0, 0, 1, 1], [], []>} : vector<2048x64xf32>, vector<64x256xf32>, vector<2048x256xf32> -> vector<2048x256xf32>
    %c0_10 = arith.constant 0 : index
    %c0_11 = arith.constant 0 : index
    %11 = vector.load %arg6[%c0_10, %c0_11] : memref<2048x1xf32, #tpu.memory_space<vmem>>, vector<2048x1xf32>
    %12 = vector.broadcast %11 : vector<2048x1xf32> to vector<2048x256xf32>
    %13 = arith.addf %10, %12 : vector<2048x256xf32>
    %c0_12 = arith.constant 0 : index
    %c0_13 = arith.constant 0 : index
    %c0_14 = arith.constant 0 : index
    %14 = vector.load %arg12[%c0_12, %c0_13, %c0_14] : memref<1x2048x256xf32, #tpu.memory_space<vmem>>, vector<1x2048x256xf32>
    %15 = vector.shape_cast %14 : vector<1x2048x256xf32> to vector<2048x256xf32>
    %16 = vector.shape_cast %13 : vector<2048x256xf32> to vector<1x2048x256xf32>
    tpu.vector_store %arg12[%c0_12, %c0_13, %c0_14], %16 {strides = array<i32>} : memref<1x2048x256xf32, #tpu.memory_space<vmem>>, vector<1x2048x256xf32>,
    %cst_15 = arith.constant 0.000000e+00 : f32
    %17 = vector.broadcast %cst_15 : f32 to vector<2048x256xf32>
    %18 = arith.maximumf %13, %17 : vector<2048x256xf32>
    %c0_16 = arith.constant 0 : index
    %c0_17 = arith.constant 0 : index
    %19 = vector.load %arg7[%c0_16, %c0_17] : memref<32x2048xf32, #tpu.memory_space<vmem>>, vector<32x2048xf32>
    %cst_18 = arith.constant dense<0.000000e+00> : vector<32x256xf32>
    %20 = tpu.matmul %19, %18, %cst_18 {dimension_numbers = #tpu.dot_dimension_numbers<[1], [0], [0], [1], [0, 0, 1, 1], [], []>} : vector<32x2048xf32>, vector<2048x256xf32>, vector<32x256xf32> -> vector<32x256xf32>
    %c0_19 = arith.constant 0 : index
    %c0_20 = arith.constant 0 : index
    %21 = vector.load %arg8[%c0_19, %c0_20] : memref<32x1xf32, #tpu.memory_space<vmem>>, vector<32x1xf32>
    %22 = vector.broadcast %21 : vector<32x1xf32> to vector<32x256xf32>
    %23 = arith.addf %20, %22 : vector<32x256xf32>
    %cst_21 = arith.constant 0.000000e+00 : f32
    %24 = vector.broadcast %cst_21 : f32 to vector<32x256xf32>
    %25 = arith.maximumf %23, %24 : vector<32x256xf32>
    %c0_22 = arith.constant 0 : index
    %c0_23 = arith.constant 0 : index
    %26 = vector.load %arg9[%c0_22, %c0_23] : memref<1x32xf32, #tpu.memory_space<vmem>>, vector<1x32xf32>
    %cst_24 = arith.constant dense<0.000000e+00> : vector<1x256xf32>
    %27 = tpu.matmul %26, %25, %cst_24 {dimension_numbers = #tpu.dot_dimension_numbers<[1], [0], [0], [1], [0, 0, 1, 1], [], []>} : vector<1x32xf32>, vector<32x256xf32>, vector<1x256xf32> -> vector<1x256xf32>
    %c0_25 = arith.constant 0 : index
    %c0_26 = arith.constant 0 : index
    %28 = vector.load %arg10[%c0_25, %c0_26] : memref<1x1xf32, #tpu.memory_space<vmem>>, vector<1x1xf32>
    %29 = vector.broadcast %28 : vector<1x1xf32> to vector<1x256xf32>
    %30 = arith.addf %27, %29 : vector<1x256xf32>
    %c0_27 = arith.constant 0 : index
    %c0_28 = arith.constant 0 : index
    %c0_29 = arith.constant 0 : index
    %31 = vector.load %arg11[%c0_27, %c0_28, %c0_29] : memref<1x1x256xf32, #tpu.memory_space<vmem>>, vector<1x1x256xf32>
    %32 = vector.shape_cast %31 : vector<1x1x256xf32> to vector<1x256xf32>
    %33 = vector.shape_cast %30 : vector<1x256xf32> to vector<1x1x256xf32>
    tpu.vector_store %arg11[%c0_27, %c0_28, %c0_29], %33 {strides = array<i32>} : memref<1x1x256xf32, #tpu.memory_space<vmem>>, vector<1x1x256xf32>,
    return
  }
  func.func @transform_0(%arg0: i32, %arg1: i32) -> (i32, i32, i32) {
    %c0_i32 = arith.constant 0 : i32
    %c0_i32_0 = arith.constant 0 : i32
    return %arg0, %c0_i32, %arg1 : i32, i32, i32
  }
  func.func @transform_1(%arg0: i32, %arg1: i32) -> (i32, i32) {
    %c0_i32 = arith.constant 0 : i32
    %c0_i32_0 = arith.constant 0 : i32
    %c0_i32_1 = arith.constant 0 : i32
    return %c0_i32, %c0_i32_0 : i32, i32
  }
  func.func @transform_2(%arg0: i32, %arg1: i32) -> (i32, i32) {
    %c0_i32 = arith.constant 0 : i32
    %c0_i32_0 = arith.constant 0 : i32
    %c0_i32_1 = arith.constant 0 : i32
    return %c0_i32, %c0_i32_0 : i32, i32
  }
  func.func @transform_3(%arg0: i32, %arg1: i32) -> (i32, i32) {
    %c0_i32 = arith.constant 0 : i32
    %c0_i32_0 = arith.constant 0 : i32
    %c0_i32_1 = arith.constant 0 : i32
    return %c0_i32, %c0_i32_0 : i32, i32
  }
  func.func @transform_4(%arg0: i32, %arg1: i32) -> (i32, i32) {
    %c0_i32 = arith.constant 0 : i32
    %c0_i32_0 = arith.constant 0 : i32
    %c0_i32_1 = arith.constant 0 : i32
    return %c0_i32, %c0_i32_0 : i32, i32
  }
  func.func @transform_5(%arg0: i32, %arg1: i32) -> (i32, i32) {
    %c0_i32 = arith.constant 0 : i32
    %c0_i32_0 = arith.constant 0 : i32
    %c0_i32_1 = arith.constant 0 : i32
    return %c0_i32, %c0_i32_0 : i32, i32
  }
  func.func @transform_6(%arg0: i32, %arg1: i32) -> (i32, i32) {
    %c0_i32 = arith.constant 0 : i32
    %c0_i32_0 = arith.constant 0 : i32
    %c0_i32_1 = arith.constant 0 : i32
    return %c0_i32, %c0_i32_0 : i32, i32
  }
  func.func @transform_7(%arg0: i32, %arg1: i32) -> (i32, i32) {
    %c0_i32 = arith.constant 0 : i32
    %c0_i32_0 = arith.constant 0 : i32
    %c0_i32_1 = arith.constant 0 : i32
    return %c0_i32, %c0_i32_0 : i32, i32
  }
  func.func @transform_8(%arg0: i32, %arg1: i32) -> (i32, i32) {
    %c0_i32 = arith.constant 0 : i32
    %c0_i32_0 = arith.constant 0 : i32
    %c0_i32_1 = arith.constant 0 : i32
    return %c0_i32, %c0_i32_0 : i32, i32
  }
  func.func @transform_9(%arg0: i32, %arg1: i32) -> (i32, i32, i32) {
    %c0_i32 = arith.constant 0 : i32
    %c0_i32_0 = arith.constant 0 : i32
    return %arg0, %c0_i32, %arg1 : i32, i32, i32
  }
  func.func @transform_10(%arg0: i32, %arg1: i32) -> (i32, i32, i32) {
    %c0_i32 = arith.constant 0 : i32
    %c0_i32_0 = arith.constant 0 : i32
    return %arg0, %c0_i32, %arg1 : i32, i32, i32
  }
}

</mosaic_0001>

<llo_original>
// kernel: pix_transform_forward.1
$region0: #{pix_transform_forward.1}
  #allocation0 [shape = 'u32[]', space=smem, size = 0x4, offset = 0x4, fixed_abs, tag = 'smem constant byte address 0x4 - core index']
  #allocation1 [shape = 'u32[72,128]{1,0:T(1,128)}', space=vmem, size = 0x9000, scoped, tag = 'internal scratch']
  #allocation2 [shape = 'f32[1,1]{1,0:T(1,128)S(1)}', space=vmem, size = 0x200, scoped, tag = 'scoped memory for pix_transform_forward.1']
  %s0 = inlined_call_operand.vmem [shape: f32[2,6,256], index: 0, kind: input, shape index: {}]
  %s1 = inlined_call_operand.vmem [shape: f32[64,6], index: 1, kind: input, shape index: {}]
  %s2 = inlined_call_operand.vmem [shape: f32[64,1], index: 2, kind: input, shape index: {}]
  %s3 = inlined_call_operand.vmem [shape: f32[2048,64], index: 3, kind: input, shape index: {}]
  %s4 = inlined_call_operand.vmem [shape: f32[2048,1], index: 4, kind: input, shape index: {}]
  %s5 = inlined_call_operand.vmem [shape: f32[32,2048], index: 5, kind: input, shape index: {}]
  %s6 = inlined_call_operand.vmem [shape: f32[32,1], index: 6, kind: input, shape index: {}]
  %s7 = inlined_call_operand.vmem [shape: f32[1,32], index: 7, kind: input, shape index: {}]
  %s8 = inlined_call_operand.<no memory space> [shape: f32[1,1], index: 8, kind: input, shape index: {}]
  %s9 = inlined_call_operand.vmem [shape: f32[2,1,256], index: 9, kind: output, shape index: {0}]
  %s10 = inlined_call_operand.vmem [shape: f32[2,2048,256], index: 10, kind: output, shape index: {1}]
  %11 = xla_tuple %s9, %s10
  %s12 = sld [smem:[#allocation0]]
  $region77: #{pix_transform_forward.1} parent=0
    _
  %s14 = ssub.s32 1, %s12
  %s15 = scalar_select 0, %s14, %s12
  %v16 = vstv %s8
  %17 = vst [vmem:[#allocation2] sm:$0x1] %v16
  loop: start=0, step=1, limit=4
  $region2: #{pix_transform_forward.1} parent=0 // loop_pre_header
    _
  $region3: #{pix_transform_forward.1} parent=0 // loop_header
    %s19 = sphi 0, %s23
    %p20 = scmp.ge.s32.totalorder %s19, 4
    %s26 = sphi 0, %s38
    %s27 = sphi 0, %s34
    %s28 = sphi 0, %s26
    %s29 = sphi 0, %s27
    %s30 = sphi 0, %s28
    %s31 = sphi 0, %s29
    %s43 = sphi 0, %s45
    %s46 = sphi 0, %s43
    %s47 = sphi 0, %s46
    %s63 = sphi 0, %s47
    %s67 = sphi 0, %s67
    %s69 = sphi 0, %s67
    %s70 = sphi 0, %s69
    %s84 = sphi 0, %s70
    %s88 = sphi 0, %s88
    %s90 = sphi 0, %s88
    %s91 = sphi 0, %s90
    %s105 = sphi 0, %s91
    %s109 = sphi 0, %s109
    %s111 = sphi 0, %s109
    %s112 = sphi 0, %s111
    %s126 = sphi 0, %s112
    %s130 = sphi 0, %s130
    %s132 = sphi 0, %s130
    %s133 = sphi 0, %s132
    %s147 = sphi 0, %s133
    %s151 = sphi 0, %s151
    %s153 = sphi 0, %s151
    %s154 = sphi 0, %s153
    %s168 = sphi 0, %s154
    %s172 = sphi 0, %s172
    %s174 = sphi 0, %s172
    %s175 = sphi 0, %s174
    %s189 = sphi 0, %s175
    %s193 = sphi 0, %s193
    %s195 = sphi 0, %s193
    %s196 = sphi 0, %s195
    %s210 = sphi 0, %s196
    %s214 = sphi 0, %s214
    %s216 = sphi 0, %s214
    %s217 = sphi 0, %s216
    %s231 = sphi 0, %s217
    %s239 = sphi 0, %s241
    %s242 = sphi 0, %s239
    %s243 = sphi 0, %s242
    %s259 = sphi 0, %s243
    %s267 = sphi 0, %s269
    %s270 = sphi 0, %s267
    %s271 = sphi 0, %s270
    %s287 = sphi 0, %s271
  $region4: #{pix_transform_forward.1} parent=0 // loop_header_branch
    %22 = sbr.rel (%p20) target = $region8
  $region5: #{pix_transform_forward.1} parent=0 // loop_body
    %s24 = ssub.s32 %s19, 1
    %s25 = ssub.s32 %s19, 2
    %s32 = sadd.s32 1, %s27
    %p33 = scmp.ge.s32.totalorder %s32, 1
    %s34 = scalar_select %p33, 0, %s32
    %s35 = sadd.s32 1, %s26
    %s36 = scalar_select %p33, %s35, %s26
    %p37 = scmp.ge.s32.totalorder %s36, 2
    %s38 = scalar_select %p37, 0, %s36
    %s39 = ssub.s32 %s26, %s38
    %s40 = ssub.s32 %s27, %s34
    %s41 = sor.u32 %s39, %s40
    %p42 = scmp.eq.s32.totalorder %s41, 0
    %s44 = sadd.s32 %s43, 1
    %s45 = scalar_select %p42, %s43, %s44
    %p48 = pneg %p42
    %p49 = scmp.eq.s32.totalorder %s19, 1
    %p50 = por %p48, %p49
    %p51 = scmp.ne.s32.totalorder %s43, %s46
    %p52 = scmp.eq.s32.totalorder %s19, 0
    %p53 = por %p51, %p52
    %p54 = scmp.ne.s32.totalorder %s43, %s46
    %p55 = scmp.eq.s32.totalorder %s24, 1
    %p56 = por %p54, %p55
    %p57 = scmp.ne.s32.totalorder %s46, %s47
    %p58 = scmp.eq.s32.totalorder %s24, 0
    %p59 = por %p57, %p58
    %p60 = scmp.ne.s32.totalorder %s46, %s47
    %p61 = scmp.eq.s32.totalorder %s25, 1
    %p62 = por %p60, %p61
    %p64 = scmp.ne.s32.totalorder %s47, %s63
    %p65 = scmp.eq.s32.totalorder %s25, 0
    %p66 = por %p64, %p65
    %s68 = sadd.s32 %s67, 1
    %p71 = scmp.eq.s32.totalorder %s19, 1
    %p72 = scmp.ne.s32.totalorder %s67, %s69
    %p73 = scmp.eq.s32.totalorder %s19, 0
    %p74 = por %p72, %p73
    %p75 = scmp.ne.s32.totalorder %s67, %s69
    %p76 = scmp.eq.s32.totalorder %s24, 1
    %p77 = por %p75, %p76
    %p78 = scmp.ne.s32.totalorder %s69, %s70
    %p79 = scmp.eq.s32.totalorder %s24, 0
    %p80 = por %p78, %p79
    %p81 = scmp.ne.s32.totalorder %s69, %s70
    %p82 = scmp.eq.s32.totalorder %s25, 1
    %p83 = por %p81, %p82
    %p85 = scmp.ne.s32.totalorder %s70, %s84
    %p86 = scmp.eq.s32.totalorder %s25, 0
    %p87 = por %p85, %p86
    %s89 = sadd.s32 %s88, 1
    %p92 = scmp.eq.s32.totalorder %s19, 1
    %p93 = scmp.ne.s32.totalorder %s88, %s90
    %p94 = scmp.eq.s32.totalorder %s19, 0
    %p95 = por %p93, %p94
    %p96 = scmp.ne.s32.totalorder %s88, %s90
    %p97 = scmp.eq.s32.totalorder %s24, 1
    %p98 = por %p96, %p97
    %p99 = scmp.ne.s32.totalorder %s90, %s91
    %p100 = scmp.eq.s32.totalorder %s24, 0
    %p101 = por %p99, %p100
    %p102 = scmp.ne.s32.totalorder %s90, %s91
    %p103 = scmp.eq.s32.totalorder %s25, 1
    %p104 = por %p102, %p103
    %p106 = scmp.ne.s32.totalorder %s91, %s105
    %p107 = scmp.eq.s32.totalorder %s25, 0
    %p108 = por %p106, %p107
    %s110 = sadd.s32 %s109, 1
    %p113 = scmp.eq.s32.totalorder %s19, 1
    %p114 = scmp.ne.s32.totalorder %s109, %s111
    %p115 = scmp.eq.s32.totalorder %s19, 0
    %p116 = por %p114, %p115
    %p117 = scmp.ne.s32.totalorder %s109, %s111
    %p118 = scmp.eq.s32.totalorder %s24, 1
    %p119 = por %p117, %p118
    %p120 = scmp.ne.s32.totalorder %s111, %s112
    %p121 = scmp.eq.s32.totalorder %s24, 0
    %p122 = por %p120, %p121
    %p123 = scmp.ne.s32.totalorder %s111, %s112
    %p124 = scmp.eq.s32.totalorder %s25, 1
    %p125 = por %p123, %p124
    %p127 = scmp.ne.s32.totalorder %s112, %s126
    %p128 = scmp.eq.s32.totalorder %s25, 0
    %p129 = por %p127, %p128
    %s131 = sadd.s32 %s130, 1
    %p134 = scmp.eq.s32.totalorder %s19, 1
    %p135 = scmp.ne.s32.totalorder %s130, %s132
    %p136 = scmp.eq.s32.totalorder %s19, 0
    %p137 = por %p135, %p136
    %p138 = scmp.ne.s32.totalorder %s130, %s132
    %p139 = scmp.eq.s32.totalorder %s24, 1
    %p140 = por %p138, %p139
    %p141 = scmp.ne.s32.totalorder %s132, %s133
    %p142 = scmp.eq.s32.totalorder %s24, 0
    %p143 = por %p141, %p142
    %p144 = scmp.ne.s32.totalorder %s132, %s133
    %p145 = scmp.eq.s32.totalorder %s25, 1
    %p146 = por %p144, %p145
    %p148 = scmp.ne.s32.totalorder %s133, %s147
    %p149 = scmp.eq.s32.totalorder %s25, 0
    %p150 = por %p148, %p149
    %s152 = sadd.s32 %s151, 1
    %p155 = scmp.eq.s32.totalorder %s19, 1
    %p156 = scmp.ne.s32.totalorder %s151, %s153
    %p157 = scmp.eq.s32.totalorder %s19, 0
    %p158 = por %p156, %p157
    %p159 = scmp.ne.s32.totalorder %s151, %s153
    %p160 = scmp.eq.s32.totalorder %s24, 1
    %p161 = por %p159, %p160
    %p162 = scmp.ne.s32.totalorder %s153, %s154
    %p163 = scmp.eq.s32.totalorder %s24, 0
    %p164 = por %p162, %p163
    %p165 = scmp.ne.s32.totalorder %s153, %s154
    %p166 = scmp.eq.s32.totalorder %s25, 1
    %p167 = por %p165, %p166
    %p169 = scmp.ne.s32.totalorder %s154, %s168
    %p170 = scmp.eq.s32.totalorder %s25, 0
    %p171 = por %p169, %p170
    %s173 = sadd.s32 %s172, 1
    %p176 = scmp.eq.s32.totalorder %s19, 1
    %p177 = scmp.ne.s32.totalorder %s172, %s174
    %p178 = scmp.eq.s32.totalorder %s19, 0
    %p179 = por %p177, %p178
    %p180 = scmp.ne.s32.totalorder %s172, %s174
    %p181 = scmp.eq.s32.totalorder %s24, 1
    %p182 = por %p180, %p181
    %p183 = scmp.ne.s32.totalorder %s174, %s175
    %p184 = scmp.eq.s32.totalorder %s24, 0
    %p185 = por %p183, %p184
    %p186 = scmp.ne.s32.totalorder %s174, %s175
    %p187 = scmp.eq.s32.totalorder %s25, 1
    %p188 = por %p186, %p187
    %p190 = scmp.ne.s32.totalorder %s175, %s189
    %p191 = scmp.eq.s32.totalorder %s25, 0
    %p192 = por %p190, %p191
    %s194 = sadd.s32 %s193, 1
    %p197 = scmp.eq.s32.totalorder %s19, 1
    %p198 = scmp.ne.s32.totalorder %s193, %s195
    %p199 = scmp.eq.s32.totalorder %s19, 0
    %p200 = por %p198, %p199
    %p201 = scmp.ne.s32.totalorder %s193, %s195
    %p202 = scmp.eq.s32.totalorder %s24, 1
    %p203 = por %p201, %p202
    %p204 = scmp.ne.s32.totalorder %s195, %s196
    %p205 = scmp.eq.s32.totalorder %s24, 0
    %p206 = por %p204, %p205
    %p207 = scmp.ne.s32.totalorder %s195, %s196
    %p208 = scmp.eq.s32.totalorder %s25, 1
    %p209 = por %p207, %p208
    %p211 = scmp.ne.s32.totalorder %s196, %s210
    %p212 = scmp.eq.s32.totalorder %s25, 0
    %p213 = por %p211, %p212
    %s215 = sadd.s32 %s214, 1
    %p218 = scmp.eq.s32.totalorder %s19, 1
    %p219 = scmp.ne.s32.totalorder %s214, %s216
    %p220 = scmp.eq.s32.totalorder %s19, 0
    %p221 = por %p219, %p220
    %p222 = scmp.ne.s32.totalorder %s214, %s216
    %p223 = scmp.eq.s32.totalorder %s24, 1
    %p224 = por %p222, %p223
    %p225 = scmp.ne.s32.totalorder %s216, %s217
    %p226 = scmp.eq.s32.totalorder %s24, 0
    %p227 = por %p225, %p226
    %p228 = scmp.ne.s32.totalorder %s216, %s217
    %p229 = scmp.eq.s32.totalorder %s25, 1
    %p230 = por %p228, %p229
    %p232 = scmp.ne.s32.totalorder %s217, %s231
    %p233 = scmp.eq.s32.totalorder %s25, 0
    %p234 = por %p232, %p233
    %s235 = ssub.s32 %s26, %s38
    %s236 = ssub.s32 %s27, %s34
    %s237 = sor.u32 %s235, %s236
    %p238 = scmp.eq.s32.totalorder %s237, 0
    %s240 = sadd.s32 %s239, 1
    %s241 = scalar_select %p238, %s239, %s240
    %p244 = pneg %p238
    %p245 = scmp.eq.s32.totalorder %s19, 1
    %p246 = por %p244, %p245
    %p247 = scmp.ne.s32.totalorder %s239, %s242
    %p248 = scmp.eq.s32.totalorder %s19, 0
    %p249 = por %p247, %p248
    %p250 = scmp.ne.s32.totalorder %s239, %s242
    %p251 = scmp.eq.s32.totalorder %s24, 1
    %p252 = por %p250, %p251
    %p253 = scmp.ne.s32.totalorder %s242, %s243
    %p254 = scmp.eq.s32.totalorder %s24, 0
    %p255 = por %p253, %p254
    %p256 = scmp.ne.s32.totalorder %s242, %s243
    %p257 = scmp.eq.s32.totalorder %s25, 1
    %p258 = por %p256, %p257
    %p260 = scmp.ne.s32.totalorder %s243, %s259
    %p261 = scmp.eq.s32.totalorder %s25, 0
    %p262 = por %p260, %p261
    %s263 = ssub.s32 %s26, %s38
    %s264 = ssub.s32 %s27, %s34
    %s265 = sor.u32 %s263, %s264
    %p266 = scmp.eq.s32.totalorder %s265, 0
    %s268 = sadd.s32 %s267, 1
    %s269 = scalar_select %p266, %s267, %s268
    %p272 = pneg %p266
    %p273 = scmp.eq.s32.totalorder %s19, 1
    %p274 = por %p272, %p273
    %p275 = scmp.ne.s32.totalorder %s267, %s270
    %p276 = scmp.eq.s32.totalorder %s19, 0
    %p277 = por %p275, %p276
    %p278 = scmp.ne.s32.totalorder %s267, %s270
    %p279 = scmp.eq.s32.totalorder %s24, 1
    %p280 = por %p278, %p279
    %p281 = scmp.ne.s32.totalorder %s270, %s271
    %p282 = scmp.eq.s32.totalorder %s24, 0
    %p283 = por %p281, %p282
    %p284 = scmp.ne.s32.totalorder %s270, %s271
    %p285 = scmp.eq.s32.totalorder %s25, 1
    %p286 = por %p284, %p285
    %p288 = scmp.ne.s32.totalorder %s271, %s287
    %p289 = scmp.eq.s32.totalorder %s25, 0
    %p290 = por %p288, %p289
    %p291 = scmp.le.s32.totalorder 1, %s19
    %p292 = scmp.lt.s32.totalorder %s19, 3
    %p293 = pnand %p291, %p292
    %p294 = pneg %p293
    // Predicated region
    $region9: #{pix_transform_forward.1} parent=5 // pred_check
      _
    $region10: #{pix_transform_forward.1} parent=5 // pred_check_branch
      %296 = sbr.rel (%p293) target = $region12
    $region11: #{pix_transform_forward.1} parent=5 // pred_region
      %s297 = ssub.s32 %s19, 1
      // Predicated region
      $region13: #{pix_transform_forward.1} parent=11 // pred_check
        %p298 = pneg %p80
      $region14: #{pix_transform_forward.1} parent=11 // pred_check_branch
        %300 = sbr.rel (%p298) target = $region16
      $region15: #{pix_transform_forward.1} parent=11 // pred_region
        _
      $region16: #{pix_transform_forward.1} parent=11 // pred_fallthru
        _
      // Predicated region
      $region17: #{pix_transform_forward.1} parent=11 // pred_check
        %p301 = pneg %p101
      $region18: #{pix_transform_forward.1} parent=11 // pred_check_branch
        %303 = sbr.rel (%p301) target = $region20
      $region19: #{pix_transform_forward.1} parent=11 // pred_region
        _
      $region20: #{pix_transform_forward.1} parent=11 // pred_fallthru
        _
      // Predicated region
      $region21: #{pix_transform_forward.1} parent=11 // pred_check
        %p304 = pneg %p122
      $region22: #{pix_transform_forward.1} parent=11 // pred_check_branch
        %306 = sbr.rel (%p304) target = $region24
      $region23: #{pix_transform_forward.1} parent=11 // pred_region
        _
      $region24: #{pix_transform_forward.1} parent=11 // pred_fallthru
        _
      // Predicated region
      $region25: #{pix_transform_forward.1} parent=11 // pred_check
        %p307 = pneg %p143
      $region26: #{pix_transform_forward.1} parent=11 // pred_check_branch
        %309 = sbr.rel (%p307) target = $region28
      $region27: #{pix_transform_forward.1} parent=11 // pred_region
        _
      $region28: #{pix_transform_forward.1} parent=11 // pred_fallthru
        _
      // Predicated region
      $region29: #{pix_transform_forward.1} parent=11 // pred_check
        %p310 = pneg %p164
      $region30: #{pix_transform_forward.1} parent=11 // pred_check_branch
        %312 = sbr.rel (%p310) target = $region32
      $region31: #{pix_transform_forward.1} parent=11 // pred_region
        _
      $region32: #{pix_transform_forward.1} parent=11 // pred_fallthru
        _
      // Predicated region
      $region33: #{pix_transform_forward.1} parent=11 // pred_check
        %p313 = pneg %p185
      $region34: #{pix_transform_forward.1} parent=11 // pred_check_branch
        %315 = sbr.rel (%p313) target = $region36
      $region35: #{pix_transform_forward.1} parent=11 // pred_region
        _
      $region36: #{pix_transform_forward.1} parent=11 // pred_fallthru
        _
      // Predicated region
      $region37: #{pix_transform_forward.1} parent=11 // pred_check
        %p316 = pneg %p206
      $region38: #{pix_transform_forward.1} parent=11 // pred_check_branch
        %318 = sbr.rel (%p316) target = $region40
      $region39: #{pix_transform_forward.1} parent=11 // pred_region
        _
      $region40: #{pix_transform_forward.1} parent=11 // pred_fallthru
        _
      // Predicated region
      $region41: #{pix_transform_forward.1} parent=11 // pred_check
        %p319 = pneg %p227
      $region42: #{pix_transform_forward.1} parent=11 // pred_check_branch
        %321 = sbr.rel (%p319) target = $region44
      $region43: #{pix_transform_forward.1} parent=11 // pred_region
        _
      $region44: #{pix_transform_forward.1} parent=11 // pred_fallthru
        _
    $region12: #{pix_transform_forward.1} parent=5 // pred_fallthru
      _
    %p322 = scmp.lt.s32.totalorder %s19, 2
    // Predicated region
    $region45: #{pix_transform_forward.1} parent=5 // pred_check
      %p323 = pneg %p322
    $region46: #{pix_transform_forward.1} parent=5 // pred_check_branch
      %325 = sbr.rel (%p323) target = $region48
    $region47: #{pix_transform_forward.1} parent=5 // pred_region
      // Predicated region
      $region49: #{pix_transform_forward.1} parent=47 // pred_check
        %p326 = pneg %p53
      $region50: #{pix_transform_forward.1} parent=47 // pred_check_branch
        %328 = sbr.rel (%p326) target = $region52
      $region51: #{pix_transform_forward.1} parent=47 // pred_region
        %s329 = smul.u32 2, %s27
        %p330 = scmp.lt.s32.totalorder %s26, 1
        %s331 = scalar_select %p330, %s26, 1
        %p332 = scmp.lt.s32.totalorder %s329, 1
        %s333 = scalar_select %p332, %s329, 1
        %s334 = smul.addr %s331, 2
        %s335 = sadd.s32 %s333, %s334
        %s336 = smul.addr %s335, 8
        %s337 = scalar_lea.vmem %s0, %s336
        %s338 = smul.u32 2, %s27
      $region52: #{pix_transform_forward.1} parent=47 // pred_fallthru
        _
    $region48: #{pix_transform_forward.1} parent=5 // pred_fallthru
      _
    %p339 = scmp.le.s32.totalorder 1, %s19
    %p340 = scmp.lt.s32.totalorder %s19, 3
    %p341 = pnand %p339, %p340
    %p342 = pneg %p341
    // Predicated region
    $region53: #{pix_transform_forward.1} parent=5 // pred_check
      _
    $region54: #{pix_transform_forward.1} parent=5 // pred_check_branch
      %344 = sbr.rel (%p341) target = $region56
    $region55: #{pix_transform_forward.1} parent=5 // pred_region
      %s345 = ssub.s32 %s19, 1
      %s346 = smul.u32 2, %s29
      %p347 = scmp.lt.s32.totalorder %s28, 1
      %s348 = scalar_select %p347, %s28, 1
      %p349 = scmp.lt.s32.totalorder %s346, 1
      %s350 = scalar_select %p349, %s346, 1
      %s351 = smul.addr %s348, 2
      %s352 = sadd.s32 %s350, %s351
      %s353 = smul.addr %s352, 8
      %s354 = scalar_lea.vmem %s0, %s353
      %p355 = pneg %p59
      %p356 = pneg %p56
      %p357 = pneg %p80
      %p358 = pneg %p77
      %p359 = pneg %p101
      %p360 = pneg %p98
      %p361 = pneg %p122
      %p362 = pneg %p119
      %p363 = pneg %p143
      %p364 = pneg %p140
      %p365 = pneg %p164
      %p366 = pneg %p161
      %p367 = pneg %p185
      %p368 = pneg %p182
      %p369 = pneg %p206
      %p370 = pneg %p203
      %p371 = pneg %p227
      %p372 = pneg %p224
      %p373 = pneg %p255
      %p374 = pneg %p252
      %s375 = smul.u32 2, %s29
      %p376 = scmp.lt.s32.totalorder %s28, 1
      %s377 = scalar_select %p376, %s28, 1
      %p378 = scmp.lt.s32.totalorder %s375, 1
      %s379 = scalar_select %p378, %s375, 1
      %s380 = smul.addr %s377, 2
      %s381 = sadd.s32 %s379, %s380
      %s382 = scalar_lea.vmem %s9, %s381
      %p383 = pneg %p283
      %p384 = pneg %p280
      %s385 = smul.u32 2, %s29
      %p386 = scmp.lt.s32.totalorder %s28, 1
      %s387 = scalar_select %p386, %s28, 1
      %p388 = scmp.lt.s32.totalorder %s385, 1
      %s389 = scalar_select %p388, %s385, 1
      %s390 = smul.addr %s387, 512
      %s391 = sadd.s32 %s389, %s390
      %s392 = smul.addr %s391, 8
      %s393 = scalar_lea.vmem %s10, %s392
      %s394 = smul.u32 2, %s29
      %p395 = scmp.lt.s32.totalorder %s28, 1
      %s396 = scalar_select %p395, %s28, 1
      %p397 = scmp.lt.s32.totalorder %s394, 1
      %s398 = scalar_select %p397, %s394, 1
      %s399 = smul.addr %s396, 2
      %s400 = sadd.s32 %s398, %s399
      %s401 = smul.addr %s400, 8
      %s402 = scalar_lea.vmem %s0, %s401
      %s403 = smul.u32 2, %s29
      %s404 = smul.u32 2, %s29
      %p405 = scmp.lt.s32.totalorder %s28, 1
      %s406 = scalar_select %p405, %s28, 1
      %p407 = scmp.lt.s32.totalorder %s404, 1
      %s408 = scalar_select %p407, %s404, 1
      %s409 = smul.addr %s406, 2
      %s410 = sadd.s32 %s408, %s409
      %s411 = scalar_lea.vmem %s9, %s410
      %s412 = smul.u32 2, %s29
      %s413 = smul.u32 2, %s29
      %p414 = scmp.lt.s32.totalorder %s28, 1
      %s415 = scalar_select %p414, %s28, 1
      %p416 = scmp.lt.s32.totalorder %s413, 1
      %s417 = scalar_select %p416, %s413, 1
      %s418 = smul.addr %s415, 512
      %s419 = sadd.s32 %s417, %s418
      %s420 = smul.addr %s419, 8
      %s421 = scalar_lea.vmem %s10, %s420
      %s422 = smul.u32 2, %s29
      %v423 = vld [vmem:[%s402] sm:$0x3f]
      %v424 = vld [vmem:[%s402 + $0x8] sm:$0x3f]
      %v425 = vld [vmem:[%s1] sm:$0xff]
      %v426 = vld [vmem:[%s1 + $0x8] sm:$0xff]
      %v427 = vld [vmem:[%s1 + $0x10] sm:$0xff]
      %v428 = vld [vmem:[%s1 + $0x18] sm:$0xff]
      %v429 = vld [vmem:[%s1 + $0x20] sm:$0xff]
      %v430 = vld [vmem:[%s1 + $0x28] sm:$0xff]
      %v431 = vld [vmem:[%s1 + $0x30] sm:$0xff]
      %v432 = vld [vmem:[%s1 + $0x38] sm:$0xff]
      %v433 = vld [vmem:[%s2] sm:$0xff]
      %v434 = vld [vmem:[%s2 + $0x8] sm:$0xff]
      %v435 = vld [vmem:[%s2 + $0x10] sm:$0xff]
      %v436 = vld [vmem:[%s2 + $0x18] sm:$0xff]
      %v437 = vld [vmem:[%s2 + $0x20] sm:$0xff]
      %v438 = vld [vmem:[%s2 + $0x28] sm:$0xff]
      %v439 = vld [vmem:[%s2 + $0x30] sm:$0xff]
      %v440 = vld [vmem:[%s2 + $0x38] sm:$0xff]
      %442 = vset.pattern.permute.xlu0 0
      %443 = vperm.xlu0 %442, %v433
      %v444 = vpop.permute.xlu0 %443
      %447 = vset.pattern.permute.xlu0 0
      %448 = vperm.xlu0 %447, %v434
      %v449 = vpop.permute.xlu0 %448
      %452 = vset.pattern.permute.xlu0 0
      %453 = vperm.xlu0 %452, %v435
      %v454 = vpop.permute.xlu0 %453
      %457 = vset.pattern.permute.xlu0 0
      %458 = vperm.xlu0 %457, %v436
      %v459 = vpop.permute.xlu0 %458
      %462 = vset.pattern.permute.xlu0 0
      %463 = vperm.xlu0 %462, %v437
      %v464 = vpop.permute.xlu0 %463
      %467 = vset.pattern.permute.xlu0 0
      %468 = vperm.xlu0 %467, %v438
      %v469 = vpop.permute.xlu0 %468
      %472 = vset.pattern.permute.xlu0 0
      %473 = vperm.xlu0 %472, %v439
      %v474 = vpop.permute.xlu0 %473
      %477 = vset.pattern.permute.xlu0 0
      %478 = vperm.xlu0 %477, %v440
      %v479 = vpop.permute.xlu0 %478
      %vm481 = vcmask 48128
      %v483 = vsel %vm481, %v425, 0
      %v486 = vsel %vm481, %v426, 0
      %v489 = vsel %vm481, %v427, 0
      %v492 = vsel %vm481, %v428, 0
      %v495 = vsel %vm481, %v429, 0
      %v498 = vsel %vm481, %v430, 0
      %v501 = vsel %vm481, %v431, 0
      %v504 = vsel %vm481, %v432, 0
      %vm506 = vcmask 1045504
      %v508 = vsel %vm506, %v423, 0
      %v511 = vsel %vm506, %v424, 0
      %513 = vmatpush.msra.mxu0 0.0
      %514 = vmatpush.msra.mxu0 0.0
      %515 = vmatpush.msra.mxu0 0.0
      %516 = vmatpush.msra.mxu0 0.0
      %517 = vmatpush.msra.mxu0 0.0
      %518 = vmatpush.msra.mxu0 0.0
      %519 = vmatpush.msra.mxu0 0.0
      %520 = vmatpush.msra.mxu0 0.0
      %521 = vmatpush.msra.mxu0 0.0
      %522 = vmatpush.msra.mxu0 0.0
      %523 = vmatpush.msra.mxu0 0.0
      %524 = vmatpush.msra.mxu0 0.0
      %525 = vmatpush.msra.mxu0 0.0
      %526 = vmatpush.msra.mxu0 0.0
      %527 = vmatpush.msra.mxu0 0.0
      %528 = vmatpush.msra.mxu0 %v508
      %529 = vmatmul.f32.gmra.mxu0 %v483
      %v530 = vpop.f32.mrf.mxu0
      %v531 = vadd.f32 %v444, %v530
      %532 = vmatmul.f32.gmra.mxu0 %v486
      %v533 = vpop.f32.mrf.mxu0
      %v534 = vadd.f32 %v449, %v533
      %535 = vmatmul.f32.gmra.mxu0 %v489
      %v536 = vpop.f32.mrf.mxu0
      %v537 = vadd.f32 %v454, %v536
      %538 = vmatmul.f32.gmra.mxu0 %v492
      %v539 = vpop.f32.mrf.mxu0
      %v540 = vadd.f32 %v459, %v539
      %541 = vmatmul.f32.gmra.mxu0 %v495
      %v542 = vpop.f32.mrf.mxu0
      %v543 = vadd.f32 %v464, %v542
      %544 = vmatmul.f32.gmra.mxu0 %v498
      %v545 = vpop.f32.mrf.mxu0
      %v546 = vadd.f32 %v469, %v545
      %547 = vmatmul.f32.gmra.mxu0 %v501
      %v548 = vpop.f32.mrf.mxu0
      %v549 = vadd.f32 %v474, %v548
      %550 = vmatmul.f32.gmra.mxu0 %v504
      %v551 = vpop.f32.mrf.mxu0
      %v552 = vadd.f32 %v479, %v551
      %553 = vdwg.mxu0
      %554 = vmatpush.msra.mxu0 0.0
      %555 = vmatpush.msra.mxu0 0.0
      %556 = vmatpush.msra.mxu0 0.0
      %557 = vmatpush.msra.mxu0 0.0
      %558 = vmatpush.msra.mxu0 0.0
      %559 = vmatpush.msra.mxu0 0.0
      %560 = vmatpush.msra.mxu0 0.0
      %561 = vmatpush.msra.mxu0 0.0
      %562 = vmatpush.msra.mxu0 0.0
      %563 = vmatpush.msra.mxu0 0.0
      %564 = vmatpush.msra.mxu0 0.0
      %565 = vmatpush.msra.mxu0 0.0
      %566 = vmatpush.msra.mxu0 0.0
      %567 = vmatpush.msra.mxu0 0.0
      %568 = vmatpush.msra.mxu0 0.0
      %569 = vmatpush.msra.mxu0 %v511
      %570 = vmatmul.f32.gmra.mxu0 %v483
      %v571 = vpop.f32.mrf.mxu0
      %v572 = vadd.f32 %v444, %v571
      %573 = vmatmul.f32.gmra.mxu0 %v486
      %v574 = vpop.f32.mrf.mxu0
      %v575 = vadd.f32 %v449, %v574
      %576 = vmatmul.f32.gmra.mxu0 %v489
      %v577 = vpop.f32.mrf.mxu0
      %v578 = vadd.f32 %v454, %v577
      %579 = vmatmul.f32.gmra.mxu0 %v492
      %v580 = vpop.f32.mrf.mxu0
      %v581 = vadd.f32 %v459, %v580
      %582 = vmatmul.f32.gmra.mxu0 %v495
      %v583 = vpop.f32.mrf.mxu0
      %v584 = vadd.f32 %v464, %v583
      %585 = vmatmul.f32.gmra.mxu0 %v498
      %v586 = vpop.f32.mrf.mxu0
      %v587 = vadd.f32 %v469, %v586
      %588 = vmatmul.f32.gmra.mxu0 %v501
      %v589 = vpop.f32.mrf.mxu0
      %v590 = vadd.f32 %v474, %v589
      %591 = vmatmul.f32.gmra.mxu0 %v504
      %v592 = vpop.f32.mrf.mxu0
      %v593 = vadd.f32 %v479, %v592
      %594 = vdwg.mxu0
      %v595 = vmax.f32 %v531, 0.0
      %v596 = vmax.f32 %v572, 0.0
      %v597 = vmax.f32 %v534, 0.0
      %v598 = vmax.f32 %v575, 0.0
      %v599 = vmax.f32 %v537, 0.0
      %v600 = vmax.f32 %v578, 0.0
      %v601 = vmax.f32 %v540, 0.0
      %v602 = vmax.f32 %v581, 0.0
      %v603 = vmax.f32 %v543, 0.0
      %v604 = vmax.f32 %v584, 0.0
      %v605 = vmax.f32 %v546, 0.0
      %v606 = vmax.f32 %v587, 0.0
      %v607 = vmax.f32 %v549, 0.0
      %v608 = vmax.f32 %v590, 0.0
      %v609 = vmax.f32 %v552, 0.0
      %v610 = vmax.f32 %v593, 0.0
      %v611 = vld [vmem:[%s3] sm:$0xff]
      %v612 = vld [vmem:[%s3 + $0x8] sm:$0xff]
      %v613 = vld [vmem:[%s3 + $0x10] sm:$0xff]
      %v614 = vld [vmem:[%s3 + $0x18] sm:$0xff]
      %v615 = vld [vmem:[%s3 + $0x20] sm:$0xff]
      %v616 = vld [vmem:[%s3 + $0x28] sm:$0xff]
      %v617 = vld [vmem:[%s3 + $0x30] sm:$0xff]
      %v618 = vld [vmem:[%s3 + $0x38] sm:$0xff]
      %v619 = vld [vmem:[%s3 + $0x40] sm:$0xff]
      %v620 = vld [vmem:[%s3 + $0x48] sm:$0xff]
      %v621 = vld [vmem:[%s3 + $0x50] sm:$0xff]
      %v622 = vld [vmem:[%s3 + $0x58] sm:$0xff]
      %v623 = vld [vmem:[%s3 + $0x60] sm:$0xff]
      %v624 = vld [vmem:[%s3 + $0x68] sm:$0xff]
      %v625 = vld [vmem:[%s3 + $0x70] sm:$0xff]
      %v626 = vld [vmem:[%s3 + $0x78] sm:$0xff]
      %v627 = vld [vmem:[%s3 + $0x80] sm:$0xff]
      %v628 = vld [vmem:[%s3 + $0x88] sm:$0xff]
      %v629 = vld [vmem:[%s3 + $0x90] sm:$0xff]
      %v630 = vld [vmem:[%s3 + $0x98] sm:$0xff]
      %v631 = vld [vmem:[%s3 + $0xa0] sm:$0xff]
      %v632 = vld [vmem:[%s3 + $0xa8] sm:$0xff]
      %v633 = vld [vmem:[%s3 + $0xb0] sm:$0xff]
      %v634 = vld [vmem:[%s3 + $0xb8] sm:$0xff]
      %v635 = vld [vmem:[%s3 + $0xc0] sm:$0xff]
      %v636 = vld [vmem:[%s3 + $0xc8] sm:$0xff]
      %v637 = vld [vmem:[%s3 + $0xd0] sm:$0xff]
      %v638 = vld [vmem:[%s3 + $0xd8] sm:$0xff]
      %v639 = vld [vmem:[%s3 + $0xe0] sm:$0xff]
      %v640 = vld [vmem:[%s3 + $0xe8] sm:$0xff]
      %v641 = vld [vmem:[%s3 + $0xf0] sm:$0xff]
      %v642 = vld [vmem:[%s3 + $0xf8] sm:$0xff]
      %v643 = vld [vmem:[%s3 + $0x100] sm:$0xff]
      %v644 = vld [vmem:[%s3 + $0x108] sm:$0xff]
      %v645 = vld [vmem:[%s3 + $0x110] sm:$0xff]
      %v646 = vld [vmem:[%s3 + $0x118] sm:$0xff]
      %v647 = vld [vmem:[%s3 + $0x120] sm:$0xff]
      %v648 = vld [vmem:[%s3 + $0x128] sm:$0xff]
      %v649 = vld [vmem:[%s3 + $0x130] sm:$0xff]
      %v650 = vld [vmem:[%s3 + $0x138] sm:$0xff]
      %v651 = vld [vmem:[%s3 + $0x140] sm:$0xff]
      %v652 = vld [vmem:[%s3 + $0x148] sm:$0xff]
      %v653 = vld [vmem:[%s3 + $0x150] sm:$0xff]
      %v654 = vld [vmem:[%s3 + $0x158] sm:$0xff]
      %v655 = vld [vmem:[%s3 + $0x160] sm:$0xff]
      %v656 = vld [vmem:[%s3 + $0x168] sm:$0xff]
      %v657 = vld [vmem:[%s3 + $0x170] sm:$0xff]
      %v658 = vld [vmem:[%s3 + $0x178] sm:$0xff]
      %v659 = vld [vmem:[%s3 + $0x180] sm:$0xff]
      %v660 = vld [vmem:[%s3 + $0x188] sm:$0xff]
      %v661 = vld [vmem:[%s3 + $0x190] sm:$0xff]
      %v662 = vld [vmem:[%s3 + $0x198] sm:$0xff]
      %v663 = vld [vmem:[%s3 + $0x1a0] sm:$0xff]
      %v664 = vld [vmem:[%s3 + $0x1a8] sm:$0xff]
      %v665 = vld [vmem:[%s3 + $0x1b0] sm:$0xff]
      %v666 = vld [vmem:[%s3 + $0x1b8] sm:$0xff]
      %v667 = vld [vmem:[%s3 + $0x1c0] sm:$0xff]
      %v668 = vld [vmem:[%s3 + $0x1c8] sm:$0xff]
      %v669 = vld [vmem:[%s3 + $0x1d0] sm:$0xff]
      %v670 = vld [vmem:[%s3 + $0x1d8] sm:$0xff]
      %v671 = vld [vmem:[%s3 + $0x1e0] sm:$0xff]
      %v672 = vld [vmem:[%s3 + $0x1e8] sm:$0xff]
      %v673 = vld [vmem:[%s3 + $0x1f0] sm:$0xff]
      %v674 = vld [vmem:[%s3 + $0x1f8] sm:$0xff]
      %v675 = vld [vmem:[%s3 + $0x200] sm:$0xff]
      %v676 = vld [vmem:[%s3 + $0x208] sm:$0xff]
      %v677 = vld [vmem:[%s3 + $0x210] sm:$0xff]
      %v678 = vld [vmem:[%s3 + $0x218] sm:$0xff]
      %v679 = vld [vmem:[%s3 + $0x220] sm:$0xff]
      %v680 = vld [vmem:[%s3 + $0x228] sm:$0xff]
      %v681 = vld [vmem:[%s3 + $0x230] sm:$0xff]
      %v682 = vld [vmem:[%s3 + $0x238] sm:$0xff]
      %v683 = vld [vmem:[%s3 + $0x240] sm:$0xff]
      %v684 = vld [vmem:[%s3 + $0x248] sm:$0xff]
      %v685 = vld [vmem:[%s3 + $0x250] sm:$0xff]
      %v686 = vld [vmem:[%s3 + $0x258] sm:$0xff]
      %v687 = vld [vmem:[%s3 + $0x260] sm:$0xff]
      %v688 = vld [vmem:[%s3 + $0x268] sm:$0xff]
      %v689 = vld [vmem:[%s3 + $0x270] sm:$0xff]
      %v690 = vld [vmem:[%s3 + $0x278] sm:$0xff]
      %v691 = vld [vmem:[%s3 + $0x280] sm:$0xff]
      %v692 = vld [vmem:[%s3 + $0x288] sm:$0xff]
      %v693 = vld [vmem:[%s3 + $0x290] sm:$0xff]
      %v694 = vld [vmem:[%s3 + $0x298] sm:$0xff]
      %v695 = vld [vmem:[%s3 + $0x2a0] sm:$0xff]
      %v696 = vld [vmem:[%s3 + $0x2a8] sm:$0xff]
      %v697 = vld [vmem:[%s3 + $0x2b0] sm:$0xff]
      %v698 = vld [vmem:[%s3 + $0x2b8] sm:$0xff]
      %v699 = vld [vmem:[%s3 + $0x2c0] sm:$0xff]
      %v700 = vld [vmem:[%s3 + $0x2c8] sm:$0xff]
      %v701 = vld [vmem:[%s3 + $0x2d0] sm:$0xff]
      %v702 = vld [vmem:[%s3 + $0x2d8] sm:$0xff]
      %v703 = vld [vmem:[%s3 + $0x2e0] sm:$0xff]
      %v704 = vld [vmem:[%s3 + $0x2e8] sm:$0xff]
      %v705 = vld [vmem:[%s3 + $0x2f0] sm:$0xff]
      %v706 = vld [vmem:[%s3 + $0x2f8] sm:$0xff]
      %v707 = vld [vmem:[%s3 + $0x300] sm:$0xff]
      %v708 = vld [vmem:[%s3 + $0x308] sm:$0xff]
      %v709 = vld [vmem:[%s3 + $0x310] sm:$0xff]
      %v710 = vld [vmem:[%s3 + $0x318] sm:$0xff]
      %v711 = vld [vmem:[%s3 + $0x320] sm:$0xff]
      %v712 = vld [vmem:[%s3 + $0x328] sm:$0xff]
      %v713 = vld [vmem:[%s3 + $0x330] sm:$0xff]
      %v714 = vld [vmem:[%s3 + $0x338] sm:$0xff]
      %v715 = vld [vmem:[%s3 + $0x340] sm:$0xff]
      %v716 = vld [vmem:[%s3 + $0x348] sm:$0xff]
      %v717 = vld [vmem:[%s3 + $0x350] sm:$0xff]
      %v718 = vld [vmem:[%s3 + $0x358] sm:$0xff]
      %v719 = vld [vmem:[%s3 + $0x360] sm:$0xff]
      %v720 = vld [vmem:[%s3 + $0x368] sm:$0xff]
      %v721 = vld [vmem:[%s3 + $0x370] sm:$0xff]
      %v722 = vld [vmem:[%s3 + $0x378] sm:$0xff]
      %v723 = vld [vmem:[%s3 + $0x380] sm:$0xff]
      %v724 = vld [vmem:[%s3 + $0x388] sm:$0xff]
      %v725 = vld [vmem:[%s3 + $0x390] sm:$0xff]
      %v726 = vld [vmem:[%s3 + $0x398] sm:$0xff]
      %v727 = vld [vmem:[%s3 + $0x3a0] sm:$0xff]
      %v728 = vld [vmem:[%s3 + $0x3a8] sm:$0xff]
      %v729 = vld [vmem:[%s3 + $0x3b0] sm:$0xff]
      %v730 = vld [vmem:[%s3 + $0x3b8] sm:$0xff]
      %v731 = vld [vmem:[%s3 + $0x3c0] sm:$0xff]
      %v732 = vld [vmem:[%s3 + $0x3c8] sm:$0xff]
      %v733 = vld [vmem:[%s3 + $0x3d0] sm:$0xff]
      %v734 = vld [vmem:[%s3 + $0x3d8] sm:$0xff]
      %v735 = vld [vmem:[%s3 + $0x3e0] sm:$0xff]
      %v736 = vld [vmem:[%s3 + $0x3e8] sm:$0xff]
      %v737 = vld [vmem:[%s3 + $0x3f0] sm:$0xff]
      %v738 = vld [vmem:[%s3 + $0x3f8] sm:$0xff]
      %v739 = vld [vmem:[%s3 + $0x400] sm:$0xff]
      %v740 = vld [vmem:[%s3 + $0x408] sm:$0xff]
      %v741 = vld [vmem:[%s3 + $0x410] sm:$0xff]
      %v742 = vld [vmem:[%s3 + $0x418] sm:$0xff]
      %v743 = vld [vmem:[%s3 + $0x420] sm:$0xff]
      %v744 = vld [vmem:[%s3 + $0x428] sm:$0xff]
      %v745 = vld [vmem:[%s3 + $0x430] sm:$0xff]
      %v746 = vld [vmem:[%s3 + $0x438] sm:$0xff]
      %v747 = vld [vmem:[%s3 + $0x440] sm:$0xff]
      %v748 = vld [vmem:[%s3 + $0x448] sm:$0xff]
      %v749 = vld [vmem:[%s3 + $0x450] sm:$0xff]
      %v750 = vld [vmem:[%s3 + $0x458] sm:$0xff]
      %v751 = vld [vmem:[%s3 + $0x460] sm:$0xff]
      %v752 = vld [vmem:[%s3 + $0x468] sm:$0xff]
      %v753 = vld [vmem:[%s3 + $0x470] sm:$0xff]
      %v754 = vld [vmem:[%s3 + $0x478] sm:$0xff]
      %v755 = vld [vmem:[%s3 + $0x480] sm:$0xff]
      %v756 = vld [vmem:[%s3 + $0x488] sm:$0xff]
      %v757 = vld [vmem:[%s3 + $0x490] sm:$0xff]
      %v758 = vld [vmem:[%s3 + $0x498] sm:$0xff]
      %v759 = vld [vmem:[%s3 + $0x4a0] sm:$0xff]
      %v760 = vld [vmem:[%s3 + $0x4a8] sm:$0xff]
      %v761 = vld [vmem:[%s3 + $0x4b0] sm:$0xff]
      %v762 = vld [vmem:[%s3 + $0x4b8] sm:$0xff]
      %v763 = vld [vmem:[%s3 + $0x4c0] sm:$0xff]
      %v764 = vld [vmem:[%s3 + $0x4c8] sm:$0xff]
      %v765 = vld [vmem:[%s3 + $0x4d0] sm:$0xff]
      %v766 = vld [vmem:[%s3 + $0x4d8] sm:$0xff]
      %v767 = vld [vmem:[%s3 + $0x4e0] sm:$0xff]
      %v768 = vld [vmem:[%s3 + $0x4e8] sm:$0xff]
      %v769 = vld [vmem:[%s3 + $0x4f0] sm:$0xff]
      %v770 = vld [vmem:[%s3 + $0x4f8] sm:$0xff]
      %v771 = vld [vmem:[%s3 + $0x500] sm:$0xff]
      %v772 = vld [vmem:[%s3 + $0x508] sm:$0xff]
      %v773 = vld [vmem:[%s3 + $0x510] sm:$0xff]
      %v774 = vld [vmem:[%s3 + $0x518] sm:$0xff]
      %v775 = vld [vmem:[%s3 + $0x520] sm:$0xff]
      %v776 = vld [vmem:[%s3 + $0x528] sm:$0xff]
      %v777 = vld [vmem:[%s3 + $0x530] sm:$0xff]
      %v778 = vld [vmem:[%s3 + $0x538] sm:$0xff]
      %v779 = vld [vmem:[%s3 + $0x540] sm:$0xff]
      %v780 = vld [vmem:[%s3 + $0x548] sm:$0xff]
      %v781 = vld [vmem:[%s3 + $0x550] sm:$0xff]
      %v782 = vld [vmem:[%s3 + $0x558] sm:$0xff]
      %v783 = vld [vmem:[%s3 + $0x560] sm:$0xff]
      %v784 = vld [vmem:[%s3 + $0x568] sm:$0xff]
      %v785 = vld [vmem:[%s3 + $0x570] sm:$0xff]
      %v786 = vld [vmem:[%s3 + $0x578] sm:$0xff]
      %v787 = vld [vmem:[%s3 + $0x580] sm:$0xff]
      %v788 = vld [vmem:[%s3 + $0x588] sm:$0xff]
      %v789 = vld [vmem:[%s3 + $0x590] sm:$0xff]
      %v790 = vld [vmem:[%s3 + $0x598] sm:$0xff]
      %v791 = vld [vmem:[%s3 + $0x5a0] sm:$0xff]
      %v792 = vld [vmem:[%s3 + $0x5a8] sm:$0xff]
      %v793 = vld [vmem:[%s3 + $0x5b0] sm:$0xff]
      %v794 = vld [vmem:[%s3 + $0x5b8] sm:$0xff]
      %v795 = vld [vmem:[%s3 + $0x5c0] sm:$0xff]
      %v796 = vld [vmem:[%s3 + $0x5c8] sm:$0xff]
      %v797 = vld [vmem:[%s3 + $0x5d0] sm:$0xff]
      %v798 = vld [vmem:[%s3 + $0x5d8] sm:$0xff]
      %v799 = vld [vmem:[%s3 + $0x5e0] sm:$0xff]
      %v800 = vld [vmem:[%s3 + $0x5e8] sm:$0xff]
      %v801 = vld [vmem:[%s3 + $0x5f0] sm:$0xff]
      %v802 = vld [vmem:[%s3 + $0x5f8] sm:$0xff]
      %v803 = vld [vmem:[%s3 + $0x600] sm:$0xff]
      %v804 = vld [vmem:[%s3 + $0x608] sm:$0xff]
      %v805 = vld [vmem:[%s3 + $0x610] sm:$0xff]
      %v806 = vld [vmem:[%s3 + $0x618] sm:$0xff]
      %v807 = vld [vmem:[%s3 + $0x620] sm:$0xff]
      %v808 = vld [vmem:[%s3 + $0x628] sm:$0xff]
      %v809 = vld [vmem:[%s3 + $0x630] sm:$0xff]
      %v810 = vld [vmem:[%s3 + $0x638] sm:$0xff]
      %v811 = vld [vmem:[%s3 + $0x640] sm:$0xff]
      %v812 = vld [vmem:[%s3 + $0x648] sm:$0xff]
      %v813 = vld [vmem:[%s3 + $0x650] sm:$0xff]
      %v814 = vld [vmem:[%s3 + $0x658] sm:$0xff]
      %v815 = vld [vmem:[%s3 + $0x660] sm:$0xff]
      %v816 = vld [vmem:[%s3 + $0x668] sm:$0xff]
      %v817 = vld [vmem:[%s3 + $0x670] sm:$0xff]
      %v818 = vld [vmem:[%s3 + $0x678] sm:$0xff]
      %v819 = vld [vmem:[%s3 + $0x680] sm:$0xff]
      %v820 = vld [vmem:[%s3 + $0x688] sm:$0xff]
      %v821 = vld [vmem:[%s3 + $0x690] sm:$0xff]
      %v822 = vld [vmem:[%s3 + $0x698] sm:$0xff]
      %v823 = vld [vmem:[%s3 + $0x6a0] sm:$0xff]
      %v824 = vld [vmem:[%s3 + $0x6a8] sm:$0xff]
      %v825 = vld [vmem:[%s3 + $0x6b0] sm:$0xff]
      %v826 = vld [vmem:[%s3 + $0x6b8] sm:$0xff]
      %v827 = vld [vmem:[%s3 + $0x6c0] sm:$0xff]
      %v828 = vld [vmem:[%s3 + $0x6c8] sm:$0xff]
      %v829 = vld [vmem:[%s3 + $0x6d0] sm:$0xff]
      %v830 = vld [vmem:[%s3 + $0x6d8] sm:$0xff]
      %v831 = vld [vmem:[%s3 + $0x6e0] sm:$0xff]
      %v832 = vld [vmem:[%s3 + $0x6e8] sm:$0xff]
      %v833 = vld [vmem:[%s3 + $0x6f0] sm:$0xff]
      %v834 = vld [vmem:[%s3 + $0x6f8] sm:$0xff]
      %v835 = vld [vmem:[%s3 + $0x700] sm:$0xff]
      %v836 = vld [vmem:[%s3 + $0x708] sm:$0xff]
      %v837 = vld [vmem:[%s3 + $0x710] sm:$0xff]
      %v838 = vld [vmem:[%s3 + $0x718] sm:$0xff]
      %v839 = vld [vmem:[%s3 + $0x720] sm:$0xff]
      %v840 = vld [vmem:[%s3 + $0x728] sm:$0xff]
      %v841 = vld [vmem:[%s3 + $0x730] sm:$0xff]
      %v842 = vld [vmem:[%s3 + $0x738] sm:$0xff]
      %v843 = vld [vmem:[%s3 + $0x740] sm:$0xff]
      %v844 = vld [vmem:[%s3 + $0x748] sm:$0xff]
      %v845 = vld [vmem:[%s3 + $0x750] sm:$0xff]
      %v846 = vld [vmem:[%s3 + $0x758] sm:$0xff]
      %v847 = vld [vmem:[%s3 + $0x760] sm:$0xff]
      %v848 = vld [vmem:[%s3 + $0x768] sm:$0xff]
      %v849 = vld [vmem:[%s3 + $0x770] sm:$0xff]
      %v850 = vld [vmem:[%s3 + $0x778] sm:$0xff]
      %v851 = vld [vmem:[%s3 + $0x780] sm:$0xff]
      %v852 = vld [vmem:[%s3 + $0x788] sm:$0xff]
      %v853 = vld [vmem:[%s3 + $0x790] sm:$0xff]
      %v854 = vld [vmem:[%s3 + $0x798] sm:$0xff]
      %v855 = vld [vmem:[%s3 + $0x7a0] sm:$0xff]
      %v856 = vld [vmem:[%s3 + $0x7a8] sm:$0xff]
      %v857 = vld [vmem:[%s3 + $0x7b0] sm:$0xff]
      %v858 = vld [vmem:[%s3 + $0x7b8] sm:$0xff]
      %v859 = vld [vmem:[%s3 + $0x7c0] sm:$0xff]
      %v860 = vld [vmem:[%s3 + $0x7c8] sm:$0xff]
      %v861 = vld [vmem:[%s3 + $0x7d0] sm:$0xff]
      %v862 = vld [vmem:[%s3 + $0x7d8] sm:$0xff]
      %v863 = vld [vmem:[%s3 + $0x7e0] sm:$0xff]
      %v864 = vld [vmem:[%s3 + $0x7e8] sm:$0xff]
      %v865 = vld [vmem:[%s3 + $0x7f0] sm:$0xff]
      %v866 = vld [vmem:[%s3 + $0x7f8] sm:$0xff]
      %v867 = vld [vmem:[%s4] sm:$0xff]
      %v868 = vld [vmem:[%s4 + $0x8] sm:$0xff]
      %v869 = vld [vmem:[%s4 + $0x10] sm:$0xff]
      %v870 = vld [vmem:[%s4 + $0x18] sm:$0xff]
      %v871 = vld [vmem:[%s4 + $0x20] sm:$0xff]
      %v872 = vld [vmem:[%s4 + $0x28] sm:$0xff]
      %v873 = vld [vmem:[%s4 + $0x30] sm:$0xff]
      %v874 = vld [vmem:[%s4 + $0x38] sm:$0xff]
      %v875 = vld [vmem:[%s4 + $0x40] sm:$0xff]
      %v876 = vld [vmem:[%s4 + $0x48] sm:$0xff]
      %v877 = vld [vmem:[%s4 + $0x50] sm:$0xff]
      %v878 = vld [vmem:[%s4 + $0x58] sm:$0xff]
      %v879 = vld [vmem:[%s4 + $0x60] sm:$0xff]
      %v880 = vld [vmem:[%s4 + $0x68] sm:$0xff]
      %v881 = vld [vmem:[%s4 + $0x70] sm:$0xff]
      %v882 = vld [vmem:[%s4 + $0x78] sm:$0xff]
      %v883 = vld [vmem:[%s4 + $0x80] sm:$0xff]
      %v884 = vld [vmem:[%s4 + $0x88] sm:$0xff]
      %v885 = vld [vmem:[%s4 + $0x90] sm:$0xff]
      %v886 = vld [vmem:[%s4 + $0x98] sm:$0xff]
      %v887 = vld [vmem:[%s4 + $0xa0] sm:$0xff]
      %v888 = vld [vmem:[%s4 + $0xa8] sm:$0xff]
      %v889 = vld [vmem:[%s4 + $0xb0] sm:$0xff]
      %v890 = vld [vmem:[%s4 + $0xb8] sm:$0xff]
      %v891 = vld [vmem:[%s4 + $0xc0] sm:$0xff]
      %v892 = vld [vmem:[%s4 + $0xc8] sm:$0xff]
      %v893 = vld [vmem:[%s4 + $0xd0] sm:$0xff]
      %v894 = vld [vmem:[%s4 + $0xd8] sm:$0xff]
      %v895 = vld [vmem:[%s4 + $0xe0] sm:$0xff]
      %v896 = vld [vmem:[%s4 + $0xe8] sm:$0xff]
      %v897 = vld [vmem:[%s4 + $0xf0] sm:$0xff]
      %v898 = vld [vmem:[%s4 + $0xf8] sm:$0xff]
      %v899 = vld [vmem:[%s4 + $0x100] sm:$0xff]
      %v900 = vld [vmem:[%s4 + $0x108] sm:$0xff]
      %v901 = vld [vmem:[%s4 + $0x110] sm:$0xff]
      %v902 = vld [vmem:[%s4 + $0x118] sm:$0xff]
      %v903 = vld [vmem:[%s4 + $0x120] sm:$0xff]
      %v904 = vld [vmem:[%s4 + $0x128] sm:$0xff]
      %v905 = vld [vmem:[%s4 + $0x130] sm:$0xff]
      %v906 = vld [vmem:[%s4 + $0x138] sm:$0xff]
      %v907 = vld [vmem:[%s4 + $0x140] sm:$0xff]
      %v908 = vld [vmem:[%s4 + $0x148] sm:$0xff]
      %v909 = vld [vmem:[%s4 + $0x150] sm:$0xff]
      %v910 = vld [vmem:[%s4 + $0x158] sm:$0xff]
      %v911 = vld [vmem:[%s4 + $0x160] sm:$0xff]
      %v912 = vld [vmem:[%s4 + $0x168] sm:$0xff]
      %v913 = vld [vmem:[%s4 + $0x170] sm:$0xff]
      %v914 = vld [vmem:[%s4 + $0x178] sm:$0xff]
      %v915 = vld [vmem:[%s4 + $0x180] sm:$0xff]
      %v916 = vld [vmem:[%s4 + $0x188] sm:$0xff]
      %v917 = vld [vmem:[%s4 + $0x190] sm:$0xff]
      %v918 = vld [vmem:[%s4 + $0x198] sm:$0xff]
      %v919 = vld [vmem:[%s4 + $0x1a0] sm:$0xff]
      %v920 = vld [vmem:[%s4 + $0x1a8] sm:$0xff]
      %v921 = vld [vmem:[%s4 + $0x1b0] sm:$0xff]
      %v922 = vld [vmem:[%s4 + $0x1b8] sm:$0xff]
      %v923 = vld [vmem:[%s4 + $0x1c0] sm:$0xff]
      %v924 = vld [vmem:[%s4 + $0x1c8] sm:$0xff]
      %v925 = vld [vmem:[%s4 + $0x1d0] sm:$0xff]
      %v926 = vld [vmem:[%s4 + $0x1d8] sm:$0xff]
      %v927 = vld [vmem:[%s4 + $0x1e0] sm:$0xff]
      %v928 = vld [vmem:[%s4 + $0x1e8] sm:$0xff]
      %v929 = vld [vmem:[%s4 + $0x1f0] sm:$0xff]
      %v930 = vld [vmem:[%s4 + $0x1f8] sm:$0xff]
      %v931 = vld [vmem:[%s4 + $0x200] sm:$0xff]
      %v932 = vld [vmem:[%s4 + $0x208] sm:$0xff]
      %v933 = vld [vmem:[%s4 + $0x210] sm:$0xff]
      %v934 = vld [vmem:[%s4 + $0x218] sm:$0xff]
      %v935 = vld [vmem:[%s4 + $0x220] sm:$0xff]
      %v936 = vld [vmem:[%s4 + $0x228] sm:$0xff]
      %v937 = vld [vmem:[%s4 + $0x230] sm:$0xff]
      %v938 = vld [vmem:[%s4 + $0x238] sm:$0xff]
      %v939 = vld [vmem:[%s4 + $0x240] sm:$0xff]
      %v940 = vld [vmem:[%s4 + $0x248] sm:$0xff]
      %v941 = vld [vmem:[%s4 + $0x250] sm:$0xff]
      %v942 = vld [vmem:[%s4 + $0x258] sm:$0xff]
      %v943 = vld [vmem:[%s4 + $0x260] sm:$0xff]
      %v944 = vld [vmem:[%s4 + $0x268] sm:$0xff]
      %v945 = vld [vmem:[%s4 + $0x270] sm:$0xff]
      %v946 = vld [vmem:[%s4 + $0x278] sm:$0xff]
      %v947 = vld [vmem:[%s4 + $0x280] sm:$0xff]
      %v948 = vld [vmem:[%s4 + $0x288] sm:$0xff]
      %v949 = vld [vmem:[%s4 + $0x290] sm:$0xff]
      %v950 = vld [vmem:[%s4 + $0x298] sm:$0xff]
      %v951 = vld [vmem:[%s4 + $0x2a0] sm:$0xff]
      %v952 = vld [vmem:[%s4 + $0x2a8] sm:$0xff]
      %v953 = vld [vmem:[%s4 + $0x2b0] sm:$0xff]
      %v954 = vld [vmem:[%s4 + $0x2b8] sm:$0xff]
      %v955 = vld [vmem:[%s4 + $0x2c0] sm:$0xff]
      %v956 = vld [vmem:[%s4 + $0x2c8] sm:$0xff]
      %v957 = vld [vmem:[%s4 + $0x2d0] sm:$0xff]
      %v958 = vld [vmem:[%s4 + $0x2d8] sm:$0xff]
      %v959 = vld [vmem:[%s4 + $0x2e0] sm:$0xff]
      %v960 = vld [vmem:[%s4 + $0x2e8] sm:$0xff]
      %v961 = vld [vmem:[%s4 + $0x2f0] sm:$0xff]
      %v962 = vld [vmem:[%s4 + $0x2f8] sm:$0xff]
      %v963 = vld [vmem:[%s4 + $0x300] sm:$0xff]
      %v964 = vld [vmem:[%s4 + $0x308] sm:$0xff]
      %v965 = vld [vmem:[%s4 + $0x310] sm:$0xff]
      %v966 = vld [vmem:[%s4 + $0x318] sm:$0xff]
      %v967 = vld [vmem:[%s4 + $0x320] sm:$0xff]
      %v968 = vld [vmem:[%s4 + $0x328] sm:$0xff]
      %v969 = vld [vmem:[%s4 + $0x330] sm:$0xff]
      %v970 = vld [vmem:[%s4 + $0x338] sm:$0xff]
      %v971 = vld [vmem:[%s4 + $0x340] sm:$0xff]
      %v972 = vld [vmem:[%s4 + $0x348] sm:$0xff]
      %v973 = vld [vmem:[%s4 + $0x350] sm:$0xff]
      %v974 = vld [vmem:[%s4 + $0x358] sm:$0xff]
      %v975 = vld [vmem:[%s4 + $0x360] sm:$0xff]
      %v976 = vld [vmem:[%s4 + $0x368] sm:$0xff]
      %v977 = vld [vmem:[%s4 + $0x370] sm:$0xff]
      %v978 = vld [vmem:[%s4 + $0x378] sm:$0xff]
      %v979 = vld [vmem:[%s4 + $0x380] sm:$0xff]
      %v980 = vld [vmem:[%s4 + $0x388] sm:$0xff]
      %v981 = vld [vmem:[%s4 + $0x390] sm:$0xff]
      %v982 = vld [vmem:[%s4 + $0x398] sm:$0xff]
      %v983 = vld [vmem:[%s4 + $0x3a0] sm:$0xff]
      %v984 = vld [vmem:[%s4 + $0x3a8] sm:$0xff]
      %v985 = vld [vmem:[%s4 + $0x3b0] sm:$0xff]
      %v986 = vld [vmem:[%s4 + $0x3b8] sm:$0xff]
      %v987 = vld [vmem:[%s4 + $0x3c0] sm:$0xff]
      %v988 = vld [vmem:[%s4 + $0x3c8] sm:$0xff]
      %v989 = vld [vmem:[%s4 + $0x3d0] sm:$0xff]
      %v990 = vld [vmem:[%s4 + $0x3d8] sm:$0xff]
      %v991 = vld [vmem:[%s4 + $0x3e0] sm:$0xff]
      %v992 = vld [vmem:[%s4 + $0x3e8] sm:$0xff]
      %v993 = vld [vmem:[%s4 + $0x3f0] sm:$0xff]
      %v994 = vld [vmem:[%s4 + $0x3f8] sm:$0xff]
      %v995 = vld [vmem:[%s4 + $0x400] sm:$0xff]
      %v996 = vld [vmem:[%s4 + $0x408] sm:$0xff]
      %v997 = vld [vmem:[%s4 + $0x410] sm:$0xff]
      %v998 = vld [vmem:[%s4 + $0x418] sm:$0xff]
      %v999 = vld [vmem:[%s4 + $0x420] sm:$0xff]
      %v1000 = vld [vmem:[%s4 + $0x428] sm:$0xff]
      %v1001 = vld [vmem:[%s4 + $0x430] sm:$0xff]
      %v1002 = vld [vmem:[%s4 + $0x438] sm:$0xff]
      %v1003 = vld [vmem:[%s4 + $0x440] sm:$0xff]
      %v1004 = vld [vmem:[%s4 + $0x448] sm:$0xff]
      %v1005 = vld [vmem:[%s4 + $0x450] sm:$0xff]
      %v1006 = vld [vmem:[%s4 + $0x458] sm:$0xff]
      %v1007 = vld [vmem:[%s4 + $0x460] sm:$0xff]
      %v1008 = vld [vmem:[%s4 + $0x468] sm:$0xff]
      %v1009 = vld [vmem:[%s4 + $0x470] sm:$0xff]
      %v1010 = vld [vmem:[%s4 + $0x478] sm:$0xff]
      %v1011 = vld [vmem:[%s4 + $0x480] sm:$0xff]
      %v1012 = vld [vmem:[%s4 + $0x488] sm:$0xff]
      %v1013 = vld [vmem:[%s4 + $0x490] sm:$0xff]
      %v1014 = vld [vmem:[%s4 + $0x498] sm:$0xff]
      %v1015 = vld [vmem:[%s4 + $0x4a0] sm:$0xff]
      %v1016 = vld [vmem:[%s4 + $0x4a8] sm:$0xff]
      %v1017 = vld [vmem:[%s4 + $0x4b0] sm:$0xff]
      %v1018 = vld [vmem:[%s4 + $0x4b8] sm:$0xff]
      %v1019 = vld [vmem:[%s4 + $0x4c0] sm:$0xff]
      %v1020 = vld [vmem:[%s4 + $0x4c8] sm:$0xff]
      %v1021 = vld [vmem:[%s4 + $0x4d0] sm:$0xff]
      %v1022 = vld [vmem:[%s4 + $0x4d8] sm:$0xff]
      %v1023 = vld [vmem:[%s4 + $0x4e0] sm:$0xff]
      %v1024 = vld [vmem:[%s4 + $0x4e8] sm:$0xff]
      %v1025 = vld [vmem:[%s4 + $0x4f0] sm:$0xff]
      %v1026 = vld [vmem:[%s4 + $0x4f8] sm:$0xff]
      %v1027 = vld [vmem:[%s4 + $0x500] sm:$0xff]
      %v1028 = vld [vmem:[%s4 + $0x508] sm:$0xff]
      %v1029 = vld [vmem:[%s4 + $0x510] sm:$0xff]
      %v1030 = vld [vmem:[%s4 + $0x518] sm:$0xff]
      %v1031 = vld [vmem:[%s4 + $0x520] sm:$0xff]
      %v1032 = vld [vmem:[%s4 + $0x528] sm:$0xff]
      %v1033 = vld [vmem:[%s4 + $0x530] sm:$0xff]
      %v1034 = vld [vmem:[%s4 + $0x538] sm:$0xff]
      %v1035 = vld [vmem:[%s4 + $0x540] sm:$0xff]
      %v1036 = vld [vmem:[%s4 + $0x548] sm:$0xff]
      %v1037 = vld [vmem:[%s4 + $0x550] sm:$0xff]
      %v1038 = vld [vmem:[%s4 + $0x558] sm:$0xff]
      %v1039 = vld [vmem:[%s4 + $0x560] sm:$0xff]
      %v1040 = vld [vmem:[%s4 + $0x568] sm:$0xff]
      %v1041 = vld [vmem:[%s4 + $0x570] sm:$0xff]
      %v1042 = vld [vmem:[%s4 + $0x578] sm:$0xff]
      %v1043 = vld [vmem:[%s4 + $0x580] sm:$0xff]
      %v1044 = vld [vmem:[%s4 + $0x588] sm:$0xff]
      %v1045 = vld [vmem:[%s4 + $0x590] sm:$0xff]
      %v1046 = vld [vmem:[%s4 + $0x598] sm:$0xff]
      %v1047 = vld [vmem:[%s4 + $0x5a0] sm:$0xff]
      %v1048 = vld [vmem:[%s4 + $0x5a8] sm:$0xff]
      %v1049 = vld [vmem:[%s4 + $0x5b0] sm:$0xff]
      %v1050 = vld [vmem:[%s4 + $0x5b8] sm:$0xff]
      %v1051 = vld [vmem:[%s4 + $0x5c0] sm:$0xff]
      %v1052 = vld [vmem:[%s4 + $0x5c8] sm:$0xff]
      %v1053 = vld [vmem:[%s4 + $0x5d0] sm:$0xff]
      %v1054 = vld [vmem:[%s4 + $0x5d8] sm:$0xff]
      %v1055 = vld [vmem:[%s4 + $0x5e0] sm:$0xff]
      %v1056 = vld [vmem:[%s4 + $0x5e8] sm:$0xff]
      %v1057 = vld [vmem:[%s4 + $0x5f0] sm:$0xff]
      %v1058 = vld [vmem:[%s4 + $0x5f8] sm:$0xff]
      %v1059 = vld [vmem:[%s4 + $0x600] sm:$0xff]
      %v1060 = vld [vmem:[%s4 + $0x608] sm:$0xff]
      %v1061 = vld [vmem:[%s4 + $0x610] sm:$0xff]
      %v1062 = vld [vmem:[%s4 + $0x618] sm:$0xff]
      %v1063 = vld [vmem:[%s4 + $0x620] sm:$0xff]
      %v1064 = vld [vmem:[%s4 + $0x628] sm:$0xff]
      %v1065 = vld [vmem:[%s4 + $0x630] sm:$0xff]
      %v1066 = vld [vmem:[%s4 + $0x638] sm:$0xff]
      %v1067 = vld [vmem:[%s4 + $0x640] sm:$0xff]
      %v1068 = vld [vmem:[%s4 + $0x648] sm:$0xff]
      %v1069 = vld [vmem:[%s4 + $0x650] sm:$0xff]
      %v1070 = vld [vmem:[%s4 + $0x658] sm:$0xff]
      %v1071 = vld [vmem:[%s4 + $0x660] sm:$0xff]
      %v1072 = vld [vmem:[%s4 + $0x668] sm:$0xff]
      %v1073 = vld [vmem:[%s4 + $0x670] sm:$0xff]
      %v1074 = vld [vmem:[%s4 + $0x678] sm:$0xff]
      %v1075 = vld [vmem:[%s4 + $0x680] sm:$0xff]
      %v1076 = vld [vmem:[%s4 + $0x688] sm:$0xff]
      %v1077 = vld [vmem:[%s4 + $0x690] sm:$0xff]
      %v1078 = vld [vmem:[%s4 + $0x698] sm:$0xff]
      %v1079 = vld [vmem:[%s4 + $0x6a0] sm:$0xff]
      %v1080 = vld [vmem:[%s4 + $0x6a8] sm:$0xff]
      %v1081 = vld [vmem:[%s4 + $0x6b0] sm:$0xff]
      %v1082 = vld [vmem:[%s4 + $0x6b8] sm:$0xff]
      %v1083 = vld [vmem:[%s4 + $0x6c0] sm:$0xff]
      %v1084 = vld [vmem:[%s4 + $0x6c8] sm:$0xff]
      %v1085 = vld [vmem:[%s4 + $0x6d0] sm:$0xff]
      %v1086 = vld [vmem:[%s4 + $0x6d8] sm:$0xff]
      %v1087 = vld [vmem:[%s4 + $0x6e0] sm:$0xff]
      %v1088 = vld [vmem:[%s4 + $0x6e8] sm:$0xff]
      %v1089 = vld [vmem:[%s4 + $0x6f0] sm:$0xff]
      %v1090 = vld [vmem:[%s4 + $0x6f8] sm:$0xff]
      %v1091 = vld [vmem:[%s4 + $0x700] sm:$0xff]
      %v1092 = vld [vmem:[%s4 + $0x708] sm:$0xff]
      %v1093 = vld [vmem:[%s4 + $0x710] sm:$0xff]
      %v1094 = vld [vmem:[%s4 + $0x718] sm:$0xff]
      %v1095 = vld [vmem:[%s4 + $0x720] sm:$0xff]
      %v1096 = vld [vmem:[%s4 + $0x728] sm:$0xff]
      %v1097 = vld [vmem:[%s4 + $0x730] sm:$0xff]
      %v1098 = vld [vmem:[%s4 + $0x738] sm:$0xff]
      %v1099 = vld [vmem:[%s4 + $0x740] sm:$0xff]
      %v1100 = vld [vmem:[%s4 + $0x748] sm:$0xff]
      %v1101 = vld [vmem:[%s4 + $0x750] sm:$0xff]
      %v1102 = vld [vmem:[%s4 + $0x758] sm:$0xff]
      %v1103 = vld [vmem:[%s4 + $0x760] sm:$0xff]
      %v1104 = vld [vmem:[%s4 + $0x768] sm:$0xff]
      %v1105 = vld [vmem:[%s4 + $0x770] sm:$0xff]
      %v1106 = vld [vmem:[%s4 + $0x778] sm:$0xff]
      %v1107 = vld [vmem:[%s4 + $0x780] sm:$0xff]
      %v1108 = vld [vmem:[%s4 + $0x788] sm:$0xff]
      %v1109 = vld [vmem:[%s4 + $0x790] sm:$0xff]
      %v1110 = vld [vmem:[%s4 + $0x798] sm:$0xff]
      %v1111 = vld [vmem:[%s4 + $0x7a0] sm:$0xff]
      %v1112 = vld [vmem:[%s4 + $0x7a8] sm:$0xff]
      %v1113 = vld [vmem:[%s4 + $0x7b0] sm:$0xff]
      %v1114 = vld [vmem:[%s4 + $0x7b8] sm:$0xff]
      %v1115 = vld [vmem:[%s4 + $0x7c0] sm:$0xff]
      %v1116 = vld [vmem:[%s4 + $0x7c8] sm:$0xff]
      %v1117 = vld [vmem:[%s4 + $0x7d0] sm:$0xff]
      %v1118 = vld [vmem:[%s4 + $0x7d8] sm:$0xff]
      %v1119 = vld [vmem:[%s4 + $0x7e0] sm:$0xff]
      %v1120 = vld [vmem:[%s4 + $0x7e8] sm:$0xff]
      %v1121 = vld [vmem:[%s4 + $0x7f0] sm:$0xff]
      %v1122 = vld [vmem:[%s4 + $0x7f8] sm:$0xff]
      %1124 = vset.pattern.permute.xlu0 0
      %1125 = vperm.xlu0 %1124, %v867
      %v1126 = vpop.permute.xlu0 %1125
      %1129 = vset.pattern.permute.xlu0 0
      %1130 = vperm.xlu0 %1129, %v868
      %v1131 = vpop.permute.xlu0 %1130
      %1134 = vset.pattern.permute.xlu0 0
      %1135 = vperm.xlu0 %1134, %v869
      %v1136 = vpop.permute.xlu0 %1135
      %1139 = vset.pattern.permute.xlu0 0
      %1140 = vperm.xlu0 %1139, %v870
      %v1141 = vpop.permute.xlu0 %1140
      %1144 = vset.pattern.permute.xlu0 0
      %1145 = vperm.xlu0 %1144, %v871
      %v1146 = vpop.permute.xlu0 %1145
      %1149 = vset.pattern.permute.xlu0 0
      %1150 = vperm.xlu0 %1149, %v872
      %v1151 = vpop.permute.xlu0 %1150
      %1154 = vset.pattern.permute.xlu0 0
      %1155 = vperm.xlu0 %1154, %v873
      %v1156 = vpop.permute.xlu0 %1155
      %1159 = vset.pattern.permute.xlu0 0
      %1160 = vperm.xlu0 %1159, %v874
      %v1161 = vpop.permute.xlu0 %1160
      %1164 = vset.pattern.permute.xlu0 0
      %1165 = vperm.xlu0 %1164, %v875
      %v1166 = vpop.permute.xlu0 %1165
      %1169 = vset.pattern.permute.xlu0 0
      %1170 = vperm.xlu0 %1169, %v876
      %v1171 = vpop.permute.xlu0 %1170
      %1174 = vset.pattern.permute.xlu0 0
      %1175 = vperm.xlu0 %1174, %v877
      %v1176 = vpop.permute.xlu0 %1175
      %1179 = vset.pattern.permute.xlu0 0
      %1180 = vperm.xlu0 %1179, %v878
      %v1181 = vpop.permute.xlu0 %1180
      %1184 = vset.pattern.permute.xlu0 0
      %1185 = vperm.xlu0 %1184, %v879
      %v1186 = vpop.permute.xlu0 %1185
      %1189 = vset.pattern.permute.xlu0 0
      %1190 = vperm.xlu0 %1189, %v880
      %v1191 = vpop.permute.xlu0 %1190
      %1194 = vset.pattern.permute.xlu0 0
      %1195 = vperm.xlu0 %1194, %v881
      %v1196 = vpop.permute.xlu0 %1195
      %1199 = vset.pattern.permute.xlu0 0
      %1200 = vperm.xlu0 %1199, %v882
      %v1201 = vpop.permute.xlu0 %1200
      %1204 = vset.pattern.permute.xlu0 0
      %1205 = vperm.xlu0 %1204, %v883
      %v1206 = vpop.permute.xlu0 %1205
      %1209 = vset.pattern.permute.xlu0 0
      %1210 = vperm.xlu0 %1209, %v884
      %v1211 = vpop.permute.xlu0 %1210
      %1214 = vset.pattern.permute.xlu0 0
      %1215 = vperm.xlu0 %1214, %v885
      %v1216 = vpop.permute.xlu0 %1215
      %1219 = vset.pattern.permute.xlu0 0
      %1220 = vperm.xlu0 %1219, %v886
      %v1221 = vpop.permute.xlu0 %1220
      %1224 = vset.pattern.permute.xlu0 0
      %1225 = vperm.xlu0 %1224, %v887
      %v1226 = vpop.permute.xlu0 %1225
      %1229 = vset.pattern.permute.xlu0 0
      %1230 = vperm.xlu0 %1229, %v888
      %v1231 = vpop.permute.xlu0 %1230
      %1234 = vset.pattern.permute.xlu0 0
      %1235 = vperm.xlu0 %1234, %v889
      %v1236 = vpop.permute.xlu0 %1235
      %1239 = vset.pattern.permute.xlu0 0
      %1240 = vperm.xlu0 %1239, %v890
      %v1241 = vpop.permute.xlu0 %1240
      %1244 = vset.pattern.permute.xlu0 0
      %1245 = vperm.xlu0 %1244, %v891
      %v1246 = vpop.permute.xlu0 %1245
      %1249 = vset.pattern.permute.xlu0 0
      %1250 = vperm.xlu0 %1249, %v892
      %v1251 = vpop.permute.xlu0 %1250
      %1254 = vset.pattern.permute.xlu0 0
      %1255 = vperm.xlu0 %1254, %v893
      %v1256 = vpop.permute.xlu0 %1255
      %1259 = vset.pattern.permute.xlu0 0
      %1260 = vperm.xlu0 %1259, %v894
      %v1261 = vpop.permute.xlu0 %1260
      %1264 = vset.pattern.permute.xlu0 0
      %1265 = vperm.xlu0 %1264, %v895
      %v1266 = vpop.permute.xlu0 %1265
      %1269 = vset.pattern.permute.xlu0 0
      %1270 = vperm.xlu0 %1269, %v896
      %v1271 = vpop.permute.xlu0 %1270
      %1274 = vset.pattern.permute.xlu0 0
      %1275 = vperm.xlu0 %1274, %v897
      %v1276 = vpop.permute.xlu0 %1275
      %1279 = vset.pattern.permute.xlu0 0
      %1280 = vperm.xlu0 %1279, %v898
      %v1281 = vpop.permute.xlu0 %1280
      %1284 = vset.pattern.permute.xlu0 0
      %1285 = vperm.xlu0 %1284, %v899
      %v1286 = vpop.permute.xlu0 %1285
      %1289 = vset.pattern.permute.xlu0 0
      %1290 = vperm.xlu0 %1289, %v900
      %v1291 = vpop.permute.xlu0 %1290
      %1294 = vset.pattern.permute.xlu0 0
      %1295 = vperm.xlu0 %1294, %v901
      %v1296 = vpop.permute.xlu0 %1295
      %1299 = vset.pattern.permute.xlu0 0
      %1300 = vperm.xlu0 %1299, %v902
      %v1301 = vpop.permute.xlu0 %1300
      %1304 = vset.pattern.permute.xlu0 0
      %1305 = vperm.xlu0 %1304, %v903
      %v1306 = vpop.permute.xlu0 %1305
      %1309 = vset.pattern.permute.xlu0 0
      %1310 = vperm.xlu0 %1309, %v904
      %v1311 = vpop.permute.xlu0 %1310
      %1314 = vset.pattern.permute.xlu0 0
      %1315 = vperm.xlu0 %1314, %v905
      %v1316 = vpop.permute.xlu0 %1315
      %1319 = vset.pattern.permute.xlu0 0
      %1320 = vperm.xlu0 %1319, %v906
      %v1321 = vpop.permute.xlu0 %1320
      %1324 = vset.pattern.permute.xlu0 0
      %1325 = vperm.xlu0 %1324, %v907
      %v1326 = vpop.permute.xlu0 %1325
      %1329 = vset.pattern.permute.xlu0 0
      %1330 = vperm.xlu0 %1329, %v908
      %v1331 = vpop.permute.xlu0 %1330
      %1334 = vset.pattern.permute.xlu0 0
      %1335 = vperm.xlu0 %1334, %v909
      %v1336 = vpop.permute.xlu0 %1335
      %1339 = vset.pattern.permute.xlu0 0
      %1340 = vperm.xlu0 %1339, %v910
      %v1341 = vpop.permute.xlu0 %1340
      %1344 = vset.pattern.permute.xlu0 0
      %1345 = vperm.xlu0 %1344, %v911
      %v1346 = vpop.permute.xlu0 %1345
      %1349 = vset.pattern.permute.xlu0 0
      %1350 = vperm.xlu0 %1349, %v912
      %v1351 = vpop.permute.xlu0 %1350
      %1354 = vset.pattern.permute.xlu0 0
      %1355 = vperm.xlu0 %1354, %v913
      %v1356 = vpop.permute.xlu0 %1355
      %1359 = vset.pattern.permute.xlu0 0
      %1360 = vperm.xlu0 %1359, %v914
      %v1361 = vpop.permute.xlu0 %1360
      %1364 = vset.pattern.permute.xlu0 0
      %1365 = vperm.xlu0 %1364, %v915
      %v1366 = vpop.permute.xlu0 %1365
      %1369 = vset.pattern.permute.xlu0 0
      %1370 = vperm.xlu0 %1369, %v916
      %v1371 = vpop.permute.xlu0 %1370
      %1374 = vset.pattern.permute.xlu0 0
      %1375 = vperm.xlu0 %1374, %v917
      %v1376 = vpop.permute.xlu0 %1375
      %1379 = vset.pattern.permute.xlu0 0
      %1380 = vperm.xlu0 %1379, %v918
      %v1381 = vpop.permute.xlu0 %1380
      %1384 = vset.pattern.permute.xlu0 0
      %1385 = vperm.xlu0 %1384, %v919
      %v1386 = vpop.permute.xlu0 %1385
      %1389 = vset.pattern.permute.xlu0 0
      %1390 = vperm.xlu0 %1389, %v920
      %v1391 = vpop.permute.xlu0 %1390
      %1394 = vset.pattern.permute.xlu0 0
      %1395 = vperm.xlu0 %1394, %v921
      %v1396 = vpop.permute.xlu0 %1395
      %1399 = vset.pattern.permute.xlu0 0
      %1400 = vperm.xlu0 %1399, %v922
      %v1401 = vpop.permute.xlu0 %1400
      %1404 = vset.pattern.permute.xlu0 0
      %1405 = vperm.xlu0 %1404, %v923
      %v1406 = vpop.permute.xlu0 %1405
      %1409 = vset.pattern.permute.xlu0 0
      %1410 = vperm.xlu0 %1409, %v924
      %v1411 = vpop.permute.xlu0 %1410
      %1414 = vset.pattern.permute.xlu0 0
      %1415 = vperm.xlu0 %1414, %v925
      %v1416 = vpop.permute.xlu0 %1415
      %1419 = vset.pattern.permute.xlu0 0
      %1420 = vperm.xlu0 %1419, %v926
      %v1421 = vpop.permute.xlu0 %1420
      %1424 = vset.pattern.permute.xlu0 0
      %1425 = vperm.xlu0 %1424, %v927
      %v1426 = vpop.permute.xlu0 %1425
      %1429 = vset.pattern.permute.xlu0 0
      %1430 = vperm.xlu0 %1429, %v928
      %v1431 = vpop.permute.xlu0 %1430
      %1434 = vset.pattern.permute.xlu0 0
      %1435 = vperm.xlu0 %1434, %v929
      %v1436 = vpop.permute.xlu0 %1435
      %1439 = vset.pattern.permute.xlu0 0
      %1440 = vperm.xlu0 %1439, %v930
      %v1441 = vpop.permute.xlu0 %1440
      %1444 = vset.pattern.permute.xlu0 0
      %1445 = vperm.xlu0 %1444, %v931
      %v1446 = vpop.permute.xlu0 %1445
      %1449 = vset.pattern.permute.xlu0 0
      %1450 = vperm.xlu0 %1449, %v932
      %v1451 = vpop.permute.xlu0 %1450
      %1454 = vset.pattern.permute.xlu0 0
      %1455 = vperm.xlu0 %1454, %v933
      %v1456 = vpop.permute.xlu0 %1455
      %1459 = vset.pattern.permute.xlu0 0
      %1460 = vperm.xlu0 %1459, %v934
      %v1461 = vpop.permute.xlu0 %1460
      %1464 = vset.pattern.permute.xlu0 0
      %1465 = vperm.xlu0 %1464, %v935
      %v1466 = vpop.permute.xlu0 %1465
      %1469 = vset.pattern.permute.xlu0 0
      %1470 = vperm.xlu0 %1469, %v936
      %v1471 = vpop.permute.xlu0 %1470
      %1474 = vset.pattern.permute.xlu0 0
      %1475 = vperm.xlu0 %1474, %v937
      %v1476 = vpop.permute.xlu0 %1475
      %1479 = vset.pattern.permute.xlu0 0
      %1480 = vperm.xlu0 %1479, %v938
      %v1481 = vpop.permute.xlu0 %1480
      %1484 = vset.pattern.permute.xlu0 0
      %1485 = vperm.xlu0 %1484, %v939
      %v1486 = vpop.permute.xlu0 %1485
      %1489 = vset.pattern.permute.xlu0 0
      %1490 = vperm.xlu0 %1489, %v940
      %v1491 = vpop.permute.xlu0 %1490
      %1494 = vset.pattern.permute.xlu0 0
      %1495 = vperm.xlu0 %1494, %v941
      %v1496 = vpop.permute.xlu0 %1495
      %1499 = vset.pattern.permute.xlu0 0
      %1500 = vperm.xlu0 %1499, %v942
      %v1501 = vpop.permute.xlu0 %1500
      %1504 = vset.pattern.permute.xlu0 0
      %1505 = vperm.xlu0 %1504, %v943
      %v1506 = vpop.permute.xlu0 %1505
      %1509 = vset.pattern.permute.xlu0 0
      %1510 = vperm.xlu0 %1509, %v944
      %v1511 = vpop.permute.xlu0 %1510
      %1514 = vset.pattern.permute.xlu0 0
      %1515 = vperm.xlu0 %1514, %v945
      %v1516 = vpop.permute.xlu0 %1515
      %1519 = vset.pattern.permute.xlu0 0
      %1520 = vperm.xlu0 %1519, %v946
      %v1521 = vpop.permute.xlu0 %1520
      %1524 = vset.pattern.permute.xlu0 0
      %1525 = vperm.xlu0 %1524, %v947
      %v1526 = vpop.permute.xlu0 %1525
      %1529 = vset.pattern.permute.xlu0 0
      %1530 = vperm.xlu0 %1529, %v948
      %v1531 = vpop.permute.xlu0 %1530
      %1534 = vset.pattern.permute.xlu0 0
      %1535 = vperm.xlu0 %1534, %v949
      %v1536 = vpop.permute.xlu0 %1535
      %1539 = vset.pattern.permute.xlu0 0
      %1540 = vperm.xlu0 %1539, %v950
      %v1541 = vpop.permute.xlu0 %1540
      %1544 = vset.pattern.permute.xlu0 0
      %1545 = vperm.xlu0 %1544, %v951
      %v1546 = vpop.permute.xlu0 %1545
      %1549 = vset.pattern.permute.xlu0 0
      %1550 = vperm.xlu0 %1549, %v952
      %v1551 = vpop.permute.xlu0 %1550
      %1554 = vset.pattern.permute.xlu0 0
      %1555 = vperm.xlu0 %1554, %v953
      %v1556 = vpop.permute.xlu0 %1555
      %1559 = vset.pattern.permute.xlu0 0
      %1560 = vperm.xlu0 %1559, %v954
      %v1561 = vpop.permute.xlu0 %1560
      %1564 = vset.pattern.permute.xlu0 0
      %1565 = vperm.xlu0 %1564, %v955
      %v1566 = vpop.permute.xlu0 %1565
      %1569 = vset.pattern.permute.xlu0 0
      %1570 = vperm.xlu0 %1569, %v956
      %v1571 = vpop.permute.xlu0 %1570
      %1574 = vset.pattern.permute.xlu0 0
      %1575 = vperm.xlu0 %1574, %v957
      %v1576 = vpop.permute.xlu0 %1575
      %1579 = vset.pattern.permute.xlu0 0
      %1580 = vperm.xlu0 %1579, %v958
      %v1581 = vpop.permute.xlu0 %1580
      %1584 = vset.pattern.permute.xlu0 0
      %1585 = vperm.xlu0 %1584, %v959
      %v1586 = vpop.permute.xlu0 %1585
      %1589 = vset.pattern.permute.xlu0 0
      %1590 = vperm.xlu0 %1589, %v960
      %v1591 = vpop.permute.xlu0 %1590
      %1594 = vset.pattern.permute.xlu0 0
      %1595 = vperm.xlu0 %1594, %v961
      %v1596 = vpop.permute.xlu0 %1595
      %1599 = vset.pattern.permute.xlu0 0
      %1600 = vperm.xlu0 %1599, %v962
      %v1601 = vpop.permute.xlu0 %1600
      %1604 = vset.pattern.permute.xlu0 0
      %1605 = vperm.xlu0 %1604, %v963
      %v1606 = vpop.permute.xlu0 %1605
      %1609 = vset.pattern.permute.xlu0 0
      %1610 = vperm.xlu0 %1609, %v964
      %v1611 = vpop.permute.xlu0 %1610
      %1614 = vset.pattern.permute.xlu0 0
      %1615 = vperm.xlu0 %1614, %v965
      %v1616 = vpop.permute.xlu0 %1615
      %1619 = vset.pattern.permute.xlu0 0
      %1620 = vperm.xlu0 %1619, %v966
      %v1621 = vpop.permute.xlu0 %1620
      %1624 = vset.pattern.permute.xlu0 0
      %1625 = vperm.xlu0 %1624, %v967
      %v1626 = vpop.permute.xlu0 %1625
      %1629 = vset.pattern.permute.xlu0 0
      %1630 = vperm.xlu0 %1629, %v968
      %v1631 = vpop.permute.xlu0 %1630
      %1634 = vset.pattern.permute.xlu0 0
      %1635 = vperm.xlu0 %1634, %v969
      %v1636 = vpop.permute.xlu0 %1635
      %1639 = vset.pattern.permute.xlu0 0
      %1640 = vperm.xlu0 %1639, %v970
      %v1641 = vpop.permute.xlu0 %1640
      %1644 = vset.pattern.permute.xlu0 0
      %1645 = vperm.xlu0 %1644, %v971
      %v1646 = vpop.permute.xlu0 %1645
      %1649 = vset.pattern.permute.xlu0 0
      %1650 = vperm.xlu0 %1649, %v972
      %v1651 = vpop.permute.xlu0 %1650
      %1654 = vset.pattern.permute.xlu0 0
      %1655 = vperm.xlu0 %1654, %v973
      %v1656 = vpop.permute.xlu0 %1655
      %1659 = vset.pattern.permute.xlu0 0
      %1660 = vperm.xlu0 %1659, %v974
      %v1661 = vpop.permute.xlu0 %1660
      %1664 = vset.pattern.permute.xlu0 0
      %1665 = vperm.xlu0 %1664, %v975
      %v1666 = vpop.permute.xlu0 %1665
      %1669 = vset.pattern.permute.xlu0 0
      %1670 = vperm.xlu0 %1669, %v976
      %v1671 = vpop.permute.xlu0 %1670
      %1674 = vset.pattern.permute.xlu0 0
      %1675 = vperm.xlu0 %1674, %v977
      %v1676 = vpop.permute.xlu0 %1675
      %1679 = vset.pattern.permute.xlu0 0
      %1680 = vperm.xlu0 %1679, %v978
      %v1681 = vpop.permute.xlu0 %1680
      %1684 = vset.pattern.permute.xlu0 0
      %1685 = vperm.xlu0 %1684, %v979
      %v1686 = vpop.permute.xlu0 %1685
      %1689 = vset.pattern.permute.xlu0 0
      %1690 = vperm.xlu0 %1689, %v980
      %v1691 = vpop.permute.xlu0 %1690
      %1694 = vset.pattern.permute.xlu0 0
      %1695 = vperm.xlu0 %1694, %v981
      %v1696 = vpop.permute.xlu0 %1695
      %1699 = vset.pattern.permute.xlu0 0
      %1700 = vperm.xlu0 %1699, %v982
      %v1701 = vpop.permute.xlu0 %1700
      %1704 = vset.pattern.permute.xlu0 0
      %1705 = vperm.xlu0 %1704, %v983
      %v1706 = vpop.permute.xlu0 %1705
      %1709 = vset.pattern.permute.xlu0 0
      %1710 = vperm.xlu0 %1709, %v984
      %v1711 = vpop.permute.xlu0 %1710
      %1714 = vset.pattern.permute.xlu0 0
      %1715 = vperm.xlu0 %1714, %v985
      %v1716 = vpop.permute.xlu0 %1715
      %1719 = vset.pattern.permute.xlu0 0
      %1720 = vperm.xlu0 %1719, %v986
      %v1721 = vpop.permute.xlu0 %1720
      %1724 = vset.pattern.permute.xlu0 0
      %1725 = vperm.xlu0 %1724, %v987
      %v1726 = vpop.permute.xlu0 %1725
      %1729 = vset.pattern.permute.xlu0 0
      %1730 = vperm.xlu0 %1729, %v988
      %v1731 = vpop.permute.xlu0 %1730
      %1734 = vset.pattern.permute.xlu0 0
      %1735 = vperm.xlu0 %1734, %v989
      %v1736 = vpop.permute.xlu0 %1735
      %1739 = vset.pattern.permute.xlu0 0
      %1740 = vperm.xlu0 %1739, %v990
      %v1741 = vpop.permute.xlu0 %1740
      %1744 = vset.pattern.permute.xlu0 0
      %1745 = vperm.xlu0 %1744, %v991
      %v1746 = vpop.permute.xlu0 %1745
      %1749 = vset.pattern.permute.xlu0 0
      %1750 = vperm.xlu0 %1749, %v992
      %v1751 = vpop.permute.xlu0 %1750
      %1754 = vset.pattern.permute.xlu0 0
      %1755 = vperm.xlu0 %1754, %v993
      %v1756 = vpop.permute.xlu0 %1755
      %1759 = vset.pattern.permute.xlu0 0
      %1760 = vperm.xlu0 %1759, %v994
      %v1761 = vpop.permute.xlu0 %1760
      %1764 = vset.pattern.permute.xlu0 0
      %1765 = vperm.xlu0 %1764, %v995
      %v1766 = vpop.permute.xlu0 %1765
      %1769 = vset.pattern.permute.xlu0 0
      %1770 = vperm.xlu0 %1769, %v996
      %v1771 = vpop.permute.xlu0 %1770
      %1774 = vset.pattern.permute.xlu0 0
      %1775 = vperm.xlu0 %1774, %v997
      %v1776 = vpop.permute.xlu0 %1775
      %1779 = vset.pattern.permute.xlu0 0
      %1780 = vperm.xlu0 %1779, %v998
      %v1781 = vpop.permute.xlu0 %1780
      %1784 = vset.pattern.permute.xlu0 0
      %1785 = vperm.xlu0 %1784, %v999
      %v1786 = vpop.permute.xlu0 %1785
      %1789 = vset.pattern.permute.xlu0 0
      %1790 = vperm.xlu0 %1789, %v1000
      %v1791 = vpop.permute.xlu0 %1790
      %1794 = vset.pattern.permute.xlu0 0
      %1795 = vperm.xlu0 %1794, %v1001
      %v1796 = vpop.permute.xlu0 %1795
      %1799 = vset.pattern.permute.xlu0 0
      %1800 = vperm.xlu0 %1799, %v1002
      %v1801 = vpop.permute.xlu0 %1800
      %1804 = vset.pattern.permute.xlu0 0
      %1805 = vperm.xlu0 %1804, %v1003
      %v1806 = vpop.permute.xlu0 %1805
      %1809 = vset.pattern.permute.xlu0 0
      %1810 = vperm.xlu0 %1809, %v1004
      %v1811 = vpop.permute.xlu0 %1810
      %1814 = vset.pattern.permute.xlu0 0
      %1815 = vperm.xlu0 %1814, %v1005
      %v1816 = vpop.permute.xlu0 %1815
      %1819 = vset.pattern.permute.xlu0 0
      %1820 = vperm.xlu0 %1819, %v1006
      %v1821 = vpop.permute.xlu0 %1820
      %1824 = vset.pattern.permute.xlu0 0
      %1825 = vperm.xlu0 %1824, %v1007
      %v1826 = vpop.permute.xlu0 %1825
      %1829 = vset.pattern.permute.xlu0 0
      %1830 = vperm.xlu0 %1829, %v1008
      %v1831 = vpop.permute.xlu0 %1830
      %1834 = vset.pattern.permute.xlu0 0
      %1835 = vperm.xlu0 %1834, %v1009
      %v1836 = vpop.permute.xlu0 %1835
      %1839 = vset.pattern.permute.xlu0 0
      %1840 = vperm.xlu0 %1839, %v1010
      %v1841 = vpop.permute.xlu0 %1840
      %1844 = vset.pattern.permute.xlu0 0
      %1845 = vperm.xlu0 %1844, %v1011
      %v1846 = vpop.permute.xlu0 %1845
      %1849 = vset.pattern.permute.xlu0 0
      %1850 = vperm.xlu0 %1849, %v1012
      %v1851 = vpop.permute.xlu0 %1850
      %1854 = vset.pattern.permute.xlu0 0
      %1855 = vperm.xlu0 %1854, %v1013
      %v1856 = vpop.permute.xlu0 %1855
      %1859 = vset.pattern.permute.xlu0 0
      %1860 = vperm.xlu0 %1859, %v1014
      %v1861 = vpop.permute.xlu0 %1860
      %1864 = vset.pattern.permute.xlu0 0
      %1865 = vperm.xlu0 %1864, %v1015
      %v1866 = vpop.permute.xlu0 %1865
      %1869 = vset.pattern.permute.xlu0 0
      %1870 = vperm.xlu0 %1869, %v1016
      %v1871 = vpop.permute.xlu0 %1870
      %1874 = vset.pattern.permute.xlu0 0
      %1875 = vperm.xlu0 %1874, %v1017
      %v1876 = vpop.permute.xlu0 %1875
      %1879 = vset.pattern.permute.xlu0 0
      %1880 = vperm.xlu0 %1879, %v1018
      %v1881 = vpop.permute.xlu0 %1880
      %1884 = vset.pattern.permute.xlu0 0
      %1885 = vperm.xlu0 %1884, %v1019
      %v1886 = vpop.permute.xlu0 %1885
      %1889 = vset.pattern.permute.xlu0 0
      %1890 = vperm.xlu0 %1889, %v1020
      %v1891 = vpop.permute.xlu0 %1890
      %1894 = vset.pattern.permute.xlu0 0
      %1895 = vperm.xlu0 %1894, %v1021
      %v1896 = vpop.permute.xlu0 %1895
      %1899 = vset.pattern.permute.xlu0 0
      %1900 = vperm.xlu0 %1899, %v1022
      %v1901 = vpop.permute.xlu0 %1900
      %1904 = vset.pattern.permute.xlu0 0
      %1905 = vperm.xlu0 %1904, %v1023
      %v1906 = vpop.permute.xlu0 %1905
      %1909 = vset.pattern.permute.xlu0 0
      %1910 = vperm.xlu0 %1909, %v1024
      %v1911 = vpop.permute.xlu0 %1910
      %1914 = vset.pattern.permute.xlu0 0
      %1915 = vperm.xlu0 %1914, %v1025
      %v1916 = vpop.permute.xlu0 %1915
      %1919 = vset.pattern.permute.xlu0 0
      %1920 = vperm.xlu0 %1919, %v1026
      %v1921 = vpop.permute.xlu0 %1920
      %1924 = vset.pattern.permute.xlu0 0
      %1925 = vperm.xlu0 %1924, %v1027
      %v1926 = vpop.permute.xlu0 %1925
      %1929 = vset.pattern.permute.xlu0 0
      %1930 = vperm.xlu0 %1929, %v1028
      %v1931 = vpop.permute.xlu0 %1930
      %1934 = vset.pattern.permute.xlu0 0
      %1935 = vperm.xlu0 %1934, %v1029
      %v1936 = vpop.permute.xlu0 %1935
      %1939 = vset.pattern.permute.xlu0 0
      %1940 = vperm.xlu0 %1939, %v1030
      %v1941 = vpop.permute.xlu0 %1940
      %1944 = vset.pattern.permute.xlu0 0
      %1945 = vperm.xlu0 %1944, %v1031
      %v1946 = vpop.permute.xlu0 %1945
      %1949 = vset.pattern.permute.xlu0 0
      %1950 = vperm.xlu0 %1949, %v1032
      %v1951 = vpop.permute.xlu0 %1950
      %1954 = vset.pattern.permute.xlu0 0
      %1955 = vperm.xlu0 %1954, %v1033
      %v1956 = vpop.permute.xlu0 %1955
      %1959 = vset.pattern.permute.xlu0 0
      %1960 = vperm.xlu0 %1959, %v1034
      %v1961 = vpop.permute.xlu0 %1960
      %1964 = vset.pattern.permute.xlu0 0
      %1965 = vperm.xlu0 %1964, %v1035
      %v1966 = vpop.permute.xlu0 %1965
      %1969 = vset.pattern.permute.xlu0 0
      %1970 = vperm.xlu0 %1969, %v1036
      %v1971 = vpop.permute.xlu0 %1970
      %1974 = vset.pattern.permute.xlu0 0
      %1975 = vperm.xlu0 %1974, %v1037
      %v1976 = vpop.permute.xlu0 %1975
      %1979 = vset.pattern.permute.xlu0 0
      %1980 = vperm.xlu0 %1979, %v1038
      %v1981 = vpop.permute.xlu0 %1980
      %1984 = vset.pattern.permute.xlu0 0
      %1985 = vperm.xlu0 %1984, %v1039
      %v1986 = vpop.permute.xlu0 %1985
      %1989 = vset.pattern.permute.xlu0 0
      %1990 = vperm.xlu0 %1989, %v1040
      %v1991 = vpop.permute.xlu0 %1990
      %1994 = vset.pattern.permute.xlu0 0
      %1995 = vperm.xlu0 %1994, %v1041
      %v1996 = vpop.permute.xlu0 %1995
      %1999 = vset.pattern.permute.xlu0 0
      %2000 = vperm.xlu0 %1999, %v1042
      %v2001 = vpop.permute.xlu0 %2000
      %2004 = vset.pattern.permute.xlu0 0
      %2005 = vperm.xlu0 %2004, %v1043
      %v2006 = vpop.permute.xlu0 %2005
      %2009 = vset.pattern.permute.xlu0 0
      %2010 = vperm.xlu0 %2009, %v1044
      %v2011 = vpop.permute.xlu0 %2010
      %2014 = vset.pattern.permute.xlu0 0
      %2015 = vperm.xlu0 %2014, %v1045
      %v2016 = vpop.permute.xlu0 %2015
      %2019 = vset.pattern.permute.xlu0 0
      %2020 = vperm.xlu0 %2019, %v1046
      %v2021 = vpop.permute.xlu0 %2020
      %2024 = vset.pattern.permute.xlu0 0
      %2025 = vperm.xlu0 %2024, %v1047
      %v2026 = vpop.permute.xlu0 %2025
      %2029 = vset.pattern.permute.xlu0 0
      %2030 = vperm.xlu0 %2029, %v1048
      %v2031 = vpop.permute.xlu0 %2030
      %2034 = vset.pattern.permute.xlu0 0
      %2035 = vperm.xlu0 %2034, %v1049
      %v2036 = vpop.permute.xlu0 %2035
      %2039 = vset.pattern.permute.xlu0 0
      %2040 = vperm.xlu0 %2039, %v1050
      %v2041 = vpop.permute.xlu0 %2040
      %2044 = vset.pattern.permute.xlu0 0
      %2045 = vperm.xlu0 %2044, %v1051
      %v2046 = vpop.permute.xlu0 %2045
      %2049 = vset.pattern.permute.xlu0 0
      %2050 = vperm.xlu0 %2049, %v1052
      %v2051 = vpop.permute.xlu0 %2050
      %2054 = vset.pattern.permute.xlu0 0
      %2055 = vperm.xlu0 %2054, %v1053
      %v2056 = vpop.permute.xlu0 %2055
      %2059 = vset.pattern.permute.xlu0 0
      %2060 = vperm.xlu0 %2059, %v1054
      %v2061 = vpop.permute.xlu0 %2060
      %2064 = vset.pattern.permute.xlu0 0
      %2065 = vperm.xlu0 %2064, %v1055
      %v2066 = vpop.permute.xlu0 %2065
      %2069 = vset.pattern.permute.xlu0 0
      %2070 = vperm.xlu0 %2069, %v1056
      %v2071 = vpop.permute.xlu0 %2070
      %2074 = vset.pattern.permute.xlu0 0
      %2075 = vperm.xlu0 %2074, %v1057
      %v2076 = vpop.permute.xlu0 %2075
      %2079 = vset.pattern.permute.xlu0 0
      %2080 = vperm.xlu0 %2079, %v1058
      %v2081 = vpop.permute.xlu0 %2080
      %2084 = vset.pattern.permute.xlu0 0
      %2085 = vperm.xlu0 %2084, %v1059
      %v2086 = vpop.permute.xlu0 %2085
      %2089 = vset.pattern.permute.xlu0 0
      %2090 = vperm.xlu0 %2089, %v1060
      %v2091 = vpop.permute.xlu0 %2090
      %2094 = vset.pattern.permute.xlu0 0
      %2095 = vperm.xlu0 %2094, %v1061
      %v2096 = vpop.permute.xlu0 %2095
      %2099 = vset.pattern.permute.xlu0 0
      %2100 = vperm.xlu0 %2099, %v1062
      %v2101 = vpop.permute.xlu0 %2100
      %2104 = vset.pattern.permute.xlu0 0
      %2105 = vperm.xlu0 %2104, %v1063
      %v2106 = vpop.permute.xlu0 %2105
      %2109 = vset.pattern.permute.xlu0 0
      %2110 = vperm.xlu0 %2109, %v1064
      %v2111 = vpop.permute.xlu0 %2110
      %2114 = vset.pattern.permute.xlu0 0
      %2115 = vperm.xlu0 %2114, %v1065
      %v2116 = vpop.permute.xlu0 %2115
      %2119 = vset.pattern.permute.xlu0 0
      %2120 = vperm.xlu0 %2119, %v1066
      %v2121 = vpop.permute.xlu0 %2120
      %2124 = vset.pattern.permute.xlu0 0
      %2125 = vperm.xlu0 %2124, %v1067
      %v2126 = vpop.permute.xlu0 %2125
      %2129 = vset.pattern.permute.xlu0 0
      %2130 = vperm.xlu0 %2129, %v1068
      %v2131 = vpop.permute.xlu0 %2130
      %2134 = vset.pattern.permute.xlu0 0
      %2135 = vperm.xlu0 %2134, %v1069
      %v2136 = vpop.permute.xlu0 %2135
      %2139 = vset.pattern.permute.xlu0 0
      %2140 = vperm.xlu0 %2139, %v1070
      %v2141 = vpop.permute.xlu0 %2140
      %2144 = vset.pattern.permute.xlu0 0
      %2145 = vperm.xlu0 %2144, %v1071
      %v2146 = vpop.permute.xlu0 %2145
      %2149 = vset.pattern.permute.xlu0 0
      %2150 = vperm.xlu0 %2149, %v1072
      %v2151 = vpop.permute.xlu0 %2150
      %2154 = vset.pattern.permute.xlu0 0
      %2155 = vperm.xlu0 %2154, %v1073
      %v2156 = vpop.permute.xlu0 %2155
      %2159 = vset.pattern.permute.xlu0 0
      %2160 = vperm.xlu0 %2159, %v1074
      %v2161 = vpop.permute.xlu0 %2160
      %2164 = vset.pattern.permute.xlu0 0
      %2165 = vperm.xlu0 %2164, %v1075
      %v2166 = vpop.permute.xlu0 %2165
      %2169 = vset.pattern.permute.xlu0 0
      %2170 = vperm.xlu0 %2169, %v1076
      %v2171 = vpop.permute.xlu0 %2170
      %2174 = vset.pattern.permute.xlu0 0
      %2175 = vperm.xlu0 %2174, %v1077
      %v2176 = vpop.permute.xlu0 %2175
      %2179 = vset.pattern.permute.xlu0 0
      %2180 = vperm.xlu0 %2179, %v1078
      %v2181 = vpop.permute.xlu0 %2180
      %2184 = vset.pattern.permute.xlu0 0
      %2185 = vperm.xlu0 %2184, %v1079
      %v2186 = vpop.permute.xlu0 %2185
      %2189 = vset.pattern.permute.xlu0 0
      %2190 = vperm.xlu0 %2189, %v1080
      %v2191 = vpop.permute.xlu0 %2190
      %2194 = vset.pattern.permute.xlu0 0
      %2195 = vperm.xlu0 %2194, %v1081
      %v2196 = vpop.permute.xlu0 %2195
      %2199 = vset.pattern.permute.xlu0 0
      %2200 = vperm.xlu0 %2199, %v1082
      %v2201 = vpop.permute.xlu0 %2200
      %2204 = vset.pattern.permute.xlu0 0
      %2205 = vperm.xlu0 %2204, %v1083
      %v2206 = vpop.permute.xlu0 %2205
      %2209 = vset.pattern.permute.xlu0 0
      %2210 = vperm.xlu0 %2209, %v1084
      %v2211 = vpop.permute.xlu0 %2210
      %2214 = vset.pattern.permute.xlu0 0
      %2215 = vperm.xlu0 %2214, %v1085
      %v2216 = vpop.permute.xlu0 %2215
      %2219 = vset.pattern.permute.xlu0 0
      %2220 = vperm.xlu0 %2219, %v1086
      %v2221 = vpop.permute.xlu0 %2220
      %2224 = vset.pattern.permute.xlu0 0
      %2225 = vperm.xlu0 %2224, %v1087
      %v2226 = vpop.permute.xlu0 %2225
      %2229 = vset.pattern.permute.xlu0 0
      %2230 = vperm.xlu0 %2229, %v1088
      %v2231 = vpop.permute.xlu0 %2230
      %2234 = vset.pattern.permute.xlu0 0
      %2235 = vperm.xlu0 %2234, %v1089
      %v2236 = vpop.permute.xlu0 %2235
      %2239 = vset.pattern.permute.xlu0 0
      %2240 = vperm.xlu0 %2239, %v1090
      %v2241 = vpop.permute.xlu0 %2240
      %2244 = vset.pattern.permute.xlu0 0
      %2245 = vperm.xlu0 %2244, %v1091
      %v2246 = vpop.permute.xlu0 %2245
      %2249 = vset.pattern.permute.xlu0 0
      %2250 = vperm.xlu0 %2249, %v1092
      %v2251 = vpop.permute.xlu0 %2250
      %2254 = vset.pattern.permute.xlu0 0
      %2255 = vperm.xlu0 %2254, %v1093
      %v2256 = vpop.permute.xlu0 %2255
      %2259 = vset.pattern.permute.xlu0 0
      %2260 = vperm.xlu0 %2259, %v1094
      %v2261 = vpop.permute.xlu0 %2260
      %2264 = vset.pattern.permute.xlu0 0
      %2265 = vperm.xlu0 %2264, %v1095
      %v2266 = vpop.permute.xlu0 %2265
      %2269 = vset.pattern.permute.xlu0 0
      %2270 = vperm.xlu0 %2269, %v1096
      %v2271 = vpop.permute.xlu0 %2270
      %2274 = vset.pattern.permute.xlu0 0
      %2275 = vperm.xlu0 %2274, %v1097
      %v2276 = vpop.permute.xlu0 %2275
      %2279 = vset.pattern.permute.xlu0 0
      %2280 = vperm.xlu0 %2279, %v1098
      %v2281 = vpop.permute.xlu0 %2280
      %2284 = vset.pattern.permute.xlu0 0
      %2285 = vperm.xlu0 %2284, %v1099
      %v2286 = vpop.permute.xlu0 %2285
      %2289 = vset.pattern.permute.xlu0 0
      %2290 = vperm.xlu0 %2289, %v1100
      %v2291 = vpop.permute.xlu0 %2290
      %2294 = vset.pattern.permute.xlu0 0
      %2295 = vperm.xlu0 %2294, %v1101
      %v2296 = vpop.permute.xlu0 %2295
      %2299 = vset.pattern.permute.xlu0 0
      %2300 = vperm.xlu0 %2299, %v1102
      %v2301 = vpop.permute.xlu0 %2300
      %2304 = vset.pattern.permute.xlu0 0
      %2305 = vperm.xlu0 %2304, %v1103
      %v2306 = vpop.permute.xlu0 %2305
      %2309 = vset.pattern.permute.xlu0 0
      %2310 = vperm.xlu0 %2309, %v1104
      %v2311 = vpop.permute.xlu0 %2310
      %2314 = vset.pattern.permute.xlu0 0
      %2315 = vperm.xlu0 %2314, %v1105
      %v2316 = vpop.permute.xlu0 %2315
      %2319 = vset.pattern.permute.xlu0 0
      %2320 = vperm.xlu0 %2319, %v1106
      %v2321 = vpop.permute.xlu0 %2320
      %2324 = vset.pattern.permute.xlu0 0
      %2325 = vperm.xlu0 %2324, %v1107
      %v2326 = vpop.permute.xlu0 %2325
      %2329 = vset.pattern.permute.xlu0 0
      %2330 = vperm.xlu0 %2329, %v1108
      %v2331 = vpop.permute.xlu0 %2330
      %2334 = vset.pattern.permute.xlu0 0
      %2335 = vperm.xlu0 %2334, %v1109
      %v2336 = vpop.permute.xlu0 %2335
      %2339 = vset.pattern.permute.xlu0 0
      %2340 = vperm.xlu0 %2339, %v1110
      %v2341 = vpop.permute.xlu0 %2340
      %2344 = vset.pattern.permute.xlu0 0
      %2345 = vperm.xlu0 %2344, %v1111
      %v2346 = vpop.permute.xlu0 %2345
      %2349 = vset.pattern.permute.xlu0 0
      %2350 = vperm.xlu0 %2349, %v1112
      %v2351 = vpop.permute.xlu0 %2350
      %2354 = vset.pattern.permute.xlu0 0
      %2355 = vperm.xlu0 %2354, %v1113
      %v2356 = vpop.permute.xlu0 %2355
      %2359 = vset.pattern.permute.xlu0 0
      %2360 = vperm.xlu0 %2359, %v1114
      %v2361 = vpop.permute.xlu0 %2360
      %2364 = vset.pattern.permute.xlu0 0
      %2365 = vperm.xlu0 %2364, %v1115
      %v2366 = vpop.permute.xlu0 %2365
      %2369 = vset.pattern.permute.xlu0 0
      %2370 = vperm.xlu0 %2369, %v1116
      %v2371 = vpop.permute.xlu0 %2370
      %2374 = vset.pattern.permute.xlu0 0
      %2375 = vperm.xlu0 %2374, %v1117
      %v2376 = vpop.permute.xlu0 %2375
      %2379 = vset.pattern.permute.xlu0 0
      %2380 = vperm.xlu0 %2379, %v1118
      %v2381 = vpop.permute.xlu0 %2380
      %2384 = vset.pattern.permute.xlu0 0
      %2385 = vperm.xlu0 %2384, %v1119
      %v2386 = vpop.permute.xlu0 %2385
      %2389 = vset.pattern.permute.xlu0 0
      %2390 = vperm.xlu0 %2389, %v1120
      %v2391 = vpop.permute.xlu0 %2390
      %2394 = vset.pattern.permute.xlu0 0
      %2395 = vperm.xlu0 %2394, %v1121
      %v2396 = vpop.permute.xlu0 %2395
      %2399 = vset.pattern.permute.xlu0 0
      %2400 = vperm.xlu0 %2399, %v1122
      %v2401 = vpop.permute.xlu0 %2400
      %vm2403 = vcmask 523264
      %v2405 = vsel %vm2403, %v611, 0
      %v2408 = vsel %vm2403, %v612, 0
      %v2411 = vsel %vm2403, %v613, 0
      %v2414 = vsel %vm2403, %v614, 0
      %v2417 = vsel %vm2403, %v615, 0
      %v2420 = vsel %vm2403, %v616, 0
      %v2423 = vsel %vm2403, %v617, 0
      %v2426 = vsel %vm2403, %v618, 0
      %v2429 = vsel %vm2403, %v619, 0
      %v2432 = vsel %vm2403, %v620, 0
      %v2435 = vsel %vm2403, %v621, 0
      %v2438 = vsel %vm2403, %v622, 0
      %v2441 = vsel %vm2403, %v623, 0
      %v2444 = vsel %vm2403, %v624, 0
      %v2447 = vsel %vm2403, %v625, 0
      %v2450 = vsel %vm2403, %v626, 0
      %v2453 = vsel %vm2403, %v627, 0
      %v2456 = vsel %vm2403, %v628, 0
      %v2459 = vsel %vm2403, %v629, 0
      %v2462 = vsel %vm2403, %v630, 0
      %v2465 = vsel %vm2403, %v631, 0
      %v2468 = vsel %vm2403, %v632, 0
      %v2471 = vsel %vm2403, %v633, 0
      %v2474 = vsel %vm2403, %v634, 0
      %v2477 = vsel %vm2403, %v635, 0
      %v2480 = vsel %vm2403, %v636, 0
      %v2483 = vsel %vm2403, %v637, 0
      %v2486 = vsel %vm2403, %v638, 0
      %v2489 = vsel %vm2403, %v639, 0
      %v2492 = vsel %vm2403, %v640, 0
      %v2495 = vsel %vm2403, %v641, 0
      %v2498 = vsel %vm2403, %v642, 0
      %v2501 = vsel %vm2403, %v643, 0
      %v2504 = vsel %vm2403, %v644, 0
      %v2507 = vsel %vm2403, %v645, 0
      %v2510 = vsel %vm2403, %v646, 0
      %v2513 = vsel %vm2403, %v647, 0
      %v2516 = vsel %vm2403, %v648, 0
      %v2519 = vsel %vm2403, %v649, 0
      %v2522 = vsel %vm2403, %v650, 0
      %v2525 = vsel %vm2403, %v651, 0
      %v2528 = vsel %vm2403, %v652, 0
      %v2531 = vsel %vm2403, %v653, 0
      %v2534 = vsel %vm2403, %v654, 0
      %v2537 = vsel %vm2403, %v655, 0
      %v2540 = vsel %vm2403, %v656, 0
      %v2543 = vsel %vm2403, %v657, 0
      %v2546 = vsel %vm2403, %v658, 0
      %v2549 = vsel %vm2403, %v659, 0
      %v2552 = vsel %vm2403, %v660, 0
      %v2555 = vsel %vm2403, %v661, 0
      %v2558 = vsel %vm2403, %v662, 0
      %v2561 = vsel %vm2403, %v663, 0
      %v2564 = vsel %vm2403, %v664, 0
      %v2567 = vsel %vm2403, %v665, 0
      %v2570 = vsel %vm2403, %v666, 0
      %v2573 = vsel %vm2403, %v667, 0
      %v2576 = vsel %vm2403, %v668, 0
      %v2579 = vsel %vm2403, %v669, 0
      %v2582 = vsel %vm2403, %v670, 0
      %v2585 = vsel %vm2403, %v671, 0
      %v2588 = vsel %vm2403, %v672, 0
      %v2591 = vsel %vm2403, %v673, 0
      %v2594 = vsel %vm2403, %v674, 0
      %v2597 = vsel %vm2403, %v675, 0
      %v2600 = vsel %vm2403, %v676, 0
      %v2603 = vsel %vm2403, %v677, 0
      %v2606 = vsel %vm2403, %v678, 0
      %v2609 = vsel %vm2403, %v679, 0
      %v2612 = vsel %vm2403, %v680, 0
      %v2615 = vsel %vm2403, %v681, 0
      %v2618 = vsel %vm2403, %v682, 0
      %v2621 = vsel %vm2403, %v683, 0
      %v2624 = vsel %vm2403, %v684, 0
      %v2627 = vsel %vm2403, %v685, 0
      %v2630 = vsel %vm2403, %v686, 0
      %v2633 = vsel %vm2403, %v687, 0
      %v2636 = vsel %vm2403, %v688, 0
      %v2639 = vsel %vm2403, %v689, 0
      %v2642 = vsel %vm2403, %v690, 0
      %v2645 = vsel %vm2403, %v691, 0
      %v2648 = vsel %vm2403, %v692, 0
      %v2651 = vsel %vm2403, %v693, 0
      %v2654 = vsel %vm2403, %v694, 0
      %v2657 = vsel %vm2403, %v695, 0
      %v2660 = vsel %vm2403, %v696, 0
      %v2663 = vsel %vm2403, %v697, 0
      %v2666 = vsel %vm2403, %v698, 0
      %v2669 = vsel %vm2403, %v699, 0
      %v2672 = vsel %vm2403, %v700, 0
      %v2675 = vsel %vm2403, %v701, 0
      %v2678 = vsel %vm2403, %v702, 0
      %v2681 = vsel %vm2403, %v703, 0
      %v2684 = vsel %vm2403, %v704, 0
      %v2687 = vsel %vm2403, %v705, 0
      %v2690 = vsel %vm2403, %v706, 0
      %v2693 = vsel %vm2403, %v707, 0
      %v2696 = vsel %vm2403, %v708, 0
      %v2699 = vsel %vm2403, %v709, 0
      %v2702 = vsel %vm2403, %v710, 0
      %v2705 = vsel %vm2403, %v711, 0
      %v2708 = vsel %vm2403, %v712, 0
      %v2711 = vsel %vm2403, %v713, 0
      %v2714 = vsel %vm2403, %v714, 0
      %v2717 = vsel %vm2403, %v715, 0
      %v2720 = vsel %vm2403, %v716, 0
      %v2723 = vsel %vm2403, %v717, 0
      %v2726 = vsel %vm2403, %v718, 0
      %v2729 = vsel %vm2403, %v719, 0
      %v2732 = vsel %vm2403, %v720, 0
      %v2735 = vsel %vm2403, %v721, 0
      %v2738 = vsel %vm2403, %v722, 0
      %v2741 = vsel %vm2403, %v723, 0
      %v2744 = vsel %vm2403, %v724, 0
      %v2747 = vsel %vm2403, %v725, 0
      %v2750 = vsel %vm2403, %v726, 0
      %v2753 = vsel %vm2403, %v727, 0
      %v2756 = vsel %vm2403, %v728, 0
      %v2759 = vsel %vm2403, %v729, 0
      %v2762 = vsel %vm2403, %v730, 0
      %v2765 = vsel %vm2403, %v731, 0
      %v2768 = vsel %vm2403, %v732, 0
      %v2771 = vsel %vm2403, %v733, 0
      %v2774 = vsel %vm2403, %v734, 0
      %v2777 = vsel %vm2403, %v735, 0
      %v2780 = vsel %vm2403, %v736, 0
      %v2783 = vsel %vm2403, %v737, 0
      %v2786 = vsel %vm2403, %v738, 0
      %v2789 = vsel %vm2403, %v739, 0
      %v2792 = vsel %vm2403, %v740, 0
      %v2795 = vsel %vm2403, %v741, 0
      %v2798 = vsel %vm2403, %v742, 0
      %v2801 = vsel %vm2403, %v743, 0
      %v2804 = vsel %vm2403, %v744, 0
      %v2807 = vsel %vm2403, %v745, 0
      %v2810 = vsel %vm2403, %v746, 0
      %v2813 = vsel %vm2403, %v747, 0
      %v2816 = vsel %vm2403, %v748, 0
      %v2819 = vsel %vm2403, %v749, 0
      %v2822 = vsel %vm2403, %v750, 0
      %v2825 = vsel %vm2403, %v751, 0
      %v2828 = vsel %vm2403, %v752, 0
      %v2831 = vsel %vm2403, %v753, 0
      %v2834 = vsel %vm2403, %v754, 0
      %v2837 = vsel %vm2403, %v755, 0
      %v2840 = vsel %vm2403, %v756, 0
      %v2843 = vsel %vm2403, %v757, 0
      %v2846 = vsel %vm2403, %v758, 0
      %v2849 = vsel %vm2403, %v759, 0
      %v2852 = vsel %vm2403, %v760, 0
      %v2855 = vsel %vm2403, %v761, 0
      %v2858 = vsel %vm2403, %v762, 0
      %v2861 = vsel %vm2403, %v763, 0
      %v2864 = vsel %vm2403, %v764, 0
      %v2867 = vsel %vm2403, %v765, 0
      %v2870 = vsel %vm2403, %v766, 0
      %v2873 = vsel %vm2403, %v767, 0
      %v2876 = vsel %vm2403, %v768, 0
      %v2879 = vsel %vm2403, %v769, 0
      %v2882 = vsel %vm2403, %v770, 0
      %v2885 = vsel %vm2403, %v771, 0
      %v2888 = vsel %vm2403, %v772, 0
      %v2891 = vsel %vm2403, %v773, 0
      %v2894 = vsel %vm2403, %v774, 0
      %v2897 = vsel %vm2403, %v775, 0
      %v2900 = vsel %vm2403, %v776, 0
      %v2903 = vsel %vm2403, %v777, 0
      %v2906 = vsel %vm2403, %v778, 0
      %v2909 = vsel %vm2403, %v779, 0
      %v2912 = vsel %vm2403, %v780, 0
      %v2915 = vsel %vm2403, %v781, 0
      %v2918 = vsel %vm2403, %v782, 0
      %v2921 = vsel %vm2403, %v783, 0
      %v2924 = vsel %vm2403, %v784, 0
      %v2927 = vsel %vm2403, %v785, 0
      %v2930 = vsel %vm2403, %v786, 0
      %v2933 = vsel %vm2403, %v787, 0
      %v2936 = vsel %vm2403, %v788, 0
      %v2939 = vsel %vm2403, %v789, 0
      %v2942 = vsel %vm2403, %v790, 0
      %v2945 = vsel %vm2403, %v791, 0
      %v2948 = vsel %vm2403, %v792, 0
      %v2951 = vsel %vm2403, %v793, 0
      %v2954 = vsel %vm2403, %v794, 0
      %v2957 = vsel %vm2403, %v795, 0
      %v2960 = vsel %vm2403, %v796, 0
      %v2963 = vsel %vm2403, %v797, 0
      %v2966 = vsel %vm2403, %v798, 0
      %v2969 = vsel %vm2403, %v799, 0
      %v2972 = vsel %vm2403, %v800, 0
      %v2975 = vsel %vm2403, %v801, 0
      %v2978 = vsel %vm2403, %v802, 0
      %v2981 = vsel %vm2403, %v803, 0
      %v2984 = vsel %vm2403, %v804, 0
      %v2987 = vsel %vm2403, %v805, 0
      %v2990 = vsel %vm2403, %v806, 0
      %v2993 = vsel %vm2403, %v807, 0
      %v2996 = vsel %vm2403, %v808, 0
      %v2999 = vsel %vm2403, %v809, 0
      %v3002 = vsel %vm2403, %v810, 0
      %v3005 = vsel %vm2403, %v811, 0
      %v3008 = vsel %vm2403, %v812, 0
      %v3011 = vsel %vm2403, %v813, 0
      %v3014 = vsel %vm2403, %v814, 0
      %v3017 = vsel %vm2403, %v815, 0
      %v3020 = vsel %vm2403, %v816, 0
      %v3023 = vsel %vm2403, %v817, 0
      %v3026 = vsel %vm2403, %v818, 0
      %v3029 = vsel %vm2403, %v819, 0
      %v3032 = vsel %vm2403, %v820, 0
      %v3035 = vsel %vm2403, %v821, 0
      %v3038 = vsel %vm2403, %v822, 0
      %v3041 = vsel %vm2403, %v823, 0
      %v3044 = vsel %vm2403, %v824, 0
      %v3047 = vsel %vm2403, %v825, 0
      %v3050 = vsel %vm2403, %v826, 0
      %v3053 = vsel %vm2403, %v827, 0
      %v3056 = vsel %vm2403, %v828, 0
      %v3059 = vsel %vm2403, %v829, 0
      %v3062 = vsel %vm2403, %v830, 0
      %v3065 = vsel %vm2403, %v831, 0
      %v3068 = vsel %vm2403, %v832, 0
      %v3071 = vsel %vm2403, %v833, 0
      %v3074 = vsel %vm2403, %v834, 0
      %v3077 = vsel %vm2403, %v835, 0
      %v3080 = vsel %vm2403, %v836, 0
      %v3083 = vsel %vm2403, %v837, 0
      %v3086 = vsel %vm2403, %v838, 0
      %v3089 = vsel %vm2403, %v839, 0
      %v3092 = vsel %vm2403, %v840, 0
      %v3095 = vsel %vm2403, %v841, 0
      %v3098 = vsel %vm2403, %v842, 0
      %v3101 = vsel %vm2403, %v843, 0
      %v3104 = vsel %vm2403, %v844, 0
      %v3107 = vsel %vm2403, %v845, 0
      %v3110 = vsel %vm2403, %v846, 0
      %v3113 = vsel %vm2403, %v847, 0
      %v3116 = vsel %vm2403, %v848, 0
      %v3119 = vsel %vm2403, %v849, 0
      %v3122 = vsel %vm2403, %v850, 0
      %v3125 = vsel %vm2403, %v851, 0
      %v3128 = vsel %vm2403, %v852, 0
      %v3131 = vsel %vm2403, %v853, 0
      %v3134 = vsel %vm2403, %v854, 0
      %v3137 = vsel %vm2403, %v855, 0
      %v3140 = vsel %vm2403, %v856, 0
      %v3143 = vsel %vm2403, %v857, 0
      %v3146 = vsel %vm2403, %v858, 0
      %v3149 = vsel %vm2403, %v859, 0
      %v3152 = vsel %vm2403, %v860, 0
      %v3155 = vsel %vm2403, %v861, 0
      %v3158 = vsel %vm2403, %v862, 0
      %v3161 = vsel %vm2403, %v863, 0
      %v3164 = vsel %vm2403, %v864, 0
      %v3167 = vsel %vm2403, %v865, 0
      %v3170 = vsel %vm2403, %v866, 0
      %3172 = vmatpush.msra.mxu0 0.0
      %3173 = vmatpush.msra.mxu0 0.0
      %3174 = vmatpush.msra.mxu0 0.0
      %3175 = vmatpush.msra.mxu0 0.0
      %3176 = vmatpush.msra.mxu0 0.0
      %3177 = vmatpush.msra.mxu0 0.0
      %3178 = vmatpush.msra.mxu0 0.0
      %3179 = vmatpush.msra.mxu0 0.0
      %3180 = vmatpush.msra.mxu0 %v609
      %3181 = vmatpush.msra.mxu0 %v607
      %3182 = vmatpush.msra.mxu0 %v605
      %3183 = vmatpush.msra.mxu0 %v603
      %3184 = vmatpush.msra.mxu0 %v601
      %3185 = vmatpush.msra.mxu0 %v599
      %3186 = vmatpush.msra.mxu0 %v597
      %3187 = vmatpush.msra.mxu0 %v595
      %3188 = vmatmul.f32.gmra.mxu0 %v2405
      %v3189 = vpop.f32.mrf.mxu0
      %v3190 = vadd.f32 %v1126, %v3189
      %3191 = vmatmul.f32.gmra.mxu0 %v2408
      %v3192 = vpop.f32.mrf.mxu0
      %v3193 = vadd.f32 %v1131, %v3192
      %3194 = vmatmul.f32.gmra.mxu0 %v2411
      %v3195 = vpop.f32.mrf.mxu0
      %v3196 = vadd.f32 %v1136, %v3195
      %3197 = vmatmul.f32.gmra.mxu0 %v2414
      %v3198 = vpop.f32.mrf.mxu0
      %v3199 = vadd.f32 %v1141, %v3198
      %3200 = vmatmul.f32.gmra.mxu0 %v2417
      %v3201 = vpop.f32.mrf.mxu0
      %v3202 = vadd.f32 %v1146, %v3201
      %3203 = vmatmul.f32.gmra.mxu0 %v2420
      %v3204 = vpop.f32.mrf.mxu0
      %v3205 = vadd.f32 %v1151, %v3204
      %3206 = vmatmul.f32.gmra.mxu0 %v2423
      %v3207 = vpop.f32.mrf.mxu0
      %v3208 = vadd.f32 %v1156, %v3207
      %3209 = vmatmul.f32.gmra.mxu0 %v2426
      %v3210 = vpop.f32.mrf.mxu0
      %v3211 = vadd.f32 %v1161, %v3210
      %3212 = vmatmul.f32.gmra.mxu0 %v2429
      %v3213 = vpop.f32.mrf.mxu0
      %v3214 = vadd.f32 %v1166, %v3213
      %3215 = vmatmul.f32.gmra.mxu0 %v2432
      %v3216 = vpop.f32.mrf.mxu0
      %v3217 = vadd.f32 %v1171, %v3216
      %3218 = vmatmul.f32.gmra.mxu0 %v2435
      %v3219 = vpop.f32.mrf.mxu0
      %v3220 = vadd.f32 %v1176, %v3219
      %3221 = vmatmul.f32.gmra.mxu0 %v2438
      %v3222 = vpop.f32.mrf.mxu0
      %v3223 = vadd.f32 %v1181, %v3222
      %3224 = vmatmul.f32.gmra.mxu0 %v2441
      %v3225 = vpop.f32.mrf.mxu0
      %v3226 = vadd.f32 %v1186, %v3225
      %3227 = vmatmul.f32.gmra.mxu0 %v2444
      %v3228 = vpop.f32.mrf.mxu0
      %v3229 = vadd.f32 %v1191, %v3228
      %3230 = vmatmul.f32.gmra.mxu0 %v2447
      %v3231 = vpop.f32.mrf.mxu0
      %v3232 = vadd.f32 %v1196, %v3231
      %3233 = vmatmul.f32.gmra.mxu0 %v2450
      %v3234 = vpop.f32.mrf.mxu0
      %v3235 = vadd.f32 %v1201, %v3234
      %3236 = vmatmul.f32.gmra.mxu0 %v2453
      %v3237 = vpop.f32.mrf.mxu0
      %v3238 = vadd.f32 %v1206, %v3237
      %3239 = vmatmul.f32.gmra.mxu0 %v2456
      %v3240 = vpop.f32.mrf.mxu0
      %v3241 = vadd.f32 %v1211, %v3240
      %3242 = vmatmul.f32.gmra.mxu0 %v2459
      %v3243 = vpop.f32.mrf.mxu0
      %v3244 = vadd.f32 %v1216, %v3243
      %3245 = vmatmul.f32.gmra.mxu0 %v2462
      %v3246 = vpop.f32.mrf.mxu0
      %v3247 = vadd.f32 %v1221, %v3246
      %3248 = vmatmul.f32.gmra.mxu0 %v2465
      %v3249 = vpop.f32.mrf.mxu0
      %v3250 = vadd.f32 %v1226, %v3249
      %3251 = vmatmul.f32.gmra.mxu0 %v2468
      %v3252 = vpop.f32.mrf.mxu0
      %v3253 = vadd.f32 %v1231, %v3252
      %3254 = vmatmul.f32.gmra.mxu0 %v2471
      %v3255 = vpop.f32.mrf.mxu0
      %v3256 = vadd.f32 %v1236, %v3255
      %3257 = vmatmul.f32.gmra.mxu0 %v2474
      %v3258 = vpop.f32.mrf.mxu0
      %v3259 = vadd.f32 %v1241, %v3258
      %3260 = vmatmul.f32.gmra.mxu0 %v2477
      %v3261 = vpop.f32.mrf.mxu0
      %v3262 = vadd.f32 %v1246, %v3261
      %3263 = vmatmul.f32.gmra.mxu0 %v2480
      %v3264 = vpop.f32.mrf.mxu0
      %v3265 = vadd.f32 %v1251, %v3264
      %3266 = vmatmul.f32.gmra.mxu0 %v2483
      %v3267 = vpop.f32.mrf.mxu0
      %v3268 = vadd.f32 %v1256, %v3267
      %3269 = vmatmul.f32.gmra.mxu0 %v2486
      %v3270 = vpop.f32.mrf.mxu0
      %v3271 = vadd.f32 %v1261, %v3270
      %3272 = vmatmul.f32.gmra.mxu0 %v2489
      %v3273 = vpop.f32.mrf.mxu0
      %v3274 = vadd.f32 %v1266, %v3273
      %3275 = vmatmul.f32.gmra.mxu0 %v2492
      %v3276 = vpop.f32.mrf.mxu0
      %v3277 = vadd.f32 %v1271, %v3276
      %3278 = vmatmul.f32.gmra.mxu0 %v2495
      %v3279 = vpop.f32.mrf.mxu0
      %v3280 = vadd.f32 %v1276, %v3279
      %3281 = vmatmul.f32.gmra.mxu0 %v2498
      %v3282 = vpop.f32.mrf.mxu0
      %v3283 = vadd.f32 %v1281, %v3282
      %3284 = vmatmul.f32.gmra.mxu0 %v2501
      %v3285 = vpop.f32.mrf.mxu0
      %v3286 = vadd.f32 %v1286, %v3285
      %3287 = vmatmul.f32.gmra.mxu0 %v2504
      %v3288 = vpop.f32.mrf.mxu0
      %v3289 = vadd.f32 %v1291, %v3288
      %3290 = vmatmul.f32.gmra.mxu0 %v2507
      %v3291 = vpop.f32.mrf.mxu0
      %v3292 = vadd.f32 %v1296, %v3291
      %3293 = vmatmul.f32.gmra.mxu0 %v2510
      %v3294 = vpop.f32.mrf.mxu0
      %v3295 = vadd.f32 %v1301, %v3294
      %3296 = vmatmul.f32.gmra.mxu0 %v2513
      %v3297 = vpop.f32.mrf.mxu0
      %v3298 = vadd.f32 %v1306, %v3297
      %3299 = vmatmul.f32.gmra.mxu0 %v2516
      %v3300 = vpop.f32.mrf.mxu0
      %v3301 = vadd.f32 %v1311, %v3300
      %3302 = vmatmul.f32.gmra.mxu0 %v2519
      %v3303 = vpop.f32.mrf.mxu0
      %v3304 = vadd.f32 %v1316, %v3303
      %3305 = vmatmul.f32.gmra.mxu0 %v2522
      %v3306 = vpop.f32.mrf.mxu0
      %v3307 = vadd.f32 %v1321, %v3306
      %3308 = vmatmul.f32.gmra.mxu0 %v2525
      %v3309 = vpop.f32.mrf.mxu0
      %v3310 = vadd.f32 %v1326, %v3309
      %3311 = vmatmul.f32.gmra.mxu0 %v2528
      %v3312 = vpop.f32.mrf.mxu0
      %v3313 = vadd.f32 %v1331, %v3312
      %3314 = vmatmul.f32.gmra.mxu0 %v2531
      %v3315 = vpop.f32.mrf.mxu0
      %v3316 = vadd.f32 %v1336, %v3315
      %3317 = vmatmul.f32.gmra.mxu0 %v2534
      %v3318 = vpop.f32.mrf.mxu0
      %v3319 = vadd.f32 %v1341, %v3318
      %3320 = vmatmul.f32.gmra.mxu0 %v2537
      %v3321 = vpop.f32.mrf.mxu0
      %v3322 = vadd.f32 %v1346, %v3321
      %3323 = vmatmul.f32.gmra.mxu0 %v2540
      %v3324 = vpop.f32.mrf.mxu0
      %v3325 = vadd.f32 %v1351, %v3324
      %3326 = vmatmul.f32.gmra.mxu0 %v2543
      %v3327 = vpop.f32.mrf.mxu0
      %v3328 = vadd.f32 %v1356, %v3327
      %3329 = vmatmul.f32.gmra.mxu0 %v2546
      %v3330 = vpop.f32.mrf.mxu0
      %v3331 = vadd.f32 %v1361, %v3330
      %3332 = vmatmul.f32.gmra.mxu0 %v2549
      %v3333 = vpop.f32.mrf.mxu0
      %v3334 = vadd.f32 %v1366, %v3333
      %3335 = vmatmul.f32.gmra.mxu0 %v2552
      %v3336 = vpop.f32.mrf.mxu0
      %v3337 = vadd.f32 %v1371, %v3336
      %3338 = vmatmul.f32.gmra.mxu0 %v2555
      %v3339 = vpop.f32.mrf.mxu0
      %v3340 = vadd.f32 %v1376, %v3339
      %3341 = vmatmul.f32.gmra.mxu0 %v2558
      %v3342 = vpop.f32.mrf.mxu0
      %v3343 = vadd.f32 %v1381, %v3342
      %3344 = vmatmul.f32.gmra.mxu0 %v2561
      %v3345 = vpop.f32.mrf.mxu0
      %v3346 = vadd.f32 %v1386, %v3345
      %3347 = vmatmul.f32.gmra.mxu0 %v2564
      %v3348 = vpop.f32.mrf.mxu0
      %v3349 = vadd.f32 %v1391, %v3348
      %3350 = vmatmul.f32.gmra.mxu0 %v2567
      %v3351 = vpop.f32.mrf.mxu0
      %v3352 = vadd.f32 %v1396, %v3351
      %3353 = vmatmul.f32.gmra.mxu0 %v2570
      %v3354 = vpop.f32.mrf.mxu0
      %v3355 = vadd.f32 %v1401, %v3354
      %3356 = vmatmul.f32.gmra.mxu0 %v2573
      %v3357 = vpop.f32.mrf.mxu0
      %v3358 = vadd.f32 %v1406, %v3357
      %3359 = vmatmul.f32.gmra.mxu0 %v2576
      %v3360 = vpop.f32.mrf.mxu0
      %v3361 = vadd.f32 %v1411, %v3360
      %3362 = vmatmul.f32.gmra.mxu0 %v2579
      %v3363 = vpop.f32.mrf.mxu0
      %v3364 = vadd.f32 %v1416, %v3363
      %3365 = vmatmul.f32.gmra.mxu0 %v2582
      %v3366 = vpop.f32.mrf.mxu0
      %v3367 = vadd.f32 %v1421, %v3366
      %3368 = vmatmul.f32.gmra.mxu0 %v2585
      %v3369 = vpop.f32.mrf.mxu0
      %v3370 = vadd.f32 %v1426, %v3369
      %3371 = vmatmul.f32.gmra.mxu0 %v2588
      %v3372 = vpop.f32.mrf.mxu0
      %v3373 = vadd.f32 %v1431, %v3372
      %3374 = vmatmul.f32.gmra.mxu0 %v2591
      %v3375 = vpop.f32.mrf.mxu0
      %v3376 = vadd.f32 %v1436, %v3375
      %3377 = vmatmul.f32.gmra.mxu0 %v2594
      %v3378 = vpop.f32.mrf.mxu0
      %v3379 = vadd.f32 %v1441, %v3378
      %3380 = vmatmul.f32.gmra.mxu0 %v2597
      %v3381 = vpop.f32.mrf.mxu0
      %v3382 = vadd.f32 %v1446, %v3381
      %3383 = vmatmul.f32.gmra.mxu0 %v2600
      %v3384 = vpop.f32.mrf.mxu0
      %v3385 = vadd.f32 %v1451, %v3384
      %3386 = vmatmul.f32.gmra.mxu0 %v2603
      %v3387 = vpop.f32.mrf.mxu0
      %v3388 = vadd.f32 %v1456, %v3387
      %3389 = vmatmul.f32.gmra.mxu0 %v2606
      %v3390 = vpop.f32.mrf.mxu0
      %v3391 = vadd.f32 %v1461, %v3390
      %3392 = vmatmul.f32.gmra.mxu0 %v2609
      %v3393 = vpop.f32.mrf.mxu0
      %v3394 = vadd.f32 %v1466, %v3393
      %3395 = vmatmul.f32.gmra.mxu0 %v2612
      %v3396 = vpop.f32.mrf.mxu0
      %v3397 = vadd.f32 %v1471, %v3396
      %3398 = vmatmul.f32.gmra.mxu0 %v2615
      %v3399 = vpop.f32.mrf.mxu0
      %v3400 = vadd.f32 %v1476, %v3399
      %3401 = vmatmul.f32.gmra.mxu0 %v2618
      %v3402 = vpop.f32.mrf.mxu0
      %v3403 = vadd.f32 %v1481, %v3402
      %3404 = vmatmul.f32.gmra.mxu0 %v2621
      %v3405 = vpop.f32.mrf.mxu0
      %v3406 = vadd.f32 %v1486, %v3405
      %3407 = vmatmul.f32.gmra.mxu0 %v2624
      %v3408 = vpop.f32.mrf.mxu0
      %v3409 = vadd.f32 %v1491, %v3408
      %3410 = vmatmul.f32.gmra.mxu0 %v2627
      %v3411 = vpop.f32.mrf.mxu0
      %v3412 = vadd.f32 %v1496, %v3411
      %3413 = vmatmul.f32.gmra.mxu0 %v2630
      %v3414 = vpop.f32.mrf.mxu0
      %v3415 = vadd.f32 %v1501, %v3414
      %3416 = vmatmul.f32.gmra.mxu0 %v2633
      %v3417 = vpop.f32.mrf.mxu0
      %v3418 = vadd.f32 %v1506, %v3417
      %3419 = vmatmul.f32.gmra.mxu0 %v2636
      %v3420 = vpop.f32.mrf.mxu0
      %v3421 = vadd.f32 %v1511, %v3420
      %3422 = vmatmul.f32.gmra.mxu0 %v2639
      %v3423 = vpop.f32.mrf.mxu0
      %v3424 = vadd.f32 %v1516, %v3423
      %3425 = vmatmul.f32.gmra.mxu0 %v2642
      %v3426 = vpop.f32.mrf.mxu0
      %v3427 = vadd.f32 %v1521, %v3426
      %3428 = vmatmul.f32.gmra.mxu0 %v2645
      %v3429 = vpop.f32.mrf.mxu0
      %v3430 = vadd.f32 %v1526, %v3429
      %3431 = vmatmul.f32.gmra.mxu0 %v2648
      %v3432 = vpop.f32.mrf.mxu0
      %v3433 = vadd.f32 %v1531, %v3432
      %3434 = vmatmul.f32.gmra.mxu0 %v2651
      %v3435 = vpop.f32.mrf.mxu0
      %v3436 = vadd.f32 %v1536, %v3435
      %3437 = vmatmul.f32.gmra.mxu0 %v2654
      %v3438 = vpop.f32.mrf.mxu0
      %v3439 = vadd.f32 %v1541, %v3438
      %3440 = vmatmul.f32.gmra.mxu0 %v2657
      %v3441 = vpop.f32.mrf.mxu0
      %v3442 = vadd.f32 %v1546, %v3441
      %3443 = vmatmul.f32.gmra.mxu0 %v2660
      %v3444 = vpop.f32.mrf.mxu0
      %v3445 = vadd.f32 %v1551, %v3444
      %3446 = vmatmul.f32.gmra.mxu0 %v2663
      %v3447 = vpop.f32.mrf.mxu0
      %v3448 = vadd.f32 %v1556, %v3447
      %3449 = vmatmul.f32.gmra.mxu0 %v2666
      %v3450 = vpop.f32.mrf.mxu0
      %v3451 = vadd.f32 %v1561, %v3450
      %3452 = vmatmul.f32.gmra.mxu0 %v2669
      %v3453 = vpop.f32.mrf.mxu0
      %v3454 = vadd.f32 %v1566, %v3453
      %3455 = vmatmul.f32.gmra.mxu0 %v2672
      %v3456 = vpop.f32.mrf.mxu0
      %v3457 = vadd.f32 %v1571, %v3456
      %3458 = vmatmul.f32.gmra.mxu0 %v2675
      %v3459 = vpop.f32.mrf.mxu0
      %v3460 = vadd.f32 %v1576, %v3459
      %3461 = vmatmul.f32.gmra.mxu0 %v2678
      %v3462 = vpop.f32.mrf.mxu0
      %v3463 = vadd.f32 %v1581, %v3462
      %3464 = vmatmul.f32.gmra.mxu0 %v2681
      %v3465 = vpop.f32.mrf.mxu0
      %v3466 = vadd.f32 %v1586, %v3465
      %3467 = vmatmul.f32.gmra.mxu0 %v2684
      %v3468 = vpop.f32.mrf.mxu0
      %v3469 = vadd.f32 %v1591, %v3468
      %3470 = vmatmul.f32.gmra.mxu0 %v2687
      %v3471 = vpop.f32.mrf.mxu0
      %v3472 = vadd.f32 %v1596, %v3471
      %3473 = vmatmul.f32.gmra.mxu0 %v2690
      %v3474 = vpop.f32.mrf.mxu0
      %v3475 = vadd.f32 %v1601, %v3474
      %3476 = vmatmul.f32.gmra.mxu0 %v2693
      %v3477 = vpop.f32.mrf.mxu0
      %v3478 = vadd.f32 %v1606, %v3477
      %3479 = vmatmul.f32.gmra.mxu0 %v2696
      %v3480 = vpop.f32.mrf.mxu0
      %v3481 = vadd.f32 %v1611, %v3480
      %3482 = vmatmul.f32.gmra.mxu0 %v2699
      %v3483 = vpop.f32.mrf.mxu0
      %v3484 = vadd.f32 %v1616, %v3483
      %3485 = vmatmul.f32.gmra.mxu0 %v2702
      %v3486 = vpop.f32.mrf.mxu0
      %v3487 = vadd.f32 %v1621, %v3486
      %3488 = vmatmul.f32.gmra.mxu0 %v2705
      %v3489 = vpop.f32.mrf.mxu0
      %v3490 = vadd.f32 %v1626, %v3489
      %3491 = vmatmul.f32.gmra.mxu0 %v2708
      %v3492 = vpop.f32.mrf.mxu0
      %v3493 = vadd.f32 %v1631, %v3492
      %3494 = vmatmul.f32.gmra.mxu0 %v2711
      %v3495 = vpop.f32.mrf.mxu0
      %v3496 = vadd.f32 %v1636, %v3495
      %3497 = vmatmul.f32.gmra.mxu0 %v2714
      %v3498 = vpop.f32.mrf.mxu0
      %v3499 = vadd.f32 %v1641, %v3498
      %3500 = vmatmul.f32.gmra.mxu0 %v2717
      %v3501 = vpop.f32.mrf.mxu0
      %v3502 = vadd.f32 %v1646, %v3501
      %3503 = vmatmul.f32.gmra.mxu0 %v2720
      %v3504 = vpop.f32.mrf.mxu0
      %v3505 = vadd.f32 %v1651, %v3504
      %3506 = vmatmul.f32.gmra.mxu0 %v2723
      %v3507 = vpop.f32.mrf.mxu0
      %v3508 = vadd.f32 %v1656, %v3507
      %3509 = vmatmul.f32.gmra.mxu0 %v2726
      %v3510 = vpop.f32.mrf.mxu0
      %v3511 = vadd.f32 %v1661, %v3510
      %3512 = vmatmul.f32.gmra.mxu0 %v2729
      %v3513 = vpop.f32.mrf.mxu0
      %v3514 = vadd.f32 %v1666, %v3513
      %3515 = vmatmul.f32.gmra.mxu0 %v2732
      %v3516 = vpop.f32.mrf.mxu0
      %v3517 = vadd.f32 %v1671, %v3516
      %3518 = vmatmul.f32.gmra.mxu0 %v2735
      %v3519 = vpop.f32.mrf.mxu0
      %v3520 = vadd.f32 %v1676, %v3519
      %3521 = vmatmul.f32.gmra.mxu0 %v2738
      %v3522 = vpop.f32.mrf.mxu0
      %v3523 = vadd.f32 %v1681, %v3522
      %3524 = vmatmul.f32.gmra.mxu0 %v2741
      %v3525 = vpop.f32.mrf.mxu0
      %v3526 = vadd.f32 %v1686, %v3525
      %3527 = vmatmul.f32.gmra.mxu0 %v2744
      %v3528 = vpop.f32.mrf.mxu0
      %v3529 = vadd.f32 %v1691, %v3528
      %3530 = vmatmul.f32.gmra.mxu0 %v2747
      %v3531 = vpop.f32.mrf.mxu0
      %v3532 = vadd.f32 %v1696, %v3531
      %3533 = vmatmul.f32.gmra.mxu0 %v2750
      %v3534 = vpop.f32.mrf.mxu0
      %v3535 = vadd.f32 %v1701, %v3534
      %3536 = vmatmul.f32.gmra.mxu0 %v2753
      %v3537 = vpop.f32.mrf.mxu0
      %v3538 = vadd.f32 %v1706, %v3537
      %3539 = vmatmul.f32.gmra.mxu0 %v2756
      %v3540 = vpop.f32.mrf.mxu0
      %v3541 = vadd.f32 %v1711, %v3540
      %3542 = vmatmul.f32.gmra.mxu0 %v2759
      %v3543 = vpop.f32.mrf.mxu0
      %v3544 = vadd.f32 %v1716, %v3543
      %3545 = vmatmul.f32.gmra.mxu0 %v2762
      %v3546 = vpop.f32.mrf.mxu0
      %v3547 = vadd.f32 %v1721, %v3546
      %3548 = vmatmul.f32.gmra.mxu0 %v2765
      %v3549 = vpop.f32.mrf.mxu0
      %v3550 = vadd.f32 %v1726, %v3549
      %3551 = vmatmul.f32.gmra.mxu0 %v2768
      %v3552 = vpop.f32.mrf.mxu0
      %v3553 = vadd.f32 %v1731, %v3552
      %3554 = vmatmul.f32.gmra.mxu0 %v2771
      %v3555 = vpop.f32.mrf.mxu0
      %v3556 = vadd.f32 %v1736, %v3555
      %3557 = vmatmul.f32.gmra.mxu0 %v2774
      %v3558 = vpop.f32.mrf.mxu0
      %v3559 = vadd.f32 %v1741, %v3558
      %3560 = vmatmul.f32.gmra.mxu0 %v2777
      %v3561 = vpop.f32.mrf.mxu0
      %v3562 = vadd.f32 %v1746, %v3561
      %3563 = vmatmul.f32.gmra.mxu0 %v2780
      %v3564 = vpop.f32.mrf.mxu0
      %v3565 = vadd.f32 %v1751, %v3564
      %3566 = vmatmul.f32.gmra.mxu0 %v2783
      %v3567 = vpop.f32.mrf.mxu0
      %v3568 = vadd.f32 %v1756, %v3567
      %3569 = vmatmul.f32.gmra.mxu0 %v2786
      %v3570 = vpop.f32.mrf.mxu0
      %v3571 = vadd.f32 %v1761, %v3570
      %3572 = vmatmul.f32.gmra.mxu0 %v2789
      %v3573 = vpop.f32.mrf.mxu0
      %v3574 = vadd.f32 %v1766, %v3573
      %3575 = vmatmul.f32.gmra.mxu0 %v2792
      %v3576 = vpop.f32.mrf.mxu0
      %v3577 = vadd.f32 %v1771, %v3576
      %3578 = vmatmul.f32.gmra.mxu0 %v2795
      %v3579 = vpop.f32.mrf.mxu0
      %v3580 = vadd.f32 %v1776, %v3579
      %3581 = vmatmul.f32.gmra.mxu0 %v2798
      %v3582 = vpop.f32.mrf.mxu0
      %v3583 = vadd.f32 %v1781, %v3582
      %3584 = vmatmul.f32.gmra.mxu0 %v2801
      %v3585 = vpop.f32.mrf.mxu0
      %v3586 = vadd.f32 %v1786, %v3585
      %3587 = vmatmul.f32.gmra.mxu0 %v2804
      %v3588 = vpop.f32.mrf.mxu0
      %v3589 = vadd.f32 %v1791, %v3588
      %3590 = vmatmul.f32.gmra.mxu0 %v2807
      %v3591 = vpop.f32.mrf.mxu0
      %v3592 = vadd.f32 %v1796, %v3591
      %3593 = vmatmul.f32.gmra.mxu0 %v2810
      %v3594 = vpop.f32.mrf.mxu0
      %v3595 = vadd.f32 %v1801, %v3594
      %3596 = vmatmul.f32.gmra.mxu0 %v2813
      %v3597 = vpop.f32.mrf.mxu0
      %v3598 = vadd.f32 %v1806, %v3597
      %3599 = vmatmul.f32.gmra.mxu0 %v2816
      %v3600 = vpop.f32.mrf.mxu0
      %v3601 = vadd.f32 %v1811, %v3600
      %3602 = vmatmul.f32.gmra.mxu0 %v2819
      %v3603 = vpop.f32.mrf.mxu0
      %v3604 = vadd.f32 %v1816, %v3603
      %3605 = vmatmul.f32.gmra.mxu0 %v2822
      %v3606 = vpop.f32.mrf.mxu0
      %v3607 = vadd.f32 %v1821, %v3606
      %3608 = vmatmul.f32.gmra.mxu0 %v2825
      %v3609 = vpop.f32.mrf.mxu0
      %v3610 = vadd.f32 %v1826, %v3609
      %3611 = vmatmul.f32.gmra.mxu0 %v2828
      %v3612 = vpop.f32.mrf.mxu0
      %v3613 = vadd.f32 %v1831, %v3612
      %3614 = vmatmul.f32.gmra.mxu0 %v2831
      %v3615 = vpop.f32.mrf.mxu0
      %v3616 = vadd.f32 %v1836, %v3615
      %3617 = vmatmul.f32.gmra.mxu0 %v2834
      %v3618 = vpop.f32.mrf.mxu0
      %v3619 = vadd.f32 %v1841, %v3618
      %3620 = vmatmul.f32.gmra.mxu0 %v2837
      %v3621 = vpop.f32.mrf.mxu0
      %v3622 = vadd.f32 %v1846, %v3621
      %3623 = vmatmul.f32.gmra.mxu0 %v2840
      %v3624 = vpop.f32.mrf.mxu0
      %v3625 = vadd.f32 %v1851, %v3624
      %3626 = vmatmul.f32.gmra.mxu0 %v2843
      %v3627 = vpop.f32.mrf.mxu0
      %v3628 = vadd.f32 %v1856, %v3627
      %3629 = vmatmul.f32.gmra.mxu0 %v2846
      %v3630 = vpop.f32.mrf.mxu0
      %v3631 = vadd.f32 %v1861, %v3630
      %3632 = vmatmul.f32.gmra.mxu0 %v2849
      %v3633 = vpop.f32.mrf.mxu0
      %v3634 = vadd.f32 %v1866, %v3633
      %3635 = vmatmul.f32.gmra.mxu0 %v2852
      %v3636 = vpop.f32.mrf.mxu0
      %v3637 = vadd.f32 %v1871, %v3636
      %3638 = vmatmul.f32.gmra.mxu0 %v2855
      %v3639 = vpop.f32.mrf.mxu0
      %v3640 = vadd.f32 %v1876, %v3639
      %3641 = vmatmul.f32.gmra.mxu0 %v2858
      %v3642 = vpop.f32.mrf.mxu0
      %v3643 = vadd.f32 %v1881, %v3642
      %3644 = vmatmul.f32.gmra.mxu0 %v2861
      %v3645 = vpop.f32.mrf.mxu0
      %v3646 = vadd.f32 %v1886, %v3645
      %3647 = vmatmul.f32.gmra.mxu0 %v2864
      %v3648 = vpop.f32.mrf.mxu0
      %v3649 = vadd.f32 %v1891, %v3648
      %3650 = vmatmul.f32.gmra.mxu0 %v2867
      %v3651 = vpop.f32.mrf.mxu0
      %v3652 = vadd.f32 %v1896, %v3651
      %3653 = vmatmul.f32.gmra.mxu0 %v2870
      %v3654 = vpop.f32.mrf.mxu0
      %v3655 = vadd.f32 %v1901, %v3654
      %3656 = vmatmul.f32.gmra.mxu0 %v2873
      %v3657 = vpop.f32.mrf.mxu0
      %v3658 = vadd.f32 %v1906, %v3657
      %3659 = vmatmul.f32.gmra.mxu0 %v2876
      %v3660 = vpop.f32.mrf.mxu0
      %v3661 = vadd.f32 %v1911, %v3660
      %3662 = vmatmul.f32.gmra.mxu0 %v2879
      %v3663 = vpop.f32.mrf.mxu0
      %v3664 = vadd.f32 %v1916, %v3663
      %3665 = vmatmul.f32.gmra.mxu0 %v2882
      %v3666 = vpop.f32.mrf.mxu0
      %v3667 = vadd.f32 %v1921, %v3666
      %3668 = vmatmul.f32.gmra.mxu0 %v2885
      %v3669 = vpop.f32.mrf.mxu0
      %v3670 = vadd.f32 %v1926, %v3669
      %3671 = vmatmul.f32.gmra.mxu0 %v2888
      %v3672 = vpop.f32.mrf.mxu0
      %v3673 = vadd.f32 %v1931, %v3672
      %3674 = vmatmul.f32.gmra.mxu0 %v2891
      %v3675 = vpop.f32.mrf.mxu0
      %v3676 = vadd.f32 %v1936, %v3675
      %3677 = vmatmul.f32.gmra.mxu0 %v2894
      %v3678 = vpop.f32.mrf.mxu0
      %v3679 = vadd.f32 %v1941, %v3678
      %3680 = vmatmul.f32.gmra.mxu0 %v2897
      %v3681 = vpop.f32.mrf.mxu0
      %v3682 = vadd.f32 %v1946, %v3681
      %3683 = vmatmul.f32.gmra.mxu0 %v2900
      %v3684 = vpop.f32.mrf.mxu0
      %v3685 = vadd.f32 %v1951, %v3684
      %3686 = vmatmul.f32.gmra.mxu0 %v2903
      %v3687 = vpop.f32.mrf.mxu0
      %v3688 = vadd.f32 %v1956, %v3687
      %3689 = vmatmul.f32.gmra.mxu0 %v2906
      %v3690 = vpop.f32.mrf.mxu0
      %v3691 = vadd.f32 %v1961, %v3690
      %3692 = vmatmul.f32.gmra.mxu0 %v2909
      %v3693 = vpop.f32.mrf.mxu0
      %v3694 = vadd.f32 %v1966, %v3693
      %3695 = vmatmul.f32.gmra.mxu0 %v2912
      %v3696 = vpop.f32.mrf.mxu0
      %v3697 = vadd.f32 %v1971, %v3696
      %3698 = vmatmul.f32.gmra.mxu0 %v2915
      %v3699 = vpop.f32.mrf.mxu0
      %v3700 = vadd.f32 %v1976, %v3699
      %3701 = vmatmul.f32.gmra.mxu0 %v2918
      %v3702 = vpop.f32.mrf.mxu0
      %v3703 = vadd.f32 %v1981, %v3702
      %3704 = vmatmul.f32.gmra.mxu0 %v2921
      %v3705 = vpop.f32.mrf.mxu0
      %v3706 = vadd.f32 %v1986, %v3705
      %3707 = vmatmul.f32.gmra.mxu0 %v2924
      %v3708 = vpop.f32.mrf.mxu0
      %v3709 = vadd.f32 %v1991, %v3708
      %3710 = vmatmul.f32.gmra.mxu0 %v2927
      %v3711 = vpop.f32.mrf.mxu0
      %v3712 = vadd.f32 %v1996, %v3711
      %3713 = vmatmul.f32.gmra.mxu0 %v2930
      %v3714 = vpop.f32.mrf.mxu0
      %v3715 = vadd.f32 %v2001, %v3714
      %3716 = vmatmul.f32.gmra.mxu0 %v2933
      %v3717 = vpop.f32.mrf.mxu0
      %v3718 = vadd.f32 %v2006, %v3717
      %3719 = vmatmul.f32.gmra.mxu0 %v2936
      %v3720 = vpop.f32.mrf.mxu0
      %v3721 = vadd.f32 %v2011, %v3720
      %3722 = vmatmul.f32.gmra.mxu0 %v2939
      %v3723 = vpop.f32.mrf.mxu0
      %v3724 = vadd.f32 %v2016, %v3723
      %3725 = vmatmul.f32.gmra.mxu0 %v2942
      %v3726 = vpop.f32.mrf.mxu0
      %v3727 = vadd.f32 %v2021, %v3726
      %3728 = vmatmul.f32.gmra.mxu0 %v2945
      %v3729 = vpop.f32.mrf.mxu0
      %v3730 = vadd.f32 %v2026, %v3729
      %3731 = vmatmul.f32.gmra.mxu0 %v2948
      %v3732 = vpop.f32.mrf.mxu0
      %v3733 = vadd.f32 %v2031, %v3732
      %3734 = vmatmul.f32.gmra.mxu0 %v2951
      %v3735 = vpop.f32.mrf.mxu0
      %v3736 = vadd.f32 %v2036, %v3735
      %3737 = vmatmul.f32.gmra.mxu0 %v2954
      %v3738 = vpop.f32.mrf.mxu0
      %v3739 = vadd.f32 %v2041, %v3738
      %3740 = vmatmul.f32.gmra.mxu0 %v2957
      %v3741 = vpop.f32.mrf.mxu0
      %v3742 = vadd.f32 %v2046, %v3741
      %3743 = vmatmul.f32.gmra.mxu0 %v2960
      %v3744 = vpop.f32.mrf.mxu0
      %v3745 = vadd.f32 %v2051, %v3744
      %3746 = vmatmul.f32.gmra.mxu0 %v2963
      %v3747 = vpop.f32.mrf.mxu0
      %v3748 = vadd.f32 %v2056, %v3747
      %3749 = vmatmul.f32.gmra.mxu0 %v2966
      %v3750 = vpop.f32.mrf.mxu0
      %v3751 = vadd.f32 %v2061, %v3750
      %3752 = vmatmul.f32.gmra.mxu0 %v2969
      %v3753 = vpop.f32.mrf.mxu0
      %v3754 = vadd.f32 %v2066, %v3753
      %3755 = vmatmul.f32.gmra.mxu0 %v2972
      %v3756 = vpop.f32.mrf.mxu0
      %v3757 = vadd.f32 %v2071, %v3756
      %3758 = vmatmul.f32.gmra.mxu0 %v2975
      %v3759 = vpop.f32.mrf.mxu0
      %v3760 = vadd.f32 %v2076, %v3759
      %3761 = vmatmul.f32.gmra.mxu0 %v2978
      %v3762 = vpop.f32.mrf.mxu0
      %v3763 = vadd.f32 %v2081, %v3762
      %3764 = vmatmul.f32.gmra.mxu0 %v2981
      %v3765 = vpop.f32.mrf.mxu0
      %v3766 = vadd.f32 %v2086, %v3765
      %3767 = vmatmul.f32.gmra.mxu0 %v2984
      %v3768 = vpop.f32.mrf.mxu0
      %v3769 = vadd.f32 %v2091, %v3768
      %3770 = vmatmul.f32.gmra.mxu0 %v2987
      %v3771 = vpop.f32.mrf.mxu0
      %v3772 = vadd.f32 %v2096, %v3771
      %3773 = vmatmul.f32.gmra.mxu0 %v2990
      %v3774 = vpop.f32.mrf.mxu0
      %v3775 = vadd.f32 %v2101, %v3774
      %3776 = vmatmul.f32.gmra.mxu0 %v2993
      %v3777 = vpop.f32.mrf.mxu0
      %v3778 = vadd.f32 %v2106, %v3777
      %3779 = vmatmul.f32.gmra.mxu0 %v2996
      %v3780 = vpop.f32.mrf.mxu0
      %v3781 = vadd.f32 %v2111, %v3780
      %3782 = vmatmul.f32.gmra.mxu0 %v2999
      %v3783 = vpop.f32.mrf.mxu0
      %v3784 = vadd.f32 %v2116, %v3783
      %3785 = vmatmul.f32.gmra.mxu0 %v3002
      %v3786 = vpop.f32.mrf.mxu0
      %v3787 = vadd.f32 %v2121, %v3786
      %3788 = vmatmul.f32.gmra.mxu0 %v3005
      %v3789 = vpop.f32.mrf.mxu0
      %v3790 = vadd.f32 %v2126, %v3789
      %3791 = vmatmul.f32.gmra.mxu0 %v3008
      %v3792 = vpop.f32.mrf.mxu0
      %v3793 = vadd.f32 %v2131, %v3792
      %3794 = vmatmul.f32.gmra.mxu0 %v3011
      %v3795 = vpop.f32.mrf.mxu0
      %v3796 = vadd.f32 %v2136, %v3795
      %3797 = vmatmul.f32.gmra.mxu0 %v3014
      %v3798 = vpop.f32.mrf.mxu0
      %v3799 = vadd.f32 %v2141, %v3798
      %3800 = vmatmul.f32.gmra.mxu0 %v3017
      %v3801 = vpop.f32.mrf.mxu0
      %v3802 = vadd.f32 %v2146, %v3801
      %3803 = vmatmul.f32.gmra.mxu0 %v3020
      %v3804 = vpop.f32.mrf.mxu0
      %v3805 = vadd.f32 %v2151, %v3804
      %3806 = vmatmul.f32.gmra.mxu0 %v3023
      %v3807 = vpop.f32.mrf.mxu0
      %v3808 = vadd.f32 %v2156, %v3807
      %3809 = vmatmul.f32.gmra.mxu0 %v3026
      %v3810 = vpop.f32.mrf.mxu0
      %v3811 = vadd.f32 %v2161, %v3810
      %3812 = vmatmul.f32.gmra.mxu0 %v3029
      %v3813 = vpop.f32.mrf.mxu0
      %v3814 = vadd.f32 %v2166, %v3813
      %3815 = vmatmul.f32.gmra.mxu0 %v3032
      %v3816 = vpop.f32.mrf.mxu0
      %v3817 = vadd.f32 %v2171, %v3816
      %3818 = vmatmul.f32.gmra.mxu0 %v3035
      %v3819 = vpop.f32.mrf.mxu0
      %v3820 = vadd.f32 %v2176, %v3819
      %3821 = vmatmul.f32.gmra.mxu0 %v3038
      %v3822 = vpop.f32.mrf.mxu0
      %v3823 = vadd.f32 %v2181, %v3822
      %3824 = vmatmul.f32.gmra.mxu0 %v3041
      %v3825 = vpop.f32.mrf.mxu0
      %v3826 = vadd.f32 %v2186, %v3825
      %3827 = vmatmul.f32.gmra.mxu0 %v3044
      %v3828 = vpop.f32.mrf.mxu0
      %v3829 = vadd.f32 %v2191, %v3828
      %3830 = vmatmul.f32.gmra.mxu0 %v3047
      %v3831 = vpop.f32.mrf.mxu0
      %v3832 = vadd.f32 %v2196, %v3831
      %3833 = vmatmul.f32.gmra.mxu0 %v3050
      %v3834 = vpop.f32.mrf.mxu0
      %v3835 = vadd.f32 %v2201, %v3834
      %3836 = vmatmul.f32.gmra.mxu0 %v3053
      %v3837 = vpop.f32.mrf.mxu0
      %v3838 = vadd.f32 %v2206, %v3837
      %3839 = vmatmul.f32.gmra.mxu0 %v3056
      %v3840 = vpop.f32.mrf.mxu0
      %v3841 = vadd.f32 %v2211, %v3840
      %3842 = vmatmul.f32.gmra.mxu0 %v3059
      %v3843 = vpop.f32.mrf.mxu0
      %v3844 = vadd.f32 %v2216, %v3843
      %3845 = vmatmul.f32.gmra.mxu0 %v3062
      %v3846 = vpop.f32.mrf.mxu0
      %v3847 = vadd.f32 %v2221, %v3846
      %3848 = vmatmul.f32.gmra.mxu0 %v3065
      %v3849 = vpop.f32.mrf.mxu0
      %v3850 = vadd.f32 %v2226, %v3849
      %3851 = vmatmul.f32.gmra.mxu0 %v3068
      %v3852 = vpop.f32.mrf.mxu0
      %v3853 = vadd.f32 %v2231, %v3852
      %3854 = vmatmul.f32.gmra.mxu0 %v3071
      %v3855 = vpop.f32.mrf.mxu0
      %v3856 = vadd.f32 %v2236, %v3855
      %3857 = vmatmul.f32.gmra.mxu0 %v3074
      %v3858 = vpop.f32.mrf.mxu0
      %v3859 = vadd.f32 %v2241, %v3858
      %3860 = vmatmul.f32.gmra.mxu0 %v3077
      %v3861 = vpop.f32.mrf.mxu0
      %v3862 = vadd.f32 %v2246, %v3861
      %3863 = vmatmul.f32.gmra.mxu0 %v3080
      %v3864 = vpop.f32.mrf.mxu0
      %v3865 = vadd.f32 %v2251, %v3864
      %3866 = vmatmul.f32.gmra.mxu0 %v3083
      %v3867 = vpop.f32.mrf.mxu0
      %v3868 = vadd.f32 %v2256, %v3867
      %3869 = vmatmul.f32.gmra.mxu0 %v3086
      %v3870 = vpop.f32.mrf.mxu0
      %v3871 = vadd.f32 %v2261, %v3870
      %3872 = vmatmul.f32.gmra.mxu0 %v3089
      %v3873 = vpop.f32.mrf.mxu0
      %v3874 = vadd.f32 %v2266, %v3873
      %3875 = vmatmul.f32.gmra.mxu0 %v3092
      %v3876 = vpop.f32.mrf.mxu0
      %v3877 = vadd.f32 %v2271, %v3876
      %3878 = vmatmul.f32.gmra.mxu0 %v3095
      %v3879 = vpop.f32.mrf.mxu0
      %v3880 = vadd.f32 %v2276, %v3879
      %3881 = vmatmul.f32.gmra.mxu0 %v3098
      %v3882 = vpop.f32.mrf.mxu0
      %v3883 = vadd.f32 %v2281, %v3882
      %3884 = vmatmul.f32.gmra.mxu0 %v3101
      %v3885 = vpop.f32.mrf.mxu0
      %v3886 = vadd.f32 %v2286, %v3885
      %3887 = vmatmul.f32.gmra.mxu0 %v3104
      %v3888 = vpop.f32.mrf.mxu0
      %v3889 = vadd.f32 %v2291, %v3888
      %3890 = vmatmul.f32.gmra.mxu0 %v3107
      %v3891 = vpop.f32.mrf.mxu0
      %v3892 = vadd.f32 %v2296, %v3891
      %3893 = vmatmul.f32.gmra.mxu0 %v3110
      %v3894 = vpop.f32.mrf.mxu0
      %v3895 = vadd.f32 %v2301, %v3894
      %3896 = vmatmul.f32.gmra.mxu0 %v3113
      %v3897 = vpop.f32.mrf.mxu0
      %v3898 = vadd.f32 %v2306, %v3897
      %3899 = vmatmul.f32.gmra.mxu0 %v3116
      %v3900 = vpop.f32.mrf.mxu0
      %v3901 = vadd.f32 %v2311, %v3900
      %3902 = vmatmul.f32.gmra.mxu0 %v3119
      %v3903 = vpop.f32.mrf.mxu0
      %v3904 = vadd.f32 %v2316, %v3903
      %3905 = vmatmul.f32.gmra.mxu0 %v3122
      %v3906 = vpop.f32.mrf.mxu0
      %v3907 = vadd.f32 %v2321, %v3906
      %3908 = vmatmul.f32.gmra.mxu0 %v3125
      %v3909 = vpop.f32.mrf.mxu0
      %v3910 = vadd.f32 %v2326, %v3909
      %3911 = vmatmul.f32.gmra.mxu0 %v3128
      %v3912 = vpop.f32.mrf.mxu0
      %v3913 = vadd.f32 %v2331, %v3912
      %3914 = vmatmul.f32.gmra.mxu0 %v3131
      %v3915 = vpop.f32.mrf.mxu0
      %v3916 = vadd.f32 %v2336, %v3915
      %3917 = vmatmul.f32.gmra.mxu0 %v3134
      %v3918 = vpop.f32.mrf.mxu0
      %v3919 = vadd.f32 %v2341, %v3918
      %3920 = vmatmul.f32.gmra.mxu0 %v3137
      %v3921 = vpop.f32.mrf.mxu0
      %v3922 = vadd.f32 %v2346, %v3921
      %3923 = vmatmul.f32.gmra.mxu0 %v3140
      %v3924 = vpop.f32.mrf.mxu0
      %v3925 = vadd.f32 %v2351, %v3924
      %3926 = vmatmul.f32.gmra.mxu0 %v3143
      %v3927 = vpop.f32.mrf.mxu0
      %v3928 = vadd.f32 %v2356, %v3927
      %3929 = vmatmul.f32.gmra.mxu0 %v3146
      %v3930 = vpop.f32.mrf.mxu0
      %v3931 = vadd.f32 %v2361, %v3930
      %3932 = vmatmul.f32.gmra.mxu0 %v3149
      %v3933 = vpop.f32.mrf.mxu0
      %v3934 = vadd.f32 %v2366, %v3933
      %3935 = vmatmul.f32.gmra.mxu0 %v3152
      %v3936 = vpop.f32.mrf.mxu0
      %v3937 = vadd.f32 %v2371, %v3936
      %3938 = vmatmul.f32.gmra.mxu0 %v3155
      %v3939 = vpop.f32.mrf.mxu0
      %v3940 = vadd.f32 %v2376, %v3939
      %3941 = vmatmul.f32.gmra.mxu0 %v3158
      %v3942 = vpop.f32.mrf.mxu0
      %v3943 = vadd.f32 %v2381, %v3942
      %3944 = vmatmul.f32.gmra.mxu0 %v3161
      %v3945 = vpop.f32.mrf.mxu0
      %v3946 = vadd.f32 %v2386, %v3945
      %3947 = vmatmul.f32.gmra.mxu0 %v3164
      %v3948 = vpop.f32.mrf.mxu0
      %v3949 = vadd.f32 %v2391, %v3948
      %3950 = vmatmul.f32.gmra.mxu0 %v3167
      %v3951 = vpop.f32.mrf.mxu0
      %v3952 = vadd.f32 %v2396, %v3951
      %3953 = vmatmul.f32.gmra.mxu0 %v3170
      %v3954 = vpop.f32.mrf.mxu0
      %v3955 = vadd.f32 %v2401, %v3954
      %3956 = vdwg.mxu0
      %3957 = vmatpush.msra.mxu0 0.0
      %3958 = vmatpush.msra.mxu0 0.0
      %3959 = vmatpush.msra.mxu0 0.0
      %3960 = vmatpush.msra.mxu0 0.0
      %3961 = vmatpush.msra.mxu0 0.0
      %3962 = vmatpush.msra.mxu0 0.0
      %3963 = vmatpush.msra.mxu0 0.0
      %3964 = vmatpush.msra.mxu0 0.0
      %3965 = vmatpush.msra.mxu0 %v610
      %3966 = vmatpush.msra.mxu0 %v608
      %3967 = vmatpush.msra.mxu0 %v606
      %3968 = vmatpush.msra.mxu0 %v604
      %3969 = vmatpush.msra.mxu0 %v602
      %3970 = vmatpush.msra.mxu0 %v600
      %3971 = vmatpush.msra.mxu0 %v598
      %3972 = vmatpush.msra.mxu0 %v596
      %3973 = vmatmul.f32.gmra.mxu0 %v2405
      %v3974 = vpop.f32.mrf.mxu0
      %v3975 = vadd.f32 %v1126, %v3974
      %3976 = vmatmul.f32.gmra.mxu0 %v2408
      %v3977 = vpop.f32.mrf.mxu0
      %v3978 = vadd.f32 %v1131, %v3977
      %3979 = vmatmul.f32.gmra.mxu0 %v2411
      %v3980 = vpop.f32.mrf.mxu0
      %v3981 = vadd.f32 %v1136, %v3980
      %3982 = vmatmul.f32.gmra.mxu0 %v2414
      %v3983 = vpop.f32.mrf.mxu0
      %v3984 = vadd.f32 %v1141, %v3983
      %3985 = vmatmul.f32.gmra.mxu0 %v2417
      %v3986 = vpop.f32.mrf.mxu0
      %v3987 = vadd.f32 %v1146, %v3986
      %3988 = vmatmul.f32.gmra.mxu0 %v2420
      %v3989 = vpop.f32.mrf.mxu0
      %v3990 = vadd.f32 %v1151, %v3989
      %3991 = vmatmul.f32.gmra.mxu0 %v2423
      %v3992 = vpop.f32.mrf.mxu0
      %v3993 = vadd.f32 %v1156, %v3992
      %3994 = vmatmul.f32.gmra.mxu0 %v2426
      %v3995 = vpop.f32.mrf.mxu0
      %v3996 = vadd.f32 %v1161, %v3995
      %3997 = vmatmul.f32.gmra.mxu0 %v2429
      %v3998 = vpop.f32.mrf.mxu0
      %v3999 = vadd.f32 %v1166, %v3998
      %4000 = vmatmul.f32.gmra.mxu0 %v2432
      %v4001 = vpop.f32.mrf.mxu0
      %v4002 = vadd.f32 %v1171, %v4001
      %4003 = vmatmul.f32.gmra.mxu0 %v2435
      %v4004 = vpop.f32.mrf.mxu0
      %v4005 = vadd.f32 %v1176, %v4004
      %4006 = vmatmul.f32.gmra.mxu0 %v2438
      %v4007 = vpop.f32.mrf.mxu0
      %v4008 = vadd.f32 %v1181, %v4007
      %4009 = vmatmul.f32.gmra.mxu0 %v2441
      %v4010 = vpop.f32.mrf.mxu0
      %v4011 = vadd.f32 %v1186, %v4010
      %4012 = vmatmul.f32.gmra.mxu0 %v2444
      %v4013 = vpop.f32.mrf.mxu0
      %v4014 = vadd.f32 %v1191, %v4013
      %4015 = vmatmul.f32.gmra.mxu0 %v2447
      %v4016 = vpop.f32.mrf.mxu0
      %v4017 = vadd.f32 %v1196, %v4016
      %4018 = vmatmul.f32.gmra.mxu0 %v2450
      %v4019 = vpop.f32.mrf.mxu0
      %v4020 = vadd.f32 %v1201, %v4019
      %4021 = vmatmul.f32.gmra.mxu0 %v2453
      %v4022 = vpop.f32.mrf.mxu0
      %v4023 = vadd.f32 %v1206, %v4022
      %4024 = vmatmul.f32.gmra.mxu0 %v2456
      %v4025 = vpop.f32.mrf.mxu0
      %v4026 = vadd.f32 %v1211, %v4025
      %4027 = vmatmul.f32.gmra.mxu0 %v2459
      %v4028 = vpop.f32.mrf.mxu0
      %v4029 = vadd.f32 %v1216, %v4028
      %4030 = vmatmul.f32.gmra.mxu0 %v2462
      %v4031 = vpop.f32.mrf.mxu0
      %v4032 = vadd.f32 %v1221, %v4031
      %4033 = vmatmul.f32.gmra.mxu0 %v2465
      %v4034 = vpop.f32.mrf.mxu0
      %v4035 = vadd.f32 %v1226, %v4034
      %4036 = vmatmul.f32.gmra.mxu0 %v2468
      %v4037 = vpop.f32.mrf.mxu0
      %v4038 = vadd.f32 %v1231, %v4037
      %4039 = vmatmul.f32.gmra.mxu0 %v2471
      %v4040 = vpop.f32.mrf.mxu0
      %v4041 = vadd.f32 %v1236, %v4040
      %4042 = vmatmul.f32.gmra.mxu0 %v2474
      %v4043 = vpop.f32.mrf.mxu0
      %v4044 = vadd.f32 %v1241, %v4043
      %4045 = vmatmul.f32.gmra.mxu0 %v2477
      %v4046 = vpop.f32.mrf.mxu0
      %v4047 = vadd.f32 %v1246, %v4046
      %4048 = vmatmul.f32.gmra.mxu0 %v2480
      %v4049 = vpop.f32.mrf.mxu0
      %v4050 = vadd.f32 %v1251, %v4049
      %4051 = vmatmul.f32.gmra.mxu0 %v2483
      %v4052 = vpop.f32.mrf.mxu0
      %v4053 = vadd.f32 %v1256, %v4052
      %4054 = vmatmul.f32.gmra.mxu0 %v2486
      %v4055 = vpop.f32.mrf.mxu0
      %v4056 = vadd.f32 %v1261, %v4055
      %4057 = vmatmul.f32.gmra.mxu0 %v2489
      %v4058 = vpop.f32.mrf.mxu0
      %v4059 = vadd.f32 %v1266, %v4058
      %4060 = vmatmul.f32.gmra.mxu0 %v2492
      %v4061 = vpop.f32.mrf.mxu0
      %v4062 = vadd.f32 %v1271, %v4061
      %4063 = vmatmul.f32.gmra.mxu0 %v2495
      %v4064 = vpop.f32.mrf.mxu0
      %v4065 = vadd.f32 %v1276, %v4064
      %4066 = vmatmul.f32.gmra.mxu0 %v2498
      %v4067 = vpop.f32.mrf.mxu0
      %v4068 = vadd.f32 %v1281, %v4067
      %4069 = vmatmul.f32.gmra.mxu0 %v2501
      %v4070 = vpop.f32.mrf.mxu0
      %v4071 = vadd.f32 %v1286, %v4070
      %4072 = vmatmul.f32.gmra.mxu0 %v2504
      %v4073 = vpop.f32.mrf.mxu0
      %v4074 = vadd.f32 %v1291, %v4073
      %4075 = vmatmul.f32.gmra.mxu0 %v2507
      %v4076 = vpop.f32.mrf.mxu0
      %v4077 = vadd.f32 %v1296, %v4076
      %4078 = vmatmul.f32.gmra.mxu0 %v2510
      %v4079 = vpop.f32.mrf.mxu0
      %v4080 = vadd.f32 %v1301, %v4079
      %4081 = vmatmul.f32.gmra.mxu0 %v2513
      %v4082 = vpop.f32.mrf.mxu0
      %v4083 = vadd.f32 %v1306, %v4082
      %4084 = vmatmul.f32.gmra.mxu0 %v2516
      %v4085 = vpop.f32.mrf.mxu0
      %v4086 = vadd.f32 %v1311, %v4085
      %4087 = vmatmul.f32.gmra.mxu0 %v2519
      %v4088 = vpop.f32.mrf.mxu0
      %v4089 = vadd.f32 %v1316, %v4088
      %4090 = vmatmul.f32.gmra.mxu0 %v2522
      %v4091 = vpop.f32.mrf.mxu0
      %v4092 = vadd.f32 %v1321, %v4091
      %4093 = vmatmul.f32.gmra.mxu0 %v2525
      %v4094 = vpop.f32.mrf.mxu0
      %v4095 = vadd.f32 %v1326, %v4094
      %4096 = vmatmul.f32.gmra.mxu0 %v2528
      %v4097 = vpop.f32.mrf.mxu0
      %v4098 = vadd.f32 %v1331, %v4097
      %4099 = vmatmul.f32.gmra.mxu0 %v2531
      %v4100 = vpop.f32.mrf.mxu0
      %v4101 = vadd.f32 %v1336, %v4100
      %4102 = vmatmul.f32.gmra.mxu0 %v2534
      %v4103 = vpop.f32.mrf.mxu0
      %v4104 = vadd.f32 %v1341, %v4103
      %4105 = vmatmul.f32.gmra.mxu0 %v2537
      %v4106 = vpop.f32.mrf.mxu0
      %v4107 = vadd.f32 %v1346, %v4106
      %4108 = vmatmul.f32.gmra.mxu0 %v2540
      %v4109 = vpop.f32.mrf.mxu0
      %v4110 = vadd.f32 %v1351, %v4109
      %4111 = vmatmul.f32.gmra.mxu0 %v2543
      %v4112 = vpop.f32.mrf.mxu0
      %v4113 = vadd.f32 %v1356, %v4112
      %4114 = vmatmul.f32.gmra.mxu0 %v2546
      %v4115 = vpop.f32.mrf.mxu0
      %v4116 = vadd.f32 %v1361, %v4115
      %4117 = vmatmul.f32.gmra.mxu0 %v2549
      %v4118 = vpop.f32.mrf.mxu0
      %v4119 = vadd.f32 %v1366, %v4118
      %4120 = vmatmul.f32.gmra.mxu0 %v2552
      %v4121 = vpop.f32.mrf.mxu0
      %v4122 = vadd.f32 %v1371, %v4121
      %4123 = vmatmul.f32.gmra.mxu0 %v2555
      %v4124 = vpop.f32.mrf.mxu0
      %v4125 = vadd.f32 %v1376, %v4124
      %4126 = vmatmul.f32.gmra.mxu0 %v2558
      %v4127 = vpop.f32.mrf.mxu0
      %v4128 = vadd.f32 %v1381, %v4127
      %4129 = vmatmul.f32.gmra.mxu0 %v2561
      %v4130 = vpop.f32.mrf.mxu0
      %v4131 = vadd.f32 %v1386, %v4130
      %4132 = vmatmul.f32.gmra.mxu0 %v2564
      %v4133 = vpop.f32.mrf.mxu0
      %v4134 = vadd.f32 %v1391, %v4133
      %4135 = vmatmul.f32.gmra.mxu0 %v2567
      %v4136 = vpop.f32.mrf.mxu0
      %v4137 = vadd.f32 %v1396, %v4136
      %4138 = vmatmul.f32.gmra.mxu0 %v2570
      %v4139 = vpop.f32.mrf.mxu0
      %v4140 = vadd.f32 %v1401, %v4139
      %4141 = vmatmul.f32.gmra.mxu0 %v2573
      %v4142 = vpop.f32.mrf.mxu0
      %v4143 = vadd.f32 %v1406, %v4142
      %4144 = vmatmul.f32.gmra.mxu0 %v2576
      %v4145 = vpop.f32.mrf.mxu0
      %v4146 = vadd.f32 %v1411, %v4145
      %4147 = vmatmul.f32.gmra.mxu0 %v2579
      %v4148 = vpop.f32.mrf.mxu0
      %v4149 = vadd.f32 %v1416, %v4148
      %4150 = vmatmul.f32.gmra.mxu0 %v2582
      %v4151 = vpop.f32.mrf.mxu0
      %v4152 = vadd.f32 %v1421, %v4151
      %4153 = vmatmul.f32.gmra.mxu0 %v2585
      %v4154 = vpop.f32.mrf.mxu0
      %v4155 = vadd.f32 %v1426, %v4154
      %4156 = vmatmul.f32.gmra.mxu0 %v2588
      %v4157 = vpop.f32.mrf.mxu0
      %v4158 = vadd.f32 %v1431, %v4157
      %4159 = vmatmul.f32.gmra.mxu0 %v2591
      %v4160 = vpop.f32.mrf.mxu0
      %v4161 = vadd.f32 %v1436, %v4160
      %4162 = vmatmul.f32.gmra.mxu0 %v2594
      %v4163 = vpop.f32.mrf.mxu0
      %v4164 = vadd.f32 %v1441, %v4163
      %4165 = vmatmul.f32.gmra.mxu0 %v2597
      %v4166 = vpop.f32.mrf.mxu0
      %v4167 = vadd.f32 %v1446, %v4166
      %4168 = vmatmul.f32.gmra.mxu0 %v2600
      %v4169 = vpop.f32.mrf.mxu0
      %v4170 = vadd.f32 %v1451, %v4169
      %4171 = vmatmul.f32.gmra.mxu0 %v2603
      %v4172 = vpop.f32.mrf.mxu0
      %v4173 = vadd.f32 %v1456, %v4172
      %4174 = vmatmul.f32.gmra.mxu0 %v2606
      %v4175 = vpop.f32.mrf.mxu0
      %v4176 = vadd.f32 %v1461, %v4175
      %4177 = vmatmul.f32.gmra.mxu0 %v2609
      %v4178 = vpop.f32.mrf.mxu0
      %v4179 = vadd.f32 %v1466, %v4178
      %4180 = vmatmul.f32.gmra.mxu0 %v2612
      %v4181 = vpop.f32.mrf.mxu0
      %v4182 = vadd.f32 %v1471, %v4181
      %4183 = vmatmul.f32.gmra.mxu0 %v2615
      %v4184 = vpop.f32.mrf.mxu0
      %v4185 = vadd.f32 %v1476, %v4184
      %4186 = vmatmul.f32.gmra.mxu0 %v2618
      %v4187 = vpop.f32.mrf.mxu0
      %v4188 = vadd.f32 %v1481, %v4187
      %4189 = vmatmul.f32.gmra.mxu0 %v2621
      %v4190 = vpop.f32.mrf.mxu0
      %v4191 = vadd.f32 %v1486, %v4190
      %4192 = vmatmul.f32.gmra.mxu0 %v2624
      %v4193 = vpop.f32.mrf.mxu0
      %v4194 = vadd.f32 %v1491, %v4193
      %4195 = vmatmul.f32.gmra.mxu0 %v2627
      %v4196 = vpop.f32.mrf.mxu0
      %v4197 = vadd.f32 %v1496, %v4196
      %4198 = vmatmul.f32.gmra.mxu0 %v2630
      %v4199 = vpop.f32.mrf.mxu0
      %v4200 = vadd.f32 %v1501, %v4199
      %4201 = vmatmul.f32.gmra.mxu0 %v2633
      %v4202 = vpop.f32.mrf.mxu0
      %v4203 = vadd.f32 %v1506, %v4202
      %4204 = vmatmul.f32.gmra.mxu0 %v2636
      %v4205 = vpop.f32.mrf.mxu0
      %v4206 = vadd.f32 %v1511, %v4205
      %4207 = vmatmul.f32.gmra.mxu0 %v2639
      %v4208 = vpop.f32.mrf.mxu0
      %v4209 = vadd.f32 %v1516, %v4208
      %4210 = vmatmul.f32.gmra.mxu0 %v2642
      %v4211 = vpop.f32.mrf.mxu0
      %v4212 = vadd.f32 %v1521, %v4211
      %4213 = vmatmul.f32.gmra.mxu0 %v2645
      %v4214 = vpop.f32.mrf.mxu0
      %v4215 = vadd.f32 %v1526, %v4214
      %4216 = vmatmul.f32.gmra.mxu0 %v2648
      %v4217 = vpop.f32.mrf.mxu0
      %v4218 = vadd.f32 %v1531, %v4217
      %4219 = vmatmul.f32.gmra.mxu0 %v2651
      %v4220 = vpop.f32.mrf.mxu0
      %v4221 = vadd.f32 %v1536, %v4220
      %4222 = vmatmul.f32.gmra.mxu0 %v2654
      %v4223 = vpop.f32.mrf.mxu0
      %v4224 = vadd.f32 %v1541, %v4223
      %4225 = vmatmul.f32.gmra.mxu0 %v2657
      %v4226 = vpop.f32.mrf.mxu0
      %v4227 = vadd.f32 %v1546, %v4226
      %4228 = vmatmul.f32.gmra.mxu0 %v2660
      %v4229 = vpop.f32.mrf.mxu0
      %v4230 = vadd.f32 %v1551, %v4229
      %4231 = vmatmul.f32.gmra.mxu0 %v2663
      %v4232 = vpop.f32.mrf.mxu0
      %v4233 = vadd.f32 %v1556, %v4232
      %4234 = vmatmul.f32.gmra.mxu0 %v2666
      %v4235 = vpop.f32.mrf.mxu0
      %v4236 = vadd.f32 %v1561, %v4235
      %4237 = vmatmul.f32.gmra.mxu0 %v2669
      %v4238 = vpop.f32.mrf.mxu0
      %v4239 = vadd.f32 %v1566, %v4238
      %4240 = vmatmul.f32.gmra.mxu0 %v2672
      %v4241 = vpop.f32.mrf.mxu0
      %v4242 = vadd.f32 %v1571, %v4241
      %4243 = vmatmul.f32.gmra.mxu0 %v2675
      %v4244 = vpop.f32.mrf.mxu0
      %v4245 = vadd.f32 %v1576, %v4244
      %4246 = vmatmul.f32.gmra.mxu0 %v2678
      %v4247 = vpop.f32.mrf.mxu0
      %v4248 = vadd.f32 %v1581, %v4247
      %4249 = vmatmul.f32.gmra.mxu0 %v2681
      %v4250 = vpop.f32.mrf.mxu0
      %v4251 = vadd.f32 %v1586, %v4250
      %4252 = vmatmul.f32.gmra.mxu0 %v2684
      %v4253 = vpop.f32.mrf.mxu0
      %v4254 = vadd.f32 %v1591, %v4253
      %4255 = vmatmul.f32.gmra.mxu0 %v2687
      %v4256 = vpop.f32.mrf.mxu0
      %v4257 = vadd.f32 %v1596, %v4256
      %4258 = vmatmul.f32.gmra.mxu0 %v2690
      %v4259 = vpop.f32.mrf.mxu0
      %v4260 = vadd.f32 %v1601, %v4259
      %4261 = vmatmul.f32.gmra.mxu0 %v2693
      %v4262 = vpop.f32.mrf.mxu0
      %v4263 = vadd.f32 %v1606, %v4262
      %4264 = vmatmul.f32.gmra.mxu0 %v2696
      %v4265 = vpop.f32.mrf.mxu0
      %v4266 = vadd.f32 %v1611, %v4265
      %4267 = vmatmul.f32.gmra.mxu0 %v2699
      %v4268 = vpop.f32.mrf.mxu0
      %v4269 = vadd.f32 %v1616, %v4268
      %4270 = vmatmul.f32.gmra.mxu0 %v2702
      %v4271 = vpop.f32.mrf.mxu0
      %v4272 = vadd.f32 %v1621, %v4271
      %4273 = vmatmul.f32.gmra.mxu0 %v2705
      %v4274 = vpop.f32.mrf.mxu0
      %v4275 = vadd.f32 %v1626, %v4274
      %4276 = vmatmul.f32.gmra.mxu0 %v2708
      %v4277 = vpop.f32.mrf.mxu0
      %v4278 = vadd.f32 %v1631, %v4277
      %4279 = vmatmul.f32.gmra.mxu0 %v2711
      %v4280 = vpop.f32.mrf.mxu0
      %v4281 = vadd.f32 %v1636, %v4280
      %4282 = vmatmul.f32.gmra.mxu0 %v2714
      %v4283 = vpop.f32.mrf.mxu0
      %v4284 = vadd.f32 %v1641, %v4283
      %4285 = vmatmul.f32.gmra.mxu0 %v2717
      %v4286 = vpop.f32.mrf.mxu0
      %v4287 = vadd.f32 %v1646, %v4286
      %4288 = vmatmul.f32.gmra.mxu0 %v2720
      %v4289 = vpop.f32.mrf.mxu0
      %v4290 = vadd.f32 %v1651, %v4289
      %4291 = vmatmul.f32.gmra.mxu0 %v2723
      %v4292 = vpop.f32.mrf.mxu0
      %v4293 = vadd.f32 %v1656, %v4292
      %4294 = vmatmul.f32.gmra.mxu0 %v2726
      %v4295 = vpop.f32.mrf.mxu0
      %v4296 = vadd.f32 %v1661, %v4295
      %4297 = vmatmul.f32.gmra.mxu0 %v2729
      %v4298 = vpop.f32.mrf.mxu0
      %v4299 = vadd.f32 %v1666, %v4298
      %4300 = vmatmul.f32.gmra.mxu0 %v2732
      %v4301 = vpop.f32.mrf.mxu0
      %v4302 = vadd.f32 %v1671, %v4301
      %4303 = vmatmul.f32.gmra.mxu0 %v2735
      %v4304 = vpop.f32.mrf.mxu0
      %v4305 = vadd.f32 %v1676, %v4304
      %4306 = vmatmul.f32.gmra.mxu0 %v2738
      %v4307 = vpop.f32.mrf.mxu0
      %v4308 = vadd.f32 %v1681, %v4307
      %4309 = vmatmul.f32.gmra.mxu0 %v2741
      %v4310 = vpop.f32.mrf.mxu0
      %v4311 = vadd.f32 %v1686, %v4310
      %4312 = vmatmul.f32.gmra.mxu0 %v2744
      %v4313 = vpop.f32.mrf.mxu0
      %v4314 = vadd.f32 %v1691, %v4313
      %4315 = vmatmul.f32.gmra.mxu0 %v2747
      %v4316 = vpop.f32.mrf.mxu0
      %v4317 = vadd.f32 %v1696, %v4316
      %4318 = vmatmul.f32.gmra.mxu0 %v2750
      %v4319 = vpop.f32.mrf.mxu0
      %v4320 = vadd.f32 %v1701, %v4319
      %4321 = vmatmul.f32.gmra.mxu0 %v2753
      %v4322 = vpop.f32.mrf.mxu0
      %v4323 = vadd.f32 %v1706, %v4322
      %4324 = vmatmul.f32.gmra.mxu0 %v2756
      %v4325 = vpop.f32.mrf.mxu0
      %v4326 = vadd.f32 %v1711, %v4325
      %4327 = vmatmul.f32.gmra.mxu0 %v2759
      %v4328 = vpop.f32.mrf.mxu0
      %v4329 = vadd.f32 %v1716, %v4328
      %4330 = vmatmul.f32.gmra.mxu0 %v2762
      %v4331 = vpop.f32.mrf.mxu0
      %v4332 = vadd.f32 %v1721, %v4331
      %4333 = vmatmul.f32.gmra.mxu0 %v2765
      %v4334 = vpop.f32.mrf.mxu0
      %v4335 = vadd.f32 %v1726, %v4334
      %4336 = vmatmul.f32.gmra.mxu0 %v2768
      %v4337 = vpop.f32.mrf.mxu0
      %v4338 = vadd.f32 %v1731, %v4337
      %4339 = vmatmul.f32.gmra.mxu0 %v2771
      %v4340 = vpop.f32.mrf.mxu0
      %v4341 = vadd.f32 %v1736, %v4340
      %4342 = vmatmul.f32.gmra.mxu0 %v2774
      %v4343 = vpop.f32.mrf.mxu0
      %v4344 = vadd.f32 %v1741, %v4343
      %4345 = vmatmul.f32.gmra.mxu0 %v2777
      %v4346 = vpop.f32.mrf.mxu0
      %v4347 = vadd.f32 %v1746, %v4346
      %4348 = vmatmul.f32.gmra.mxu0 %v2780
      %v4349 = vpop.f32.mrf.mxu0
      %v4350 = vadd.f32 %v1751, %v4349
      %4351 = vmatmul.f32.gmra.mxu0 %v2783
      %v4352 = vpop.f32.mrf.mxu0
      %v4353 = vadd.f32 %v1756, %v4352
      %4354 = vmatmul.f32.gmra.mxu0 %v2786
      %v4355 = vpop.f32.mrf.mxu0
      %v4356 = vadd.f32 %v1761, %v4355
      %4357 = vmatmul.f32.gmra.mxu0 %v2789
      %v4358 = vpop.f32.mrf.mxu0
      %v4359 = vadd.f32 %v1766, %v4358
      %4360 = vmatmul.f32.gmra.mxu0 %v2792
      %v4361 = vpop.f32.mrf.mxu0
      %v4362 = vadd.f32 %v1771, %v4361
      %4363 = vmatmul.f32.gmra.mxu0 %v2795
      %v4364 = vpop.f32.mrf.mxu0
      %v4365 = vadd.f32 %v1776, %v4364
      %4366 = vmatmul.f32.gmra.mxu0 %v2798
      %v4367 = vpop.f32.mrf.mxu0
      %v4368 = vadd.f32 %v1781, %v4367
      %4369 = vmatmul.f32.gmra.mxu0 %v2801
      %v4370 = vpop.f32.mrf.mxu0
      %v4371 = vadd.f32 %v1786, %v4370
      %4372 = vmatmul.f32.gmra.mxu0 %v2804
      %v4373 = vpop.f32.mrf.mxu0
      %v4374 = vadd.f32 %v1791, %v4373
      %4375 = vmatmul.f32.gmra.mxu0 %v2807
      %v4376 = vpop.f32.mrf.mxu0
      %v4377 = vadd.f32 %v1796, %v4376
      %4378 = vmatmul.f32.gmra.mxu0 %v2810
      %v4379 = vpop.f32.mrf.mxu0
      %v4380 = vadd.f32 %v1801, %v4379
      %4381 = vmatmul.f32.gmra.mxu0 %v2813
      %v4382 = vpop.f32.mrf.mxu0
      %v4383 = vadd.f32 %v1806, %v4382
      %4384 = vmatmul.f32.gmra.mxu0 %v2816
      %v4385 = vpop.f32.mrf.mxu0
      %v4386 = vadd.f32 %v1811, %v4385
      %4387 = vmatmul.f32.gmra.mxu0 %v2819
      %v4388 = vpop.f32.mrf.mxu0
      %v4389 = vadd.f32 %v1816, %v4388
      %4390 = vmatmul.f32.gmra.mxu0 %v2822
      %v4391 = vpop.f32.mrf.mxu0
      %v4392 = vadd.f32 %v1821, %v4391
      %4393 = vmatmul.f32.gmra.mxu0 %v2825
      %v4394 = vpop.f32.mrf.mxu0
      %v4395 = vadd.f32 %v1826, %v4394
      %4396 = vmatmul.f32.gmra.mxu0 %v2828
      %v4397 = vpop.f32.mrf.mxu0
      %v4398 = vadd.f32 %v1831, %v4397
      %4399 = vmatmul.f32.gmra.mxu0 %v2831
      %v4400 = vpop.f32.mrf.mxu0
      %v4401 = vadd.f32 %v1836, %v4400
      %4402 = vmatmul.f32.gmra.mxu0 %v2834
      %v4403 = vpop.f32.mrf.mxu0
      %v4404 = vadd.f32 %v1841, %v4403
      %4405 = vmatmul.f32.gmra.mxu0 %v2837
      %v4406 = vpop.f32.mrf.mxu0
      %v4407 = vadd.f32 %v1846, %v4406
      %4408 = vmatmul.f32.gmra.mxu0 %v2840
      %v4409 = vpop.f32.mrf.mxu0
      %v4410 = vadd.f32 %v1851, %v4409
      %4411 = vmatmul.f32.gmra.mxu0 %v2843
      %v4412 = vpop.f32.mrf.mxu0
      %v4413 = vadd.f32 %v1856, %v4412
      %4414 = vmatmul.f32.gmra.mxu0 %v2846
      %v4415 = vpop.f32.mrf.mxu0
      %v4416 = vadd.f32 %v1861, %v4415
      %4417 = vmatmul.f32.gmra.mxu0 %v2849
      %v4418 = vpop.f32.mrf.mxu0
      %v4419 = vadd.f32 %v1866, %v4418
      %4420 = vmatmul.f32.gmra.mxu0 %v2852
      %v4421 = vpop.f32.mrf.mxu0
      %v4422 = vadd.f32 %v1871, %v4421
      %4423 = vmatmul.f32.gmra.mxu0 %v2855
      %v4424 = vpop.f32.mrf.mxu0
      %v4425 = vadd.f32 %v1876, %v4424
      %4426 = vmatmul.f32.gmra.mxu0 %v2858
      %v4427 = vpop.f32.mrf.mxu0
      %v4428 = vadd.f32 %v1881, %v4427
      %4429 = vmatmul.f32.gmra.mxu0 %v2861
      %v4430 = vpop.f32.mrf.mxu0
      %v4431 = vadd.f32 %v1886, %v4430
      %4432 = vmatmul.f32.gmra.mxu0 %v2864
      %v4433 = vpop.f32.mrf.mxu0
      %v4434 = vadd.f32 %v1891, %v4433
      %4435 = vmatmul.f32.gmra.mxu0 %v2867
      %v4436 = vpop.f32.mrf.mxu0
      %v4437 = vadd.f32 %v1896, %v4436
      %4438 = vmatmul.f32.gmra.mxu0 %v2870
      %v4439 = vpop.f32.mrf.mxu0
      %v4440 = vadd.f32 %v1901, %v4439
      %4441 = vmatmul.f32.gmra.mxu0 %v2873
      %v4442 = vpop.f32.mrf.mxu0
      %v4443 = vadd.f32 %v1906, %v4442
      %4444 = vmatmul.f32.gmra.mxu0 %v2876
      %v4445 = vpop.f32.mrf.mxu0
      %v4446 = vadd.f32 %v1911, %v4445
      %4447 = vmatmul.f32.gmra.mxu0 %v2879
      %v4448 = vpop.f32.mrf.mxu0
      %v4449 = vadd.f32 %v1916, %v4448
      %4450 = vmatmul.f32.gmra.mxu0 %v2882
      %v4451 = vpop.f32.mrf.mxu0
      %v4452 = vadd.f32 %v1921, %v4451
      %4453 = vmatmul.f32.gmra.mxu0 %v2885
      %v4454 = vpop.f32.mrf.mxu0
      %v4455 = vadd.f32 %v1926, %v4454
      %4456 = vmatmul.f32.gmra.mxu0 %v2888
      %v4457 = vpop.f32.mrf.mxu0
      %v4458 = vadd.f32 %v1931, %v4457
      %4459 = vmatmul.f32.gmra.mxu0 %v2891
      %v4460 = vpop.f32.mrf.mxu0
      %v4461 = vadd.f32 %v1936, %v4460
      %4462 = vmatmul.f32.gmra.mxu0 %v2894
      %v4463 = vpop.f32.mrf.mxu0
      %v4464 = vadd.f32 %v1941, %v4463
      %4465 = vmatmul.f32.gmra.mxu0 %v2897
      %v4466 = vpop.f32.mrf.mxu0
      %v4467 = vadd.f32 %v1946, %v4466
      %4468 = vmatmul.f32.gmra.mxu0 %v2900
      %v4469 = vpop.f32.mrf.mxu0
      %v4470 = vadd.f32 %v1951, %v4469
      %4471 = vmatmul.f32.gmra.mxu0 %v2903
      %v4472 = vpop.f32.mrf.mxu0
      %v4473 = vadd.f32 %v1956, %v4472
      %4474 = vmatmul.f32.gmra.mxu0 %v2906
      %v4475 = vpop.f32.mrf.mxu0
      %v4476 = vadd.f32 %v1961, %v4475
      %4477 = vmatmul.f32.gmra.mxu0 %v2909
      %v4478 = vpop.f32.mrf.mxu0
      %v4479 = vadd.f32 %v1966, %v4478
      %4480 = vmatmul.f32.gmra.mxu0 %v2912
      %v4481 = vpop.f32.mrf.mxu0
      %v4482 = vadd.f32 %v1971, %v4481
      %4483 = vmatmul.f32.gmra.mxu0 %v2915
      %v4484 = vpop.f32.mrf.mxu0
      %v4485 = vadd.f32 %v1976, %v4484
      %4486 = vmatmul.f32.gmra.mxu0 %v2918
      %v4487 = vpop.f32.mrf.mxu0
      %v4488 = vadd.f32 %v1981, %v4487
      %4489 = vmatmul.f32.gmra.mxu0 %v2921
      %v4490 = vpop.f32.mrf.mxu0
      %v4491 = vadd.f32 %v1986, %v4490
      %4492 = vmatmul.f32.gmra.mxu0 %v2924
      %v4493 = vpop.f32.mrf.mxu0
      %v4494 = vadd.f32 %v1991, %v4493
      %4495 = vmatmul.f32.gmra.mxu0 %v2927
      %v4496 = vpop.f32.mrf.mxu0
      %v4497 = vadd.f32 %v1996, %v4496
      %4498 = vmatmul.f32.gmra.mxu0 %v2930
      %v4499 = vpop.f32.mrf.mxu0
      %v4500 = vadd.f32 %v2001, %v4499
      %4501 = vmatmul.f32.gmra.mxu0 %v2933
      %v4502 = vpop.f32.mrf.mxu0
      %v4503 = vadd.f32 %v2006, %v4502
      %4504 = vmatmul.f32.gmra.mxu0 %v2936
      %v4505 = vpop.f32.mrf.mxu0
      %v4506 = vadd.f32 %v2011, %v4505
      %4507 = vmatmul.f32.gmra.mxu0 %v2939
      %v4508 = vpop.f32.mrf.mxu0
      %v4509 = vadd.f32 %v2016, %v4508
      %4510 = vmatmul.f32.gmra.mxu0 %v2942
      %v4511 = vpop.f32.mrf.mxu0
      %v4512 = vadd.f32 %v2021, %v4511
      %4513 = vmatmul.f32.gmra.mxu0 %v2945
      %v4514 = vpop.f32.mrf.mxu0
      %v4515 = vadd.f32 %v2026, %v4514
      %4516 = vmatmul.f32.gmra.mxu0 %v2948
      %v4517 = vpop.f32.mrf.mxu0
      %v4518 = vadd.f32 %v2031, %v4517
      %4519 = vmatmul.f32.gmra.mxu0 %v2951
      %v4520 = vpop.f32.mrf.mxu0
      %v4521 = vadd.f32 %v2036, %v4520
      %4522 = vmatmul.f32.gmra.mxu0 %v2954
      %v4523 = vpop.f32.mrf.mxu0
      %v4524 = vadd.f32 %v2041, %v4523
      %4525 = vmatmul.f32.gmra.mxu0 %v2957
      %v4526 = vpop.f32.mrf.mxu0
      %v4527 = vadd.f32 %v2046, %v4526
      %4528 = vmatmul.f32.gmra.mxu0 %v2960
      %v4529 = vpop.f32.mrf.mxu0
      %v4530 = vadd.f32 %v2051, %v4529
      %4531 = vmatmul.f32.gmra.mxu0 %v2963
      %v4532 = vpop.f32.mrf.mxu0
      %v4533 = vadd.f32 %v2056, %v4532
      %4534 = vmatmul.f32.gmra.mxu0 %v2966
      %v4535 = vpop.f32.mrf.mxu0
      %v4536 = vadd.f32 %v2061, %v4535
      %4537 = vmatmul.f32.gmra.mxu0 %v2969
      %v4538 = vpop.f32.mrf.mxu0
      %v4539 = vadd.f32 %v2066, %v4538
      %4540 = vmatmul.f32.gmra.mxu0 %v2972
      %v4541 = vpop.f32.mrf.mxu0
      %v4542 = vadd.f32 %v2071, %v4541
      %4543 = vmatmul.f32.gmra.mxu0 %v2975
      %v4544 = vpop.f32.mrf.mxu0
      %v4545 = vadd.f32 %v2076, %v4544
      %4546 = vmatmul.f32.gmra.mxu0 %v2978
      %v4547 = vpop.f32.mrf.mxu0
      %v4548 = vadd.f32 %v2081, %v4547
      %4549 = vmatmul.f32.gmra.mxu0 %v2981
      %v4550 = vpop.f32.mrf.mxu0
      %v4551 = vadd.f32 %v2086, %v4550
      %4552 = vmatmul.f32.gmra.mxu0 %v2984
      %v4553 = vpop.f32.mrf.mxu0
      %v4554 = vadd.f32 %v2091, %v4553
      %4555 = vmatmul.f32.gmra.mxu0 %v2987
      %v4556 = vpop.f32.mrf.mxu0
      %v4557 = vadd.f32 %v2096, %v4556
      %4558 = vmatmul.f32.gmra.mxu0 %v2990
      %v4559 = vpop.f32.mrf.mxu0
      %v4560 = vadd.f32 %v2101, %v4559
      %4561 = vmatmul.f32.gmra.mxu0 %v2993
      %v4562 = vpop.f32.mrf.mxu0
      %v4563 = vadd.f32 %v2106, %v4562
      %4564 = vmatmul.f32.gmra.mxu0 %v2996
      %v4565 = vpop.f32.mrf.mxu0
      %v4566 = vadd.f32 %v2111, %v4565
      %4567 = vmatmul.f32.gmra.mxu0 %v2999
      %v4568 = vpop.f32.mrf.mxu0
      %v4569 = vadd.f32 %v2116, %v4568
      %4570 = vmatmul.f32.gmra.mxu0 %v3002
      %v4571 = vpop.f32.mrf.mxu0
      %v4572 = vadd.f32 %v2121, %v4571
      %4573 = vmatmul.f32.gmra.mxu0 %v3005
      %v4574 = vpop.f32.mrf.mxu0
      %v4575 = vadd.f32 %v2126, %v4574
      %4576 = vmatmul.f32.gmra.mxu0 %v3008
      %v4577 = vpop.f32.mrf.mxu0
      %v4578 = vadd.f32 %v2131, %v4577
      %4579 = vmatmul.f32.gmra.mxu0 %v3011
      %v4580 = vpop.f32.mrf.mxu0
      %v4581 = vadd.f32 %v2136, %v4580
      %4582 = vmatmul.f32.gmra.mxu0 %v3014
      %v4583 = vpop.f32.mrf.mxu0
      %v4584 = vadd.f32 %v2141, %v4583
      %4585 = vmatmul.f32.gmra.mxu0 %v3017
      %v4586 = vpop.f32.mrf.mxu0
      %v4587 = vadd.f32 %v2146, %v4586
      %4588 = vmatmul.f32.gmra.mxu0 %v3020
      %v4589 = vpop.f32.mrf.mxu0
      %v4590 = vadd.f32 %v2151, %v4589
      %4591 = vmatmul.f32.gmra.mxu0 %v3023
      %v4592 = vpop.f32.mrf.mxu0
      %v4593 = vadd.f32 %v2156, %v4592
      %4594 = vmatmul.f32.gmra.mxu0 %v3026
      %v4595 = vpop.f32.mrf.mxu0
      %v4596 = vadd.f32 %v2161, %v4595
      %4597 = vmatmul.f32.gmra.mxu0 %v3029
      %v4598 = vpop.f32.mrf.mxu0
      %v4599 = vadd.f32 %v2166, %v4598
      %4600 = vmatmul.f32.gmra.mxu0 %v3032
      %v4601 = vpop.f32.mrf.mxu0
      %v4602 = vadd.f32 %v2171, %v4601
      %4603 = vmatmul.f32.gmra.mxu0 %v3035
      %v4604 = vpop.f32.mrf.mxu0
      %v4605 = vadd.f32 %v2176, %v4604
      %4606 = vmatmul.f32.gmra.mxu0 %v3038
      %v4607 = vpop.f32.mrf.mxu0
      %v4608 = vadd.f32 %v2181, %v4607
      %4609 = vmatmul.f32.gmra.mxu0 %v3041
      %v4610 = vpop.f32.mrf.mxu0
      %v4611 = vadd.f32 %v2186, %v4610
      %4612 = vmatmul.f32.gmra.mxu0 %v3044
      %v4613 = vpop.f32.mrf.mxu0
      %v4614 = vadd.f32 %v2191, %v4613
      %4615 = vmatmul.f32.gmra.mxu0 %v3047
      %v4616 = vpop.f32.mrf.mxu0
      %v4617 = vadd.f32 %v2196, %v4616
      %4618 = vmatmul.f32.gmra.mxu0 %v3050
      %v4619 = vpop.f32.mrf.mxu0
      %v4620 = vadd.f32 %v2201, %v4619
      %4621 = vmatmul.f32.gmra.mxu0 %v3053
      %v4622 = vpop.f32.mrf.mxu0
      %v4623 = vadd.f32 %v2206, %v4622
      %4624 = vmatmul.f32.gmra.mxu0 %v3056
      %v4625 = vpop.f32.mrf.mxu0
      %v4626 = vadd.f32 %v2211, %v4625
      %4627 = vmatmul.f32.gmra.mxu0 %v3059
      %v4628 = vpop.f32.mrf.mxu0
      %v4629 = vadd.f32 %v2216, %v4628
      %4630 = vmatmul.f32.gmra.mxu0 %v3062
      %v4631 = vpop.f32.mrf.mxu0
      %v4632 = vadd.f32 %v2221, %v4631
      %4633 = vmatmul.f32.gmra.mxu0 %v3065
      %v4634 = vpop.f32.mrf.mxu0
      %v4635 = vadd.f32 %v2226, %v4634
      %4636 = vmatmul.f32.gmra.mxu0 %v3068
      %v4637 = vpop.f32.mrf.mxu0
      %v4638 = vadd.f32 %v2231, %v4637
      %4639 = vmatmul.f32.gmra.mxu0 %v3071
      %v4640 = vpop.f32.mrf.mxu0
      %v4641 = vadd.f32 %v2236, %v4640
      %4642 = vmatmul.f32.gmra.mxu0 %v3074
      %v4643 = vpop.f32.mrf.mxu0
      %v4644 = vadd.f32 %v2241, %v4643
      %4645 = vmatmul.f32.gmra.mxu0 %v3077
      %v4646 = vpop.f32.mrf.mxu0
      %v4647 = vadd.f32 %v2246, %v4646
      %4648 = vmatmul.f32.gmra.mxu0 %v3080
      %v4649 = vpop.f32.mrf.mxu0
      %v4650 = vadd.f32 %v2251, %v4649
      %4651 = vmatmul.f32.gmra.mxu0 %v3083
      %v4652 = vpop.f32.mrf.mxu0
      %v4653 = vadd.f32 %v2256, %v4652
      %4654 = vmatmul.f32.gmra.mxu0 %v3086
      %v4655 = vpop.f32.mrf.mxu0
      %v4656 = vadd.f32 %v2261, %v4655
      %4657 = vmatmul.f32.gmra.mxu0 %v3089
      %v4658 = vpop.f32.mrf.mxu0
      %v4659 = vadd.f32 %v2266, %v4658
      %4660 = vmatmul.f32.gmra.mxu0 %v3092
      %v4661 = vpop.f32.mrf.mxu0
      %v4662 = vadd.f32 %v2271, %v4661
      %4663 = vmatmul.f32.gmra.mxu0 %v3095
      %v4664 = vpop.f32.mrf.mxu0
      %v4665 = vadd.f32 %v2276, %v4664
      %4666 = vmatmul.f32.gmra.mxu0 %v3098
      %v4667 = vpop.f32.mrf.mxu0
      %v4668 = vadd.f32 %v2281, %v4667
      %4669 = vmatmul.f32.gmra.mxu0 %v3101
      %v4670 = vpop.f32.mrf.mxu0
      %v4671 = vadd.f32 %v2286, %v4670
      %4672 = vmatmul.f32.gmra.mxu0 %v3104
      %v4673 = vpop.f32.mrf.mxu0
      %v4674 = vadd.f32 %v2291, %v4673
      %4675 = vmatmul.f32.gmra.mxu0 %v3107
      %v4676 = vpop.f32.mrf.mxu0
      %v4677 = vadd.f32 %v2296, %v4676
      %4678 = vmatmul.f32.gmra.mxu0 %v3110
      %v4679 = vpop.f32.mrf.mxu0
      %v4680 = vadd.f32 %v2301, %v4679
      %4681 = vmatmul.f32.gmra.mxu0 %v3113
      %v4682 = vpop.f32.mrf.mxu0
      %v4683 = vadd.f32 %v2306, %v4682
      %4684 = vmatmul.f32.gmra.mxu0 %v3116
      %v4685 = vpop.f32.mrf.mxu0
      %v4686 = vadd.f32 %v2311, %v4685
      %4687 = vmatmul.f32.gmra.mxu0 %v3119
      %v4688 = vpop.f32.mrf.mxu0
      %v4689 = vadd.f32 %v2316, %v4688
      %4690 = vmatmul.f32.gmra.mxu0 %v3122
      %v4691 = vpop.f32.mrf.mxu0
      %v4692 = vadd.f32 %v2321, %v4691
      %4693 = vmatmul.f32.gmra.mxu0 %v3125
      %v4694 = vpop.f32.mrf.mxu0
      %v4695 = vadd.f32 %v2326, %v4694
      %4696 = vmatmul.f32.gmra.mxu0 %v3128
      %v4697 = vpop.f32.mrf.mxu0
      %v4698 = vadd.f32 %v2331, %v4697
      %4699 = vmatmul.f32.gmra.mxu0 %v3131
      %v4700 = vpop.f32.mrf.mxu0
      %v4701 = vadd.f32 %v2336, %v4700
      %4702 = vmatmul.f32.gmra.mxu0 %v3134
      %v4703 = vpop.f32.mrf.mxu0
      %v4704 = vadd.f32 %v2341, %v4703
      %4705 = vmatmul.f32.gmra.mxu0 %v3137
      %v4706 = vpop.f32.mrf.mxu0
      %v4707 = vadd.f32 %v2346, %v4706
      %4708 = vmatmul.f32.gmra.mxu0 %v3140
      %v4709 = vpop.f32.mrf.mxu0
      %v4710 = vadd.f32 %v2351, %v4709
      %4711 = vmatmul.f32.gmra.mxu0 %v3143
      %v4712 = vpop.f32.mrf.mxu0
      %v4713 = vadd.f32 %v2356, %v4712
      %4714 = vmatmul.f32.gmra.mxu0 %v3146
      %v4715 = vpop.f32.mrf.mxu0
      %v4716 = vadd.f32 %v2361, %v4715
      %4717 = vmatmul.f32.gmra.mxu0 %v3149
      %v4718 = vpop.f32.mrf.mxu0
      %v4719 = vadd.f32 %v2366, %v4718
      %4720 = vmatmul.f32.gmra.mxu0 %v3152
      %v4721 = vpop.f32.mrf.mxu0
      %v4722 = vadd.f32 %v2371, %v4721
      %4723 = vmatmul.f32.gmra.mxu0 %v3155
      %v4724 = vpop.f32.mrf.mxu0
      %v4725 = vadd.f32 %v2376, %v4724
      %4726 = vmatmul.f32.gmra.mxu0 %v3158
      %v4727 = vpop.f32.mrf.mxu0
      %v4728 = vadd.f32 %v2381, %v4727
      %4729 = vmatmul.f32.gmra.mxu0 %v3161
      %v4730 = vpop.f32.mrf.mxu0
      %v4731 = vadd.f32 %v2386, %v4730
      %4732 = vmatmul.f32.gmra.mxu0 %v3164
      %v4733 = vpop.f32.mrf.mxu0
      %v4734 = vadd.f32 %v2391, %v4733
      %4735 = vmatmul.f32.gmra.mxu0 %v3167
      %v4736 = vpop.f32.mrf.mxu0
      %v4737 = vadd.f32 %v2396, %v4736
      %4738 = vmatmul.f32.gmra.mxu0 %v3170
      %v4739 = vpop.f32.mrf.mxu0
      %v4740 = vadd.f32 %v2401, %v4739
      %4741 = vdwg.mxu0
      %4742 = vst [vmem:[%s421] sm:$0xff] %v3190
      %4743 = vst [vmem:[%s421 + $0x8] sm:$0xff] %v3975
      %4744 = vst [vmem:[%s421 + $0x10] sm:$0xff] %v3193
      %4745 = vst [vmem:[%s421 + $0x18] sm:$0xff] %v3978
      %4746 = vst [vmem:[%s421 + $0x20] sm:$0xff] %v3196
      %4747 = vst [vmem:[%s421 + $0x28] sm:$0xff] %v3981
      %4748 = vst [vmem:[%s421 + $0x30] sm:$0xff] %v3199
      %4749 = vst [vmem:[%s421 + $0x38] sm:$0xff] %v3984
      %4750 = vst [vmem:[%s421 + $0x40] sm:$0xff] %v3202
      %4751 = vst [vmem:[%s421 + $0x48] sm:$0xff] %v3987
      %4752 = vst [vmem:[%s421 + $0x50] sm:$0xff] %v3205
      %4753 = vst [vmem:[%s421 + $0x58] sm:$0xff] %v3990
      %4754 = vst [vmem:[%s421 + $0x60] sm:$0xff] %v3208
      %4755 = vst [vmem:[%s421 + $0x68] sm:$0xff] %v3993
      %4756 = vst [vmem:[%s421 + $0x70] sm:$0xff] %v3211
      %4757 = vst [vmem:[%s421 + $0x78] sm:$0xff] %v3996
      %4758 = vst [vmem:[%s421 + $0x80] sm:$0xff] %v3214
      %4759 = vst [vmem:[%s421 + $0x88] sm:$0xff] %v3999
      %4760 = vst [vmem:[%s421 + $0x90] sm:$0xff] %v3217
      %4761 = vst [vmem:[%s421 + $0x98] sm:$0xff] %v4002
      %4762 = vst [vmem:[%s421 + $0xa0] sm:$0xff] %v3220
      %4763 = vst [vmem:[%s421 + $0xa8] sm:$0xff] %v4005
      %4764 = vst [vmem:[%s421 + $0xb0] sm:$0xff] %v3223
      %4765 = vst [vmem:[%s421 + $0xb8] sm:$0xff] %v4008
      %4766 = vst [vmem:[%s421 + $0xc0] sm:$0xff] %v3226
      %4767 = vst [vmem:[%s421 + $0xc8] sm:$0xff] %v4011
      %4768 = vst [vmem:[%s421 + $0xd0] sm:$0xff] %v3229
      %4769 = vst [vmem:[%s421 + $0xd8] sm:$0xff] %v4014
      %4770 = vst [vmem:[%s421 + $0xe0] sm:$0xff] %v3232
      %4771 = vst [vmem:[%s421 + $0xe8] sm:$0xff] %v4017
      %4772 = vst [vmem:[%s421 + $0xf0] sm:$0xff] %v3235
      %4773 = vst [vmem:[%s421 + $0xf8] sm:$0xff] %v4020
      %4774 = vst [vmem:[%s421 + $0x100] sm:$0xff] %v3238
      %4775 = vst [vmem:[%s421 + $0x108] sm:$0xff] %v4023
      %4776 = vst [vmem:[%s421 + $0x110] sm:$0xff] %v3241
      %4777 = vst [vmem:[%s421 + $0x118] sm:$0xff] %v4026
      %4778 = vst [vmem:[%s421 + $0x120] sm:$0xff] %v3244
      %4779 = vst [vmem:[%s421 + $0x128] sm:$0xff] %v4029
      %4780 = vst [vmem:[%s421 + $0x130] sm:$0xff] %v3247
      %4781 = vst [vmem:[%s421 + $0x138] sm:$0xff] %v4032
      %4782 = vst [vmem:[%s421 + $0x140] sm:$0xff] %v3250
      %4783 = vst [vmem:[%s421 + $0x148] sm:$0xff] %v4035
      %4784 = vst [vmem:[%s421 + $0x150] sm:$0xff] %v3253
      %4785 = vst [vmem:[%s421 + $0x158] sm:$0xff] %v4038
      %4786 = vst [vmem:[%s421 + $0x160] sm:$0xff] %v3256
      %4787 = vst [vmem:[%s421 + $0x168] sm:$0xff] %v4041
      %4788 = vst [vmem:[%s421 + $0x170] sm:$0xff] %v3259
      %4789 = vst [vmem:[%s421 + $0x178] sm:$0xff] %v4044
      %4790 = vst [vmem:[%s421 + $0x180] sm:$0xff] %v3262
      %4791 = vst [vmem:[%s421 + $0x188] sm:$0xff] %v4047
      %4792 = vst [vmem:[%s421 + $0x190] sm:$0xff] %v3265
      %4793 = vst [vmem:[%s421 + $0x198] sm:$0xff] %v4050
      %4794 = vst [vmem:[%s421 + $0x1a0] sm:$0xff] %v3268
      %4795 = vst [vmem:[%s421 + $0x1a8] sm:$0xff] %v4053
      %4796 = vst [vmem:[%s421 + $0x1b0] sm:$0xff] %v3271
      %4797 = vst [vmem:[%s421 + $0x1b8] sm:$0xff] %v4056
      %4798 = vst [vmem:[%s421 + $0x1c0] sm:$0xff] %v3274
      %4799 = vst [vmem:[%s421 + $0x1c8] sm:$0xff] %v4059
      %4800 = vst [vmem:[%s421 + $0x1d0] sm:$0xff] %v3277
      %4801 = vst [vmem:[%s421 + $0x1d8] sm:$0xff] %v4062
      %4802 = vst [vmem:[%s421 + $0x1e0] sm:$0xff] %v3280
      %4803 = vst [vmem:[%s421 + $0x1e8] sm:$0xff] %v4065
      %4804 = vst [vmem:[%s421 + $0x1f0] sm:$0xff] %v3283
      %4805 = vst [vmem:[%s421 + $0x1f8] sm:$0xff] %v4068
      %4806 = vst [vmem:[%s421 + $0x200] sm:$0xff] %v3286
      %4807 = vst [vmem:[%s421 + $0x208] sm:$0xff] %v4071
      %4808 = vst [vmem:[%s421 + $0x210] sm:$0xff] %v3289
      %4809 = vst [vmem:[%s421 + $0x218] sm:$0xff] %v4074
      %4810 = vst [vmem:[%s421 + $0x220] sm:$0xff] %v3292
      %4811 = vst [vmem:[%s421 + $0x228] sm:$0xff] %v4077
      %4812 = vst [vmem:[%s421 + $0x230] sm:$0xff] %v3295
      %4813 = vst [vmem:[%s421 + $0x238] sm:$0xff] %v4080
      %4814 = vst [vmem:[%s421 + $0x240] sm:$0xff] %v3298
      %4815 = vst [vmem:[%s421 + $0x248] sm:$0xff] %v4083
      %4816 = vst [vmem:[%s421 + $0x250] sm:$0xff] %v3301
      %4817 = vst [vmem:[%s421 + $0x258] sm:$0xff] %v4086
      %4818 = vst [vmem:[%s421 + $0x260] sm:$0xff] %v3304
      %4819 = vst [vmem:[%s421 + $0x268] sm:$0xff] %v4089
      %4820 = vst [vmem:[%s421 + $0x270] sm:$0xff] %v3307
      %4821 = vst [vmem:[%s421 + $0x278] sm:$0xff] %v4092
      %4822 = vst [vmem:[%s421 + $0x280] sm:$0xff] %v3310
      %4823 = vst [vmem:[%s421 + $0x288] sm:$0xff] %v4095
      %4824 = vst [vmem:[%s421 + $0x290] sm:$0xff] %v3313
      %4825 = vst [vmem:[%s421 + $0x298] sm:$0xff] %v4098
      %4826 = vst [vmem:[%s421 + $0x2a0] sm:$0xff] %v3316
      %4827 = vst [vmem:[%s421 + $0x2a8] sm:$0xff] %v4101
      %4828 = vst [vmem:[%s421 + $0x2b0] sm:$0xff] %v3319
      %4829 = vst [vmem:[%s421 + $0x2b8] sm:$0xff] %v4104
      %4830 = vst [vmem:[%s421 + $0x2c0] sm:$0xff] %v3322
      %4831 = vst [vmem:[%s421 + $0x2c8] sm:$0xff] %v4107
      %4832 = vst [vmem:[%s421 + $0x2d0] sm:$0xff] %v3325
      %4833 = vst [vmem:[%s421 + $0x2d8] sm:$0xff] %v4110
      %4834 = vst [vmem:[%s421 + $0x2e0] sm:$0xff] %v3328
      %4835 = vst [vmem:[%s421 + $0x2e8] sm:$0xff] %v4113
      %4836 = vst [vmem:[%s421 + $0x2f0] sm:$0xff] %v3331
      %4837 = vst [vmem:[%s421 + $0x2f8] sm:$0xff] %v4116
      %4838 = vst [vmem:[%s421 + $0x300] sm:$0xff] %v3334
      %4839 = vst [vmem:[%s421 + $0x308] sm:$0xff] %v4119
      %4840 = vst [vmem:[%s421 + $0x310] sm:$0xff] %v3337
      %4841 = vst [vmem:[%s421 + $0x318] sm:$0xff] %v4122
      %4842 = vst [vmem:[%s421 + $0x320] sm:$0xff] %v3340
      %4843 = vst [vmem:[%s421 + $0x328] sm:$0xff] %v4125
      %4844 = vst [vmem:[%s421 + $0x330] sm:$0xff] %v3343
      %4845 = vst [vmem:[%s421 + $0x338] sm:$0xff] %v4128
      %4846 = vst [vmem:[%s421 + $0x340] sm:$0xff] %v3346
      %4847 = vst [vmem:[%s421 + $0x348] sm:$0xff] %v4131
      %4848 = vst [vmem:[%s421 + $0x350] sm:$0xff] %v3349
      %4849 = vst [vmem:[%s421 + $0x358] sm:$0xff] %v4134
      %4850 = vst [vmem:[%s421 + $0x360] sm:$0xff] %v3352
      %4851 = vst [vmem:[%s421 + $0x368] sm:$0xff] %v4137
      %4852 = vst [vmem:[%s421 + $0x370] sm:$0xff] %v3355
      %4853 = vst [vmem:[%s421 + $0x378] sm:$0xff] %v4140
      %4854 = vst [vmem:[%s421 + $0x380] sm:$0xff] %v3358
      %4855 = vst [vmem:[%s421 + $0x388] sm:$0xff] %v4143
      %4856 = vst [vmem:[%s421 + $0x390] sm:$0xff] %v3361
      %4857 = vst [vmem:[%s421 + $0x398] sm:$0xff] %v4146
      %4858 = vst [vmem:[%s421 + $0x3a0] sm:$0xff] %v3364
      %4859 = vst [vmem:[%s421 + $0x3a8] sm:$0xff] %v4149
      %4860 = vst [vmem:[%s421 + $0x3b0] sm:$0xff] %v3367
      %4861 = vst [vmem:[%s421 + $0x3b8] sm:$0xff] %v4152
      %4862 = vst [vmem:[%s421 + $0x3c0] sm:$0xff] %v3370
      %4863 = vst [vmem:[%s421 + $0x3c8] sm:$0xff] %v4155
      %4864 = vst [vmem:[%s421 + $0x3d0] sm:$0xff] %v3373
      %4865 = vst [vmem:[%s421 + $0x3d8] sm:$0xff] %v4158
      %4866 = vst [vmem:[%s421 + $0x3e0] sm:$0xff] %v3376
      %4867 = vst [vmem:[%s421 + $0x3e8] sm:$0xff] %v4161
      %4868 = vst [vmem:[%s421 + $0x3f0] sm:$0xff] %v3379
      %4869 = vst [vmem:[%s421 + $0x3f8] sm:$0xff] %v4164
      %4870 = vst [vmem:[%s421 + $0x400] sm:$0xff] %v3382
      %4871 = vst [vmem:[%s421 + $0x408] sm:$0xff] %v4167
      %4872 = vst [vmem:[%s421 + $0x410] sm:$0xff] %v3385
      %4873 = vst [vmem:[%s421 + $0x418] sm:$0xff] %v4170
      %4874 = vst [vmem:[%s421 + $0x420] sm:$0xff] %v3388
      %4875 = vst [vmem:[%s421 + $0x428] sm:$0xff] %v4173
      %4876 = vst [vmem:[%s421 + $0x430] sm:$0xff] %v3391
      %4877 = vst [vmem:[%s421 + $0x438] sm:$0xff] %v4176
      %4878 = vst [vmem:[%s421 + $0x440] sm:$0xff] %v3394
      %4879 = vst [vmem:[%s421 + $0x448] sm:$0xff] %v4179
      %4880 = vst [vmem:[%s421 + $0x450] sm:$0xff] %v3397
      %4881 = vst [vmem:[%s421 + $0x458] sm:$0xff] %v4182
      %4882 = vst [vmem:[%s421 + $0x460] sm:$0xff] %v3400
      %4883 = vst [vmem:[%s421 + $0x468] sm:$0xff] %v4185
      %4884 = vst [vmem:[%s421 + $0x470] sm:$0xff] %v3403
      %4885 = vst [vmem:[%s421 + $0x478] sm:$0xff] %v4188
      %4886 = vst [vmem:[%s421 + $0x480] sm:$0xff] %v3406
      %4887 = vst [vmem:[%s421 + $0x488] sm:$0xff] %v4191
      %4888 = vst [vmem:[%s421 + $0x490] sm:$0xff] %v3409
      %4889 = vst [vmem:[%s421 + $0x498] sm:$0xff] %v4194
      %4890 = vst [vmem:[%s421 + $0x4a0] sm:$0xff] %v3412
      %4891 = vst [vmem:[%s421 + $0x4a8] sm:$0xff] %v4197
      %4892 = vst [vmem:[%s421 + $0x4b0] sm:$0xff] %v3415
      %4893 = vst [vmem:[%s421 + $0x4b8] sm:$0xff] %v4200
      %4894 = vst [vmem:[%s421 + $0x4c0] sm:$0xff] %v3418
      %4895 = vst [vmem:[%s421 + $0x4c8] sm:$0xff] %v4203
      %4896 = vst [vmem:[%s421 + $0x4d0] sm:$0xff] %v3421
      %4897 = vst [vmem:[%s421 + $0x4d8] sm:$0xff] %v4206
      %4898 = vst [vmem:[%s421 + $0x4e0] sm:$0xff] %v3424
      %4899 = vst [vmem:[%s421 + $0x4e8] sm:$0xff] %v4209
      %4900 = vst [vmem:[%s421 + $0x4f0] sm:$0xff] %v3427
      %4901 = vst [vmem:[%s421 + $0x4f8] sm:$0xff] %v4212
      %4902 = vst [vmem:[%s421 + $0x500] sm:$0xff] %v3430
      %4903 = vst [vmem:[%s421 + $0x508] sm:$0xff] %v4215
      %4904 = vst [vmem:[%s421 + $0x510] sm:$0xff] %v3433
      %4905 = vst [vmem:[%s421 + $0x518] sm:$0xff] %v4218
      %4906 = vst [vmem:[%s421 + $0x520] sm:$0xff] %v3436
      %4907 = vst [vmem:[%s421 + $0x528] sm:$0xff] %v4221
      %4908 = vst [vmem:[%s421 + $0x530] sm:$0xff] %v3439
      %4909 = vst [vmem:[%s421 + $0x538] sm:$0xff] %v4224
      %4910 = vst [vmem:[%s421 + $0x540] sm:$0xff] %v3442
      %4911 = vst [vmem:[%s421 + $0x548] sm:$0xff] %v4227
      %4912 = vst [vmem:[%s421 + $0x550] sm:$0xff] %v3445
      %4913 = vst [vmem:[%s421 + $0x558] sm:$0xff] %v4230
      %4914 = vst [vmem:[%s421 + $0x560] sm:$0xff] %v3448
      %4915 = vst [vmem:[%s421 + $0x568] sm:$0xff] %v4233
      %4916 = vst [vmem:[%s421 + $0x570] sm:$0xff] %v3451
      %4917 = vst [vmem:[%s421 + $0x578] sm:$0xff] %v4236
      %4918 = vst [vmem:[%s421 + $0x580] sm:$0xff] %v3454
      %4919 = vst [vmem:[%s421 + $0x588] sm:$0xff] %v4239
      %4920 = vst [vmem:[%s421 + $0x590] sm:$0xff] %v3457
      %4921 = vst [vmem:[%s421 + $0x598] sm:$0xff] %v4242
      %4922 = vst [vmem:[%s421 + $0x5a0] sm:$0xff] %v3460
      %4923 = vst [vmem:[%s421 + $0x5a8] sm:$0xff] %v4245
      %4924 = vst [vmem:[%s421 + $0x5b0] sm:$0xff] %v3463
      %4925 = vst [vmem:[%s421 + $0x5b8] sm:$0xff] %v4248
      %4926 = vst [vmem:[%s421 + $0x5c0] sm:$0xff] %v3466
      %4927 = vst [vmem:[%s421 + $0x5c8] sm:$0xff] %v4251
      %4928 = vst [vmem:[%s421 + $0x5d0] sm:$0xff] %v3469
      %4929 = vst [vmem:[%s421 + $0x5d8] sm:$0xff] %v4254
      %4930 = vst [vmem:[%s421 + $0x5e0] sm:$0xff] %v3472
      %4931 = vst [vmem:[%s421 + $0x5e8] sm:$0xff] %v4257
      %4932 = vst [vmem:[%s421 + $0x5f0] sm:$0xff] %v3475
      %4933 = vst [vmem:[%s421 + $0x5f8] sm:$0xff] %v4260
      %4934 = vst [vmem:[%s421 + $0x600] sm:$0xff] %v3478
      %4935 = vst [vmem:[%s421 + $0x608] sm:$0xff] %v4263
      %4936 = vst [vmem:[%s421 + $0x610] sm:$0xff] %v3481
      %4937 = vst [vmem:[%s421 + $0x618] sm:$0xff] %v4266
      %4938 = vst [vmem:[%s421 + $0x620] sm:$0xff] %v3484
      %4939 = vst [vmem:[%s421 + $0x628] sm:$0xff] %v4269
      %4940 = vst [vmem:[%s421 + $0x630] sm:$0xff] %v3487
      %4941 = vst [vmem:[%s421 + $0x638] sm:$0xff] %v4272
      %4942 = vst [vmem:[%s421 + $0x640] sm:$0xff] %v3490
      %4943 = vst [vmem:[%s421 + $0x648] sm:$0xff] %v4275
      %4944 = vst [vmem:[%s421 + $0x650] sm:$0xff] %v3493
      %4945 = vst [vmem:[%s421 + $0x658] sm:$0xff] %v4278
      %4946 = vst [vmem:[%s421 + $0x660] sm:$0xff] %v3496
      %4947 = vst [vmem:[%s421 + $0x668] sm:$0xff] %v4281
      %4948 = vst [vmem:[%s421 + $0x670] sm:$0xff] %v3499
      %4949 = vst [vmem:[%s421 + $0x678] sm:$0xff] %v4284
      %4950 = vst [vmem:[%s421 + $0x680] sm:$0xff] %v3502
      %4951 = vst [vmem:[%s421 + $0x688] sm:$0xff] %v4287
      %4952 = vst [vmem:[%s421 + $0x690] sm:$0xff] %v3505
      %4953 = vst [vmem:[%s421 + $0x698] sm:$0xff] %v4290
      %4954 = vst [vmem:[%s421 + $0x6a0] sm:$0xff] %v3508
      %4955 = vst [vmem:[%s421 + $0x6a8] sm:$0xff] %v4293
      %4956 = vst [vmem:[%s421 + $0x6b0] sm:$0xff] %v3511
      %4957 = vst [vmem:[%s421 + $0x6b8] sm:$0xff] %v4296
      %4958 = vst [vmem:[%s421 + $0x6c0] sm:$0xff] %v3514
      %4959 = vst [vmem:[%s421 + $0x6c8] sm:$0xff] %v4299
      %4960 = vst [vmem:[%s421 + $0x6d0] sm:$0xff] %v3517
      %4961 = vst [vmem:[%s421 + $0x6d8] sm:$0xff] %v4302
      %4962 = vst [vmem:[%s421 + $0x6e0] sm:$0xff] %v3520
      %4963 = vst [vmem:[%s421 + $0x6e8] sm:$0xff] %v4305
      %4964 = vst [vmem:[%s421 + $0x6f0] sm:$0xff] %v3523
      %4965 = vst [vmem:[%s421 + $0x6f8] sm:$0xff] %v4308
      %4966 = vst [vmem:[%s421 + $0x700] sm:$0xff] %v3526
      %4967 = vst [vmem:[%s421 + $0x708] sm:$0xff] %v4311
      %4968 = vst [vmem:[%s421 + $0x710] sm:$0xff] %v3529
      %4969 = vst [vmem:[%s421 + $0x718] sm:$0xff] %v4314
      %4970 = vst [vmem:[%s421 + $0x720] sm:$0xff] %v3532
      %4971 = vst [vmem:[%s421 + $0x728] sm:$0xff] %v4317
      %4972 = vst [vmem:[%s421 + $0x730] sm:$0xff] %v3535
      %4973 = vst [vmem:[%s421 + $0x738] sm:$0xff] %v4320
      %4974 = vst [vmem:[%s421 + $0x740] sm:$0xff] %v3538
      %4975 = vst [vmem:[%s421 + $0x748] sm:$0xff] %v4323
      %4976 = vst [vmem:[%s421 + $0x750] sm:$0xff] %v3541
      %4977 = vst [vmem:[%s421 + $0x758] sm:$0xff] %v4326
      %4978 = vst [vmem:[%s421 + $0x760] sm:$0xff] %v3544
      %4979 = vst [vmem:[%s421 + $0x768] sm:$0xff] %v4329
      %4980 = vst [vmem:[%s421 + $0x770] sm:$0xff] %v3547
      %4981 = vst [vmem:[%s421 + $0x778] sm:$0xff] %v4332
      %4982 = vst [vmem:[%s421 + $0x780] sm:$0xff] %v3550
      %4983 = vst [vmem:[%s421 + $0x788] sm:$0xff] %v4335
      %4984 = vst [vmem:[%s421 + $0x790] sm:$0xff] %v3553
      %4985 = vst [vmem:[%s421 + $0x798] sm:$0xff] %v4338
      %4986 = vst [vmem:[%s421 + $0x7a0] sm:$0xff] %v3556
      %4987 = vst [vmem:[%s421 + $0x7a8] sm:$0xff] %v4341
      %4988 = vst [vmem:[%s421 + $0x7b0] sm:$0xff] %v3559
      %4989 = vst [vmem:[%s421 + $0x7b8] sm:$0xff] %v4344
      %4990 = vst [vmem:[%s421 + $0x7c0] sm:$0xff] %v3562
      %4991 = vst [vmem:[%s421 + $0x7c8] sm:$0xff] %v4347
      %4992 = vst [vmem:[%s421 + $0x7d0] sm:$0xff] %v3565
      %4993 = vst [vmem:[%s421 + $0x7d8] sm:$0xff] %v4350
      %4994 = vst [vmem:[%s421 + $0x7e0] sm:$0xff] %v3568
      %4995 = vst [vmem:[%s421 + $0x7e8] sm:$0xff] %v4353
      %4996 = vst [vmem:[%s421 + $0x7f0] sm:$0xff] %v3571
      %4997 = vst [vmem:[%s421 + $0x7f8] sm:$0xff] %v4356
      %4998 = vst [vmem:[%s421 + $0x800] sm:$0xff] %v3574
      %4999 = vst [vmem:[%s421 + $0x808] sm:$0xff] %v4359
      %5000 = vst [vmem:[%s421 + $0x810] sm:$0xff] %v3577
      %5001 = vst [vmem:[%s421 + $0x818] sm:$0xff] %v4362
      %5002 = vst [vmem:[%s421 + $0x820] sm:$0xff] %v3580
      %5003 = vst [vmem:[%s421 + $0x828] sm:$0xff] %v4365
      %5004 = vst [vmem:[%s421 + $0x830] sm:$0xff] %v3583
      %5005 = vst [vmem:[%s421 + $0x838] sm:$0xff] %v4368
      %5006 = vst [vmem:[%s421 + $0x840] sm:$0xff] %v3586
      %5007 = vst [vmem:[%s421 + $0x848] sm:$0xff] %v4371
      %5008 = vst [vmem:[%s421 + $0x850] sm:$0xff] %v3589
      %5009 = vst [vmem:[%s421 + $0x858] sm:$0xff] %v4374
      %5010 = vst [vmem:[%s421 + $0x860] sm:$0xff] %v3592
      %5011 = vst [vmem:[%s421 + $0x868] sm:$0xff] %v4377
      %5012 = vst [vmem:[%s421 + $0x870] sm:$0xff] %v3595
      %5013 = vst [vmem:[%s421 + $0x878] sm:$0xff] %v4380
      %5014 = vst [vmem:[%s421 + $0x880] sm:$0xff] %v3598
      %5015 = vst [vmem:[%s421 + $0x888] sm:$0xff] %v4383
      %5016 = vst [vmem:[%s421 + $0x890] sm:$0xff] %v3601
      %5017 = vst [vmem:[%s421 + $0x898] sm:$0xff] %v4386
      %5018 = vst [vmem:[%s421 + $0x8a0] sm:$0xff] %v3604
      %5019 = vst [vmem:[%s421 + $0x8a8] sm:$0xff] %v4389
      %5020 = vst [vmem:[%s421 + $0x8b0] sm:$0xff] %v3607
      %5021 = vst [vmem:[%s421 + $0x8b8] sm:$0xff] %v4392
      %5022 = vst [vmem:[%s421 + $0x8c0] sm:$0xff] %v3610
      %5023 = vst [vmem:[%s421 + $0x8c8] sm:$0xff] %v4395
      %5024 = vst [vmem:[%s421 + $0x8d0] sm:$0xff] %v3613
      %5025 = vst [vmem:[%s421 + $0x8d8] sm:$0xff] %v4398
      %5026 = vst [vmem:[%s421 + $0x8e0] sm:$0xff] %v3616
      %5027 = vst [vmem:[%s421 + $0x8e8] sm:$0xff] %v4401
      %5028 = vst [vmem:[%s421 + $0x8f0] sm:$0xff] %v3619
      %5029 = vst [vmem:[%s421 + $0x8f8] sm:$0xff] %v4404
      %5030 = vst [vmem:[%s421 + $0x900] sm:$0xff] %v3622
      %5031 = vst [vmem:[%s421 + $0x908] sm:$0xff] %v4407
      %5032 = vst [vmem:[%s421 + $0x910] sm:$0xff] %v3625
      %5033 = vst [vmem:[%s421 + $0x918] sm:$0xff] %v4410
      %5034 = vst [vmem:[%s421 + $0x920] sm:$0xff] %v3628
      %5035 = vst [vmem:[%s421 + $0x928] sm:$0xff] %v4413
      %5036 = vst [vmem:[%s421 + $0x930] sm:$0xff] %v3631
      %5037 = vst [vmem:[%s421 + $0x938] sm:$0xff] %v4416
      %5038 = vst [vmem:[%s421 + $0x940] sm:$0xff] %v3634
      %5039 = vst [vmem:[%s421 + $0x948] sm:$0xff] %v4419
      %5040 = vst [vmem:[%s421 + $0x950] sm:$0xff] %v3637
      %5041 = vst [vmem:[%s421 + $0x958] sm:$0xff] %v4422
      %5042 = vst [vmem:[%s421 + $0x960] sm:$0xff] %v3640
      %5043 = vst [vmem:[%s421 + $0x968] sm:$0xff] %v4425
      %5044 = vst [vmem:[%s421 + $0x970] sm:$0xff] %v3643
      %5045 = vst [vmem:[%s421 + $0x978] sm:$0xff] %v4428
      %5046 = vst [vmem:[%s421 + $0x980] sm:$0xff] %v3646
      %5047 = vst [vmem:[%s421 + $0x988] sm:$0xff] %v4431
      %5048 = vst [vmem:[%s421 + $0x990] sm:$0xff] %v3649
      %5049 = vst [vmem:[%s421 + $0x998] sm:$0xff] %v4434
      %5050 = vst [vmem:[%s421 + $0x9a0] sm:$0xff] %v3652
      %5051 = vst [vmem:[%s421 + $0x9a8] sm:$0xff] %v4437
      %5052 = vst [vmem:[%s421 + $0x9b0] sm:$0xff] %v3655
      %5053 = vst [vmem:[%s421 + $0x9b8] sm:$0xff] %v4440
      %5054 = vst [vmem:[%s421 + $0x9c0] sm:$0xff] %v3658
      %5055 = vst [vmem:[%s421 + $0x9c8] sm:$0xff] %v4443
      %5056 = vst [vmem:[%s421 + $0x9d0] sm:$0xff] %v3661
      %5057 = vst [vmem:[%s421 + $0x9d8] sm:$0xff] %v4446
      %5058 = vst [vmem:[%s421 + $0x9e0] sm:$0xff] %v3664
      %5059 = vst [vmem:[%s421 + $0x9e8] sm:$0xff] %v4449
      %5060 = vst [vmem:[%s421 + $0x9f0] sm:$0xff] %v3667
      %5061 = vst [vmem:[%s421 + $0x9f8] sm:$0xff] %v4452
      %5062 = vst [vmem:[%s421 + $0xa00] sm:$0xff] %v3670
      %5063 = vst [vmem:[%s421 + $0xa08] sm:$0xff] %v4455
      %5064 = vst [vmem:[%s421 + $0xa10] sm:$0xff] %v3673
      %5065 = vst [vmem:[%s421 + $0xa18] sm:$0xff] %v4458
      %5066 = vst [vmem:[%s421 + $0xa20] sm:$0xff] %v3676
      %5067 = vst [vmem:[%s421 + $0xa28] sm:$0xff] %v4461
      %5068 = vst [vmem:[%s421 + $0xa30] sm:$0xff] %v3679
      %5069 = vst [vmem:[%s421 + $0xa38] sm:$0xff] %v4464
      %5070 = vst [vmem:[%s421 + $0xa40] sm:$0xff] %v3682
      %5071 = vst [vmem:[%s421 + $0xa48] sm:$0xff] %v4467
      %5072 = vst [vmem:[%s421 + $0xa50] sm:$0xff] %v3685
      %5073 = vst [vmem:[%s421 + $0xa58] sm:$0xff] %v4470
      %5074 = vst [vmem:[%s421 + $0xa60] sm:$0xff] %v3688
      %5075 = vst [vmem:[%s421 + $0xa68] sm:$0xff] %v4473
      %5076 = vst [vmem:[%s421 + $0xa70] sm:$0xff] %v3691
      %5077 = vst [vmem:[%s421 + $0xa78] sm:$0xff] %v4476
      %5078 = vst [vmem:[%s421 + $0xa80] sm:$0xff] %v3694
      %5079 = vst [vmem:[%s421 + $0xa88] sm:$0xff] %v4479
      %5080 = vst [vmem:[%s421 + $0xa90] sm:$0xff] %v3697
      %5081 = vst [vmem:[%s421 + $0xa98] sm:$0xff] %v4482
      %5082 = vst [vmem:[%s421 + $0xaa0] sm:$0xff] %v3700
      %5083 = vst [vmem:[%s421 + $0xaa8] sm:$0xff] %v4485
      %5084 = vst [vmem:[%s421 + $0xab0] sm:$0xff] %v3703
      %5085 = vst [vmem:[%s421 + $0xab8] sm:$0xff] %v4488
      %5086 = vst [vmem:[%s421 + $0xac0] sm:$0xff] %v3706
      %5087 = vst [vmem:[%s421 + $0xac8] sm:$0xff] %v4491
      %5088 = vst [vmem:[%s421 + $0xad0] sm:$0xff] %v3709
      %5089 = vst [vmem:[%s421 + $0xad8] sm:$0xff] %v4494
      %5090 = vst [vmem:[%s421 + $0xae0] sm:$0xff] %v3712
      %5091 = vst [vmem:[%s421 + $0xae8] sm:$0xff] %v4497
      %5092 = vst [vmem:[%s421 + $0xaf0] sm:$0xff] %v3715
      %5093 = vst [vmem:[%s421 + $0xaf8] sm:$0xff] %v4500
      %5094 = vst [vmem:[%s421 + $0xb00] sm:$0xff] %v3718
      %5095 = vst [vmem:[%s421 + $0xb08] sm:$0xff] %v4503
      %5096 = vst [vmem:[%s421 + $0xb10] sm:$0xff] %v3721
      %5097 = vst [vmem:[%s421 + $0xb18] sm:$0xff] %v4506
      %5098 = vst [vmem:[%s421 + $0xb20] sm:$0xff] %v3724
      %5099 = vst [vmem:[%s421 + $0xb28] sm:$0xff] %v4509
      %5100 = vst [vmem:[%s421 + $0xb30] sm:$0xff] %v3727
      %5101 = vst [vmem:[%s421 + $0xb38] sm:$0xff] %v4512
      %5102 = vst [vmem:[%s421 + $0xb40] sm:$0xff] %v3730
      %5103 = vst [vmem:[%s421 + $0xb48] sm:$0xff] %v4515
      %5104 = vst [vmem:[%s421 + $0xb50] sm:$0xff] %v3733
      %5105 = vst [vmem:[%s421 + $0xb58] sm:$0xff] %v4518
      %5106 = vst [vmem:[%s421 + $0xb60] sm:$0xff] %v3736
      %5107 = vst [vmem:[%s421 + $0xb68] sm:$0xff] %v4521
      %5108 = vst [vmem:[%s421 + $0xb70] sm:$0xff] %v3739
      %5109 = vst [vmem:[%s421 + $0xb78] sm:$0xff] %v4524
      %5110 = vst [vmem:[%s421 + $0xb80] sm:$0xff] %v3742
      %5111 = vst [vmem:[%s421 + $0xb88] sm:$0xff] %v4527
      %5112 = vst [vmem:[%s421 + $0xb90] sm:$0xff] %v3745
      %5113 = vst [vmem:[%s421 + $0xb98] sm:$0xff] %v4530
      %5114 = vst [vmem:[%s421 + $0xba0] sm:$0xff] %v3748
      %5115 = vst [vmem:[%s421 + $0xba8] sm:$0xff] %v4533
      %5116 = vst [vmem:[%s421 + $0xbb0] sm:$0xff] %v3751
      %5117 = vst [vmem:[%s421 + $0xbb8] sm:$0xff] %v4536
      %5118 = vst [vmem:[%s421 + $0xbc0] sm:$0xff] %v3754
      %5119 = vst [vmem:[%s421 + $0xbc8] sm:$0xff] %v4539
      %5120 = vst [vmem:[%s421 + $0xbd0] sm:$0xff] %v3757
      %5121 = vst [vmem:[%s421 + $0xbd8] sm:$0xff] %v4542
      %5122 = vst [vmem:[%s421 + $0xbe0] sm:$0xff] %v3760
      %5123 = vst [vmem:[%s421 + $0xbe8] sm:$0xff] %v4545
      %5124 = vst [vmem:[%s421 + $0xbf0] sm:$0xff] %v3763
      %5125 = vst [vmem:[%s421 + $0xbf8] sm:$0xff] %v4548
      %5126 = vst [vmem:[%s421 + $0xc00] sm:$0xff] %v3766
      %5127 = vst [vmem:[%s421 + $0xc08] sm:$0xff] %v4551
      %5128 = vst [vmem:[%s421 + $0xc10] sm:$0xff] %v3769
      %5129 = vst [vmem:[%s421 + $0xc18] sm:$0xff] %v4554
      %5130 = vst [vmem:[%s421 + $0xc20] sm:$0xff] %v3772
      %5131 = vst [vmem:[%s421 + $0xc28] sm:$0xff] %v4557
      %5132 = vst [vmem:[%s421 + $0xc30] sm:$0xff] %v3775
      %5133 = vst [vmem:[%s421 + $0xc38] sm:$0xff] %v4560
      %5134 = vst [vmem:[%s421 + $0xc40] sm:$0xff] %v3778
      %5135 = vst [vmem:[%s421 + $0xc48] sm:$0xff] %v4563
      %5136 = vst [vmem:[%s421 + $0xc50] sm:$0xff] %v3781
      %5137 = vst [vmem:[%s421 + $0xc58] sm:$0xff] %v4566
      %5138 = vst [vmem:[%s421 + $0xc60] sm:$0xff] %v3784
      %5139 = vst [vmem:[%s421 + $0xc68] sm:$0xff] %v4569
      %5140 = vst [vmem:[%s421 + $0xc70] sm:$0xff] %v3787
      %5141 = vst [vmem:[%s421 + $0xc78] sm:$0xff] %v4572
      %5142 = vst [vmem:[%s421 + $0xc80] sm:$0xff] %v3790
      %5143 = vst [vmem:[%s421 + $0xc88] sm:$0xff] %v4575
      %5144 = vst [vmem:[%s421 + $0xc90] sm:$0xff] %v3793
      %5145 = vst [vmem:[%s421 + $0xc98] sm:$0xff] %v4578
      %5146 = vst [vmem:[%s421 + $0xca0] sm:$0xff] %v3796
      %5147 = vst [vmem:[%s421 + $0xca8] sm:$0xff] %v4581
      %5148 = vst [vmem:[%s421 + $0xcb0] sm:$0xff] %v3799
      %5149 = vst [vmem:[%s421 + $0xcb8] sm:$0xff] %v4584
      %5150 = vst [vmem:[%s421 + $0xcc0] sm:$0xff] %v3802
      %5151 = vst [vmem:[%s421 + $0xcc8] sm:$0xff] %v4587
      %5152 = vst [vmem:[%s421 + $0xcd0] sm:$0xff] %v3805
      %5153 = vst [vmem:[%s421 + $0xcd8] sm:$0xff] %v4590
      %5154 = vst [vmem:[%s421 + $0xce0] sm:$0xff] %v3808
      %5155 = vst [vmem:[%s421 + $0xce8] sm:$0xff] %v4593
      %5156 = vst [vmem:[%s421 + $0xcf0] sm:$0xff] %v3811
      %5157 = vst [vmem:[%s421 + $0xcf8] sm:$0xff] %v4596
      %5158 = vst [vmem:[%s421 + $0xd00] sm:$0xff] %v3814
      %5159 = vst [vmem:[%s421 + $0xd08] sm:$0xff] %v4599
      %5160 = vst [vmem:[%s421 + $0xd10] sm:$0xff] %v3817
      %5161 = vst [vmem:[%s421 + $0xd18] sm:$0xff] %v4602
      %5162 = vst [vmem:[%s421 + $0xd20] sm:$0xff] %v3820
      %5163 = vst [vmem:[%s421 + $0xd28] sm:$0xff] %v4605
      %5164 = vst [vmem:[%s421 + $0xd30] sm:$0xff] %v3823
      %5165 = vst [vmem:[%s421 + $0xd38] sm:$0xff] %v4608
      %5166 = vst [vmem:[%s421 + $0xd40] sm:$0xff] %v3826
      %5167 = vst [vmem:[%s421 + $0xd48] sm:$0xff] %v4611
      %5168 = vst [vmem:[%s421 + $0xd50] sm:$0xff] %v3829
      %5169 = vst [vmem:[%s421 + $0xd58] sm:$0xff] %v4614
      %5170 = vst [vmem:[%s421 + $0xd60] sm:$0xff] %v3832
      %5171 = vst [vmem:[%s421 + $0xd68] sm:$0xff] %v4617
      %5172 = vst [vmem:[%s421 + $0xd70] sm:$0xff] %v3835
      %5173 = vst [vmem:[%s421 + $0xd78] sm:$0xff] %v4620
      %5174 = vst [vmem:[%s421 + $0xd80] sm:$0xff] %v3838
      %5175 = vst [vmem:[%s421 + $0xd88] sm:$0xff] %v4623
      %5176 = vst [vmem:[%s421 + $0xd90] sm:$0xff] %v3841
      %5177 = vst [vmem:[%s421 + $0xd98] sm:$0xff] %v4626
      %5178 = vst [vmem:[%s421 + $0xda0] sm:$0xff] %v3844
      %5179 = vst [vmem:[%s421 + $0xda8] sm:$0xff] %v4629
      %5180 = vst [vmem:[%s421 + $0xdb0] sm:$0xff] %v3847
      %5181 = vst [vmem:[%s421 + $0xdb8] sm:$0xff] %v4632
      %5182 = vst [vmem:[%s421 + $0xdc0] sm:$0xff] %v3850
      %5183 = vst [vmem:[%s421 + $0xdc8] sm:$0xff] %v4635
      %5184 = vst [vmem:[%s421 + $0xdd0] sm:$0xff] %v3853
      %5185 = vst [vmem:[%s421 + $0xdd8] sm:$0xff] %v4638
      %5186 = vst [vmem:[%s421 + $0xde0] sm:$0xff] %v3856
      %5187 = vst [vmem:[%s421 + $0xde8] sm:$0xff] %v4641
      %5188 = vst [vmem:[%s421 + $0xdf0] sm:$0xff] %v3859
      %5189 = vst [vmem:[%s421 + $0xdf8] sm:$0xff] %v4644
      %5190 = vst [vmem:[%s421 + $0xe00] sm:$0xff] %v3862
      %5191 = vst [vmem:[%s421 + $0xe08] sm:$0xff] %v4647
      %5192 = vst [vmem:[%s421 + $0xe10] sm:$0xff] %v3865
      %5193 = vst [vmem:[%s421 + $0xe18] sm:$0xff] %v4650
      %5194 = vst [vmem:[%s421 + $0xe20] sm:$0xff] %v3868
      %5195 = vst [vmem:[%s421 + $0xe28] sm:$0xff] %v4653
      %5196 = vst [vmem:[%s421 + $0xe30] sm:$0xff] %v3871
      %5197 = vst [vmem:[%s421 + $0xe38] sm:$0xff] %v4656
      %5198 = vst [vmem:[%s421 + $0xe40] sm:$0xff] %v3874
      %5199 = vst [vmem:[%s421 + $0xe48] sm:$0xff] %v4659
      %5200 = vst [vmem:[%s421 + $0xe50] sm:$0xff] %v3877
      %5201 = vst [vmem:[%s421 + $0xe58] sm:$0xff] %v4662
      %5202 = vst [vmem:[%s421 + $0xe60] sm:$0xff] %v3880
      %5203 = vst [vmem:[%s421 + $0xe68] sm:$0xff] %v4665
      %5204 = vst [vmem:[%s421 + $0xe70] sm:$0xff] %v3883
      %5205 = vst [vmem:[%s421 + $0xe78] sm:$0xff] %v4668
      %5206 = vst [vmem:[%s421 + $0xe80] sm:$0xff] %v3886
      %5207 = vst [vmem:[%s421 + $0xe88] sm:$0xff] %v4671
      %5208 = vst [vmem:[%s421 + $0xe90] sm:$0xff] %v3889
      %5209 = vst [vmem:[%s421 + $0xe98] sm:$0xff] %v4674
      %5210 = vst [vmem:[%s421 + $0xea0] sm:$0xff] %v3892
      %5211 = vst [vmem:[%s421 + $0xea8] sm:$0xff] %v4677
      %5212 = vst [vmem:[%s421 + $0xeb0] sm:$0xff] %v3895
      %5213 = vst [vmem:[%s421 + $0xeb8] sm:$0xff] %v4680
      %5214 = vst [vmem:[%s421 + $0xec0] sm:$0xff] %v3898
      %5215 = vst [vmem:[%s421 + $0xec8] sm:$0xff] %v4683
      %5216 = vst [vmem:[%s421 + $0xed0] sm:$0xff] %v3901
      %5217 = vst [vmem:[%s421 + $0xed8] sm:$0xff] %v4686
      %5218 = vst [vmem:[%s421 + $0xee0] sm:$0xff] %v3904
      %5219 = vst [vmem:[%s421 + $0xee8] sm:$0xff] %v4689
      %5220 = vst [vmem:[%s421 + $0xef0] sm:$0xff] %v3907
      %5221 = vst [vmem:[%s421 + $0xef8] sm:$0xff] %v4692
      %5222 = vst [vmem:[%s421 + $0xf00] sm:$0xff] %v3910
      %5223 = vst [vmem:[%s421 + $0xf08] sm:$0xff] %v4695
      %5224 = vst [vmem:[%s421 + $0xf10] sm:$0xff] %v3913
      %5225 = vst [vmem:[%s421 + $0xf18] sm:$0xff] %v4698
      %5226 = vst [vmem:[%s421 + $0xf20] sm:$0xff] %v3916
      %5227 = vst [vmem:[%s421 + $0xf28] sm:$0xff] %v4701
      %5228 = vst [vmem:[%s421 + $0xf30] sm:$0xff] %v3919
      %5229 = vst [vmem:[%s421 + $0xf38] sm:$0xff] %v4704
      %5230 = vst [vmem:[%s421 + $0xf40] sm:$0xff] %v3922
      %5231 = vst [vmem:[%s421 + $0xf48] sm:$0xff] %v4707
      %5232 = vst [vmem:[%s421 + $0xf50] sm:$0xff] %v3925
      %5233 = vst [vmem:[%s421 + $0xf58] sm:$0xff] %v4710
      %5234 = vst [vmem:[%s421 + $0xf60] sm:$0xff] %v3928
      %5235 = vst [vmem:[%s421 + $0xf68] sm:$0xff] %v4713
      %5236 = vst [vmem:[%s421 + $0xf70] sm:$0xff] %v3931
      %5237 = vst [vmem:[%s421 + $0xf78] sm:$0xff] %v4716
      %5238 = vst [vmem:[%s421 + $0xf80] sm:$0xff] %v3934
      %5239 = vst [vmem:[%s421 + $0xf88] sm:$0xff] %v4719
      %5240 = vst [vmem:[%s421 + $0xf90] sm:$0xff] %v3937
      %5241 = vst [vmem:[%s421 + $0xf98] sm:$0xff] %v4722
      %5242 = vst [vmem:[%s421 + $0xfa0] sm:$0xff] %v3940
      %5243 = vst [vmem:[%s421 + $0xfa8] sm:$0xff] %v4725
      %5244 = vst [vmem:[%s421 + $0xfb0] sm:$0xff] %v3943
      %5245 = vst [vmem:[%s421 + $0xfb8] sm:$0xff] %v4728
      %5246 = vst [vmem:[%s421 + $0xfc0] sm:$0xff] %v3946
      %5247 = vst [vmem:[%s421 + $0xfc8] sm:$0xff] %v4731
      %5248 = vst [vmem:[%s421 + $0xfd0] sm:$0xff] %v3949
      %5249 = vst [vmem:[%s421 + $0xfd8] sm:$0xff] %v4734
      %5250 = vst [vmem:[%s421 + $0xfe0] sm:$0xff] %v3952
      %5251 = vst [vmem:[%s421 + $0xfe8] sm:$0xff] %v4737
      %5252 = vst [vmem:[%s421 + $0xff0] sm:$0xff] %v3955
      %5253 = vst [vmem:[%s421 + $0xff8] sm:$0xff] %v4740
      %v5254 = vmax.f32 %v3190, 0.0
      %v5255 = vmax.f32 %v3975, 0.0
      %v5256 = vmax.f32 %v3193, 0.0
      %v5257 = vmax.f32 %v3978, 0.0
      %v5258 = vmax.f32 %v3196, 0.0
      %v5259 = vmax.f32 %v3981, 0.0
      %v5260 = vmax.f32 %v3199, 0.0
      %v5261 = vmax.f32 %v3984, 0.0
      %v5262 = vmax.f32 %v3202, 0.0
      %v5263 = vmax.f32 %v3987, 0.0
      %v5264 = vmax.f32 %v3205, 0.0
      %v5265 = vmax.f32 %v3990, 0.0
      %v5266 = vmax.f32 %v3208, 0.0
      %v5267 = vmax.f32 %v3993, 0.0
      %v5268 = vmax.f32 %v3211, 0.0
      %v5269 = vmax.f32 %v3996, 0.0
      %v5270 = vmax.f32 %v3214, 0.0
      %v5271 = vmax.f32 %v3999, 0.0
      %v5272 = vmax.f32 %v3217, 0.0
      %v5273 = vmax.f32 %v4002, 0.0
      %v5274 = vmax.f32 %v3220, 0.0
      %v5275 = vmax.f32 %v4005, 0.0
      %v5276 = vmax.f32 %v3223, 0.0
      %v5277 = vmax.f32 %v4008, 0.0
      %v5278 = vmax.f32 %v3226, 0.0
      %v5279 = vmax.f32 %v4011, 0.0
      %v5280 = vmax.f32 %v3229, 0.0
      %v5281 = vmax.f32 %v4014, 0.0
      %v5282 = vmax.f32 %v3232, 0.0
      %v5283 = vmax.f32 %v4017, 0.0
      %v5284 = vmax.f32 %v3235, 0.0
      %v5285 = vmax.f32 %v4020, 0.0
      %v5286 = vmax.f32 %v3238, 0.0
      %v5287 = vmax.f32 %v4023, 0.0
      %v5288 = vmax.f32 %v3241, 0.0
      %v5289 = vmax.f32 %v4026, 0.0
      %v5290 = vmax.f32 %v3244, 0.0
      %v5291 = vmax.f32 %v4029, 0.0
      %v5292 = vmax.f32 %v3247, 0.0
      %v5293 = vmax.f32 %v4032, 0.0
      %v5294 = vmax.f32 %v3250, 0.0
      %v5295 = vmax.f32 %v4035, 0.0
      %v5296 = vmax.f32 %v3253, 0.0
      %v5297 = vmax.f32 %v4038, 0.0
      %v5298 = vmax.f32 %v3256, 0.0
      %v5299 = vmax.f32 %v4041, 0.0
      %v5300 = vmax.f32 %v3259, 0.0
      %v5301 = vmax.f32 %v4044, 0.0
      %v5302 = vmax.f32 %v3262, 0.0
      %v5303 = vmax.f32 %v4047, 0.0
      %v5304 = vmax.f32 %v3265, 0.0
      %v5305 = vmax.f32 %v4050, 0.0
      %v5306 = vmax.f32 %v3268, 0.0
      %v5307 = vmax.f32 %v4053, 0.0
      %v5308 = vmax.f32 %v3271, 0.0
      %v5309 = vmax.f32 %v4056, 0.0
      %v5310 = vmax.f32 %v3274, 0.0
      %v5311 = vmax.f32 %v4059, 0.0
      %v5312 = vmax.f32 %v3277, 0.0
      %v5313 = vmax.f32 %v4062, 0.0
      %v5314 = vmax.f32 %v3280, 0.0
      %v5315 = vmax.f32 %v4065, 0.0
      %v5316 = vmax.f32 %v3283, 0.0
      %v5317 = vmax.f32 %v4068, 0.0
      %v5318 = vmax.f32 %v3286, 0.0
      %v5319 = vmax.f32 %v4071, 0.0
      %v5320 = vmax.f32 %v3289, 0.0
      %v5321 = vmax.f32 %v4074, 0.0
      %v5322 = vmax.f32 %v3292, 0.0
      %v5323 = vmax.f32 %v4077, 0.0
      %v5324 = vmax.f32 %v3295, 0.0
      %v5325 = vmax.f32 %v4080, 0.0
      %v5326 = vmax.f32 %v3298, 0.0
      %v5327 = vmax.f32 %v4083, 0.0
      %v5328 = vmax.f32 %v3301, 0.0
      %v5329 = vmax.f32 %v4086, 0.0
      %v5330 = vmax.f32 %v3304, 0.0
      %v5331 = vmax.f32 %v4089, 0.0
      %v5332 = vmax.f32 %v3307, 0.0
      %v5333 = vmax.f32 %v4092, 0.0
      %v5334 = vmax.f32 %v3310, 0.0
      %v5335 = vmax.f32 %v4095, 0.0
      %v5336 = vmax.f32 %v3313, 0.0
      %v5337 = vmax.f32 %v4098, 0.0
      %v5338 = vmax.f32 %v3316, 0.0
      %v5339 = vmax.f32 %v4101, 0.0
      %v5340 = vmax.f32 %v3319, 0.0
      %v5341 = vmax.f32 %v4104, 0.0
      %v5342 = vmax.f32 %v3322, 0.0
      %v5343 = vmax.f32 %v4107, 0.0
      %v5344 = vmax.f32 %v3325, 0.0
      %v5345 = vmax.f32 %v4110, 0.0
      %v5346 = vmax.f32 %v3328, 0.0
      %v5347 = vmax.f32 %v4113, 0.0
      %v5348 = vmax.f32 %v3331, 0.0
      %v5349 = vmax.f32 %v4116, 0.0
      %v5350 = vmax.f32 %v3334, 0.0
      %v5351 = vmax.f32 %v4119, 0.0
      %v5352 = vmax.f32 %v3337, 0.0
      %v5353 = vmax.f32 %v4122, 0.0
      %v5354 = vmax.f32 %v3340, 0.0
      %v5355 = vmax.f32 %v4125, 0.0
      %v5356 = vmax.f32 %v3343, 0.0
      %v5357 = vmax.f32 %v4128, 0.0
      %v5358 = vmax.f32 %v3346, 0.0
      %v5359 = vmax.f32 %v4131, 0.0
      %v5360 = vmax.f32 %v3349, 0.0
      %v5361 = vmax.f32 %v4134, 0.0
      %v5362 = vmax.f32 %v3352, 0.0
      %v5363 = vmax.f32 %v4137, 0.0
      %v5364 = vmax.f32 %v3355, 0.0
      %v5365 = vmax.f32 %v4140, 0.0
      %v5366 = vmax.f32 %v3358, 0.0
      %v5367 = vmax.f32 %v4143, 0.0
      %v5368 = vmax.f32 %v3361, 0.0
      %v5369 = vmax.f32 %v4146, 0.0
      %v5370 = vmax.f32 %v3364, 0.0
      %v5371 = vmax.f32 %v4149, 0.0
      %v5372 = vmax.f32 %v3367, 0.0
      %v5373 = vmax.f32 %v4152, 0.0
      %v5374 = vmax.f32 %v3370, 0.0
      %v5375 = vmax.f32 %v4155, 0.0
      %v5376 = vmax.f32 %v3373, 0.0
      %v5377 = vmax.f32 %v4158, 0.0
      %v5378 = vmax.f32 %v3376, 0.0
      %v5379 = vmax.f32 %v4161, 0.0
      %v5380 = vmax.f32 %v3379, 0.0
      %v5381 = vmax.f32 %v4164, 0.0
      %v5382 = vmax.f32 %v3382, 0.0
      %v5383 = vmax.f32 %v4167, 0.0
      %v5384 = vmax.f32 %v3385, 0.0
      %v5385 = vmax.f32 %v4170, 0.0
      %v5386 = vmax.f32 %v3388, 0.0
      %v5387 = vmax.f32 %v4173, 0.0
      %v5388 = vmax.f32 %v3391, 0.0
      %v5389 = vmax.f32 %v4176, 0.0
      %v5390 = vmax.f32 %v3394, 0.0
      %v5391 = vmax.f32 %v4179, 0.0
      %v5392 = vmax.f32 %v3397, 0.0
      %v5393 = vmax.f32 %v4182, 0.0
      %v5394 = vmax.f32 %v3400, 0.0
      %v5395 = vmax.f32 %v4185, 0.0
      %v5396 = vmax.f32 %v3403, 0.0
      %v5397 = vmax.f32 %v4188, 0.0
      %v5398 = vmax.f32 %v3406, 0.0
      %v5399 = vmax.f32 %v4191, 0.0
      %v5400 = vmax.f32 %v3409, 0.0
      %v5401 = vmax.f32 %v4194, 0.0
      %v5402 = vmax.f32 %v3412, 0.0
      %v5403 = vmax.f32 %v4197, 0.0
      %v5404 = vmax.f32 %v3415, 0.0
      %v5405 = vmax.f32 %v4200, 0.0
      %v5406 = vmax.f32 %v3418, 0.0
      %v5407 = vmax.f32 %v4203, 0.0
      %v5408 = vmax.f32 %v3421, 0.0
      %v5409 = vmax.f32 %v4206, 0.0
      %v5410 = vmax.f32 %v3424, 0.0
      %v5411 = vmax.f32 %v4209, 0.0
      %v5412 = vmax.f32 %v3427, 0.0
      %v5413 = vmax.f32 %v4212, 0.0
      %v5414 = vmax.f32 %v3430, 0.0
      %v5415 = vmax.f32 %v4215, 0.0
      %v5416 = vmax.f32 %v3433, 0.0
      %v5417 = vmax.f32 %v4218, 0.0
      %v5418 = vmax.f32 %v3436, 0.0
      %v5419 = vmax.f32 %v4221, 0.0
      %v5420 = vmax.f32 %v3439, 0.0
      %v5421 = vmax.f32 %v4224, 0.0
      %v5422 = vmax.f32 %v3442, 0.0
      %v5423 = vmax.f32 %v4227, 0.0
      %v5424 = vmax.f32 %v3445, 0.0
      %v5425 = vmax.f32 %v4230, 0.0
      %v5426 = vmax.f32 %v3448, 0.0
      %v5427 = vmax.f32 %v4233, 0.0
      %v5428 = vmax.f32 %v3451, 0.0
      %v5429 = vmax.f32 %v4236, 0.0
      %v5430 = vmax.f32 %v3454, 0.0
      %v5431 = vmax.f32 %v4239, 0.0
      %v5432 = vmax.f32 %v3457, 0.0
      %v5433 = vmax.f32 %v4242, 0.0
      %v5434 = vmax.f32 %v3460, 0.0
      %v5435 = vmax.f32 %v4245, 0.0
      %v5436 = vmax.f32 %v3463, 0.0
      %v5437 = vmax.f32 %v4248, 0.0
      %v5438 = vmax.f32 %v3466, 0.0
      %v5439 = vmax.f32 %v4251, 0.0
      %v5440 = vmax.f32 %v3469, 0.0
      %v5441 = vmax.f32 %v4254, 0.0
      %v5442 = vmax.f32 %v3472, 0.0
      %v5443 = vmax.f32 %v4257, 0.0
      %v5444 = vmax.f32 %v3475, 0.0
      %v5445 = vmax.f32 %v4260, 0.0
      %v5446 = vmax.f32 %v3478, 0.0
      %v5447 = vmax.f32 %v4263, 0.0
      %v5448 = vmax.f32 %v3481, 0.0
      %v5449 = vmax.f32 %v4266, 0.0
      %v5450 = vmax.f32 %v3484, 0.0
      %v5451 = vmax.f32 %v4269, 0.0
      %v5452 = vmax.f32 %v3487, 0.0
      %v5453 = vmax.f32 %v4272, 0.0
      %v5454 = vmax.f32 %v3490, 0.0
      %v5455 = vmax.f32 %v4275, 0.0
      %v5456 = vmax.f32 %v3493, 0.0
      %v5457 = vmax.f32 %v4278, 0.0
      %v5458 = vmax.f32 %v3496, 0.0
      %v5459 = vmax.f32 %v4281, 0.0
      %v5460 = vmax.f32 %v3499, 0.0
      %v5461 = vmax.f32 %v4284, 0.0
      %v5462 = vmax.f32 %v3502, 0.0
      %v5463 = vmax.f32 %v4287, 0.0
      %v5464 = vmax.f32 %v3505, 0.0
      %v5465 = vmax.f32 %v4290, 0.0
      %v5466 = vmax.f32 %v3508, 0.0
      %v5467 = vmax.f32 %v4293, 0.0
      %v5468 = vmax.f32 %v3511, 0.0
      %v5469 = vmax.f32 %v4296, 0.0
      %v5470 = vmax.f32 %v3514, 0.0
      %v5471 = vmax.f32 %v4299, 0.0
      %v5472 = vmax.f32 %v3517, 0.0
      %v5473 = vmax.f32 %v4302, 0.0
      %v5474 = vmax.f32 %v3520, 0.0
      %v5475 = vmax.f32 %v4305, 0.0
      %v5476 = vmax.f32 %v3523, 0.0
      %v5477 = vmax.f32 %v4308, 0.0
      %v5478 = vmax.f32 %v3526, 0.0
      %v5479 = vmax.f32 %v4311, 0.0
      %v5480 = vmax.f32 %v3529, 0.0
      %v5481 = vmax.f32 %v4314, 0.0
      %v5482 = vmax.f32 %v3532, 0.0
      %v5483 = vmax.f32 %v4317, 0.0
      %v5484 = vmax.f32 %v3535, 0.0
      %v5485 = vmax.f32 %v4320, 0.0
      %v5486 = vmax.f32 %v3538, 0.0
      %v5487 = vmax.f32 %v4323, 0.0
      %v5488 = vmax.f32 %v3541, 0.0
      %v5489 = vmax.f32 %v4326, 0.0
      %v5490 = vmax.f32 %v3544, 0.0
      %v5491 = vmax.f32 %v4329, 0.0
      %v5492 = vmax.f32 %v3547, 0.0
      %v5493 = vmax.f32 %v4332, 0.0
      %v5494 = vmax.f32 %v3550, 0.0
      %v5495 = vmax.f32 %v4335, 0.0
      %v5496 = vmax.f32 %v3553, 0.0
      %v5497 = vmax.f32 %v4338, 0.0
      %v5498 = vmax.f32 %v3556, 0.0
      %v5499 = vmax.f32 %v4341, 0.0
      %v5500 = vmax.f32 %v3559, 0.0
      %v5501 = vmax.f32 %v4344, 0.0
      %v5502 = vmax.f32 %v3562, 0.0
      %v5503 = vmax.f32 %v4347, 0.0
      %v5504 = vmax.f32 %v3565, 0.0
      %v5505 = vmax.f32 %v4350, 0.0
      %v5506 = vmax.f32 %v3568, 0.0
      %v5507 = vmax.f32 %v4353, 0.0
      %v5508 = vmax.f32 %v3571, 0.0
      %v5509 = vmax.f32 %v4356, 0.0
      %v5510 = vmax.f32 %v3574, 0.0
      %v5511 = vmax.f32 %v4359, 0.0
      %v5512 = vmax.f32 %v3577, 0.0
      %v5513 = vmax.f32 %v4362, 0.0
      %v5514 = vmax.f32 %v3580, 0.0
      %v5515 = vmax.f32 %v4365, 0.0
      %v5516 = vmax.f32 %v3583, 0.0
      %v5517 = vmax.f32 %v4368, 0.0
      %v5518 = vmax.f32 %v3586, 0.0
      %v5519 = vmax.f32 %v4371, 0.0
      %v5520 = vmax.f32 %v3589, 0.0
      %v5521 = vmax.f32 %v4374, 0.0
      %v5522 = vmax.f32 %v3592, 0.0
      %v5523 = vmax.f32 %v4377, 0.0
      %v5524 = vmax.f32 %v3595, 0.0
      %v5525 = vmax.f32 %v4380, 0.0
      %v5526 = vmax.f32 %v3598, 0.0
      %v5527 = vmax.f32 %v4383, 0.0
      %v5528 = vmax.f32 %v3601, 0.0
      %v5529 = vmax.f32 %v4386, 0.0
      %v5530 = vmax.f32 %v3604, 0.0
      %v5531 = vmax.f32 %v4389, 0.0
      %v5532 = vmax.f32 %v3607, 0.0
      %v5533 = vmax.f32 %v4392, 0.0
      %v5534 = vmax.f32 %v3610, 0.0
      %v5535 = vmax.f32 %v4395, 0.0
      %v5536 = vmax.f32 %v3613, 0.0
      %v5537 = vmax.f32 %v4398, 0.0
      %v5538 = vmax.f32 %v3616, 0.0
      %v5539 = vmax.f32 %v4401, 0.0
      %v5540 = vmax.f32 %v3619, 0.0
      %v5541 = vmax.f32 %v4404, 0.0
      %v5542 = vmax.f32 %v3622, 0.0
      %v5543 = vmax.f32 %v4407, 0.0
      %v5544 = vmax.f32 %v3625, 0.0
      %v5545 = vmax.f32 %v4410, 0.0
      %v5546 = vmax.f32 %v3628, 0.0
      %v5547 = vmax.f32 %v4413, 0.0
      %v5548 = vmax.f32 %v3631, 0.0
      %v5549 = vmax.f32 %v4416, 0.0
      %v5550 = vmax.f32 %v3634, 0.0
      %v5551 = vmax.f32 %v4419, 0.0
      %v5552 = vmax.f32 %v3637, 0.0
      %v5553 = vmax.f32 %v4422, 0.0
      %v5554 = vmax.f32 %v3640, 0.0
      %v5555 = vmax.f32 %v4425, 0.0
      %v5556 = vmax.f32 %v3643, 0.0
      %v5557 = vmax.f32 %v4428, 0.0
      %v5558 = vmax.f32 %v3646, 0.0
      %v5559 = vmax.f32 %v4431, 0.0
      %v5560 = vmax.f32 %v3649, 0.0
      %v5561 = vmax.f32 %v4434, 0.0
      %v5562 = vmax.f32 %v3652, 0.0
      %v5563 = vmax.f32 %v4437, 0.0
      %v5564 = vmax.f32 %v3655, 0.0
      %v5565 = vmax.f32 %v4440, 0.0
      %v5566 = vmax.f32 %v3658, 0.0
      %v5567 = vmax.f32 %v4443, 0.0
      %v5568 = vmax.f32 %v3661, 0.0
      %v5569 = vmax.f32 %v4446, 0.0
      %v5570 = vmax.f32 %v3664, 0.0
      %v5571 = vmax.f32 %v4449, 0.0
      %v5572 = vmax.f32 %v3667, 0.0
      %v5573 = vmax.f32 %v4452, 0.0
      %v5574 = vmax.f32 %v3670, 0.0
      %v5575 = vmax.f32 %v4455, 0.0
      %v5576 = vmax.f32 %v3673, 0.0
      %v5577 = vmax.f32 %v4458, 0.0
      %v5578 = vmax.f32 %v3676, 0.0
      %v5579 = vmax.f32 %v4461, 0.0
      %v5580 = vmax.f32 %v3679, 0.0
      %v5581 = vmax.f32 %v4464, 0.0
      %v5582 = vmax.f32 %v3682, 0.0
      %v5583 = vmax.f32 %v4467, 0.0
      %v5584 = vmax.f32 %v3685, 0.0
      %v5585 = vmax.f32 %v4470, 0.0
      %v5586 = vmax.f32 %v3688, 0.0
      %v5587 = vmax.f32 %v4473, 0.0
      %v5588 = vmax.f32 %v3691, 0.0
      %v5589 = vmax.f32 %v4476, 0.0
      %v5590 = vmax.f32 %v3694, 0.0
      %v5591 = vmax.f32 %v4479, 0.0
      %v5592 = vmax.f32 %v3697, 0.0
      %v5593 = vmax.f32 %v4482, 0.0
      %v5594 = vmax.f32 %v3700, 0.0
      %v5595 = vmax.f32 %v4485, 0.0
      %v5596 = vmax.f32 %v3703, 0.0
      %v5597 = vmax.f32 %v4488, 0.0
      %v5598 = vmax.f32 %v3706, 0.0
      %v5599 = vmax.f32 %v4491, 0.0
      %v5600 = vmax.f32 %v3709, 0.0
      %v5601 = vmax.f32 %v4494, 0.0
      %v5602 = vmax.f32 %v3712, 0.0
      %v5603 = vmax.f32 %v4497, 0.0
      %v5604 = vmax.f32 %v3715, 0.0
      %v5605 = vmax.f32 %v4500, 0.0
      %v5606 = vmax.f32 %v3718, 0.0
      %v5607 = vmax.f32 %v4503, 0.0
      %v5608 = vmax.f32 %v3721, 0.0
      %v5609 = vmax.f32 %v4506, 0.0
      %v5610 = vmax.f32 %v3724, 0.0
      %v5611 = vmax.f32 %v4509, 0.0
      %v5612 = vmax.f32 %v3727, 0.0
      %v5613 = vmax.f32 %v4512, 0.0
      %v5614 = vmax.f32 %v3730, 0.0
      %v5615 = vmax.f32 %v4515, 0.0
      %v5616 = vmax.f32 %v3733, 0.0
      %v5617 = vmax.f32 %v4518, 0.0
      %v5618 = vmax.f32 %v3736, 0.0
      %v5619 = vmax.f32 %v4521, 0.0
      %v5620 = vmax.f32 %v3739, 0.0
      %v5621 = vmax.f32 %v4524, 0.0
      %v5622 = vmax.f32 %v3742, 0.0
      %v5623 = vmax.f32 %v4527, 0.0
      %v5624 = vmax.f32 %v3745, 0.0
      %v5625 = vmax.f32 %v4530, 0.0
      %v5626 = vmax.f32 %v3748, 0.0
      %v5627 = vmax.f32 %v4533, 0.0
      %v5628 = vmax.f32 %v3751, 0.0
      %v5629 = vmax.f32 %v4536, 0.0
      %v5630 = vmax.f32 %v3754, 0.0
      %v5631 = vmax.f32 %v4539, 0.0
      %v5632 = vmax.f32 %v3757, 0.0
      %v5633 = vmax.f32 %v4542, 0.0
      %v5634 = vmax.f32 %v3760, 0.0
      %v5635 = vmax.f32 %v4545, 0.0
      %v5636 = vmax.f32 %v3763, 0.0
      %v5637 = vmax.f32 %v4548, 0.0
      %v5638 = vmax.f32 %v3766, 0.0
      %v5639 = vmax.f32 %v4551, 0.0
      %v5640 = vmax.f32 %v3769, 0.0
      %v5641 = vmax.f32 %v4554, 0.0
      %v5642 = vmax.f32 %v3772, 0.0
      %v5643 = vmax.f32 %v4557, 0.0
      %v5644 = vmax.f32 %v3775, 0.0
      %v5645 = vmax.f32 %v4560, 0.0
      %v5646 = vmax.f32 %v3778, 0.0
      %v5647 = vmax.f32 %v4563, 0.0
      %v5648 = vmax.f32 %v3781, 0.0
      %v5649 = vmax.f32 %v4566, 0.0
      %v5650 = vmax.f32 %v3784, 0.0
      %v5651 = vmax.f32 %v4569, 0.0
      %v5652 = vmax.f32 %v3787, 0.0
      %v5653 = vmax.f32 %v4572, 0.0
      %v5654 = vmax.f32 %v3790, 0.0
      %v5655 = vmax.f32 %v4575, 0.0
      %v5656 = vmax.f32 %v3793, 0.0
      %v5657 = vmax.f32 %v4578, 0.0
      %v5658 = vmax.f32 %v3796, 0.0
      %v5659 = vmax.f32 %v4581, 0.0
      %v5660 = vmax.f32 %v3799, 0.0
      %v5661 = vmax.f32 %v4584, 0.0
      %v5662 = vmax.f32 %v3802, 0.0
      %v5663 = vmax.f32 %v4587, 0.0
      %v5664 = vmax.f32 %v3805, 0.0
      %v5665 = vmax.f32 %v4590, 0.0
      %v5666 = vmax.f32 %v3808, 0.0
      %v5667 = vmax.f32 %v4593, 0.0
      %v5668 = vmax.f32 %v3811, 0.0
      %v5669 = vmax.f32 %v4596, 0.0
      %v5670 = vmax.f32 %v3814, 0.0
      %v5671 = vmax.f32 %v4599, 0.0
      %v5672 = vmax.f32 %v3817, 0.0
      %v5673 = vmax.f32 %v4602, 0.0
      %v5674 = vmax.f32 %v3820, 0.0
      %v5675 = vmax.f32 %v4605, 0.0
      %v5676 = vmax.f32 %v3823, 0.0
      %v5677 = vmax.f32 %v4608, 0.0
      %v5678 = vmax.f32 %v3826, 0.0
      %v5679 = vmax.f32 %v4611, 0.0
      %v5680 = vmax.f32 %v3829, 0.0
      %v5681 = vmax.f32 %v4614, 0.0
      %v5682 = vmax.f32 %v3832, 0.0
      %v5683 = vmax.f32 %v4617, 0.0
      %v5684 = vmax.f32 %v3835, 0.0
      %v5685 = vmax.f32 %v4620, 0.0
      %v5686 = vmax.f32 %v3838, 0.0
      %v5687 = vmax.f32 %v4623, 0.0
      %v5688 = vmax.f32 %v3841, 0.0
      %v5689 = vmax.f32 %v4626, 0.0
      %v5690 = vmax.f32 %v3844, 0.0
      %v5691 = vmax.f32 %v4629, 0.0
      %v5692 = vmax.f32 %v3847, 0.0
      %v5693 = vmax.f32 %v4632, 0.0
      %v5694 = vmax.f32 %v3850, 0.0
      %v5695 = vmax.f32 %v4635, 0.0
      %v5696 = vmax.f32 %v3853, 0.0
      %v5697 = vmax.f32 %v4638, 0.0
      %v5698 = vmax.f32 %v3856, 0.0
      %v5699 = vmax.f32 %v4641, 0.0
      %v5700 = vmax.f32 %v3859, 0.0
      %v5701 = vmax.f32 %v4644, 0.0
      %v5702 = vmax.f32 %v3862, 0.0
      %v5703 = vmax.f32 %v4647, 0.0
      %v5704 = vmax.f32 %v3865, 0.0
      %v5705 = vmax.f32 %v4650, 0.0
      %v5706 = vmax.f32 %v3868, 0.0
      %v5707 = vmax.f32 %v4653, 0.0
      %v5708 = vmax.f32 %v3871, 0.0
      %v5709 = vmax.f32 %v4656, 0.0
      %v5710 = vmax.f32 %v3874, 0.0
      %v5711 = vmax.f32 %v4659, 0.0
      %v5712 = vmax.f32 %v3877, 0.0
      %v5713 = vmax.f32 %v4662, 0.0
      %v5714 = vmax.f32 %v3880, 0.0
      %v5715 = vmax.f32 %v4665, 0.0
      %v5716 = vmax.f32 %v3883, 0.0
      %v5717 = vmax.f32 %v4668, 0.0
      %v5718 = vmax.f32 %v3886, 0.0
      %v5719 = vmax.f32 %v4671, 0.0
      %v5720 = vmax.f32 %v3889, 0.0
      %v5721 = vmax.f32 %v4674, 0.0
      %v5722 = vmax.f32 %v3892, 0.0
      %v5723 = vmax.f32 %v4677, 0.0
      %v5724 = vmax.f32 %v3895, 0.0
      %v5725 = vmax.f32 %v4680, 0.0
      %v5726 = vmax.f32 %v3898, 0.0
      %v5727 = vmax.f32 %v4683, 0.0
      %v5728 = vmax.f32 %v3901, 0.0
      %v5729 = vmax.f32 %v4686, 0.0
      %v5730 = vmax.f32 %v3904, 0.0
      %v5731 = vmax.f32 %v4689, 0.0
      %v5732 = vmax.f32 %v3907, 0.0
      %v5733 = vmax.f32 %v4692, 0.0
      %v5734 = vmax.f32 %v3910, 0.0
      %v5735 = vmax.f32 %v4695, 0.0
      %v5736 = vmax.f32 %v3913, 0.0
      %v5737 = vmax.f32 %v4698, 0.0
      %v5738 = vmax.f32 %v3916, 0.0
      %v5739 = vmax.f32 %v4701, 0.0
      %v5740 = vmax.f32 %v3919, 0.0
      %v5741 = vmax.f32 %v4704, 0.0
      %v5742 = vmax.f32 %v3922, 0.0
      %v5743 = vmax.f32 %v4707, 0.0
      %v5744 = vmax.f32 %v3925, 0.0
      %v5745 = vmax.f32 %v4710, 0.0
      %v5746 = vmax.f32 %v3928, 0.0
      %v5747 = vmax.f32 %v4713, 0.0
      %v5748 = vmax.f32 %v3931, 0.0
      %v5749 = vmax.f32 %v4716, 0.0
      %v5750 = vmax.f32 %v3934, 0.0
      %v5751 = vmax.f32 %v4719, 0.0
      %v5752 = vmax.f32 %v3937, 0.0
      %v5753 = vmax.f32 %v4722, 0.0
      %v5754 = vmax.f32 %v3940, 0.0
      %v5755 = vmax.f32 %v4725, 0.0
      %v5756 = vmax.f32 %v3943, 0.0
      %v5757 = vmax.f32 %v4728, 0.0
      %v5758 = vmax.f32 %v3946, 0.0
      %v5759 = vmax.f32 %v4731, 0.0
      %v5760 = vmax.f32 %v3949, 0.0
      %v5761 = vmax.f32 %v4734, 0.0
      %v5762 = vmax.f32 %v3952, 0.0
      %v5763 = vmax.f32 %v4737, 0.0
      %v5764 = vmax.f32 %v3955, 0.0
      %v5765 = vmax.f32 %v4740, 0.0
      %v5766 = vld [vmem:[%s5] sm:$0xff]
      %v5767 = vld [vmem:[%s5 + $0x8] sm:$0xff]
      %v5768 = vld [vmem:[%s5 + $0x10] sm:$0xff]
      %v5769 = vld [vmem:[%s5 + $0x18] sm:$0xff]
      %v5770 = vld [vmem:[%s5 + $0x20] sm:$0xff]
      %v5771 = vld [vmem:[%s5 + $0x28] sm:$0xff]
      %v5772 = vld [vmem:[%s5 + $0x30] sm:$0xff]
      %v5773 = vld [vmem:[%s5 + $0x38] sm:$0xff]
      %v5774 = vld [vmem:[%s5 + $0x40] sm:$0xff]
      %v5775 = vld [vmem:[%s5 + $0x48] sm:$0xff]
      %v5776 = vld [vmem:[%s5 + $0x50] sm:$0xff]
      %v5777 = vld [vmem:[%s5 + $0x58] sm:$0xff]
      %v5778 = vld [vmem:[%s5 + $0x60] sm:$0xff]
      %v5779 = vld [vmem:[%s5 + $0x68] sm:$0xff]
      %v5780 = vld [vmem:[%s5 + $0x70] sm:$0xff]
      %v5781 = vld [vmem:[%s5 + $0x78] sm:$0xff]
      %v5782 = vld [vmem:[%s5 + $0x80] sm:$0xff]
      %v5783 = vld [vmem:[%s5 + $0x88] sm:$0xff]
      %v5784 = vld [vmem:[%s5 + $0x90] sm:$0xff]
      %v5785 = vld [vmem:[%s5 + $0x98] sm:$0xff]
      %v5786 = vld [vmem:[%s5 + $0xa0] sm:$0xff]
      %v5787 = vld [vmem:[%s5 + $0xa8] sm:$0xff]
      %v5788 = vld [vmem:[%s5 + $0xb0] sm:$0xff]
      %v5789 = vld [vmem:[%s5 + $0xb8] sm:$0xff]
      %v5790 = vld [vmem:[%s5 + $0xc0] sm:$0xff]
      %v5791 = vld [vmem:[%s5 + $0xc8] sm:$0xff]
      %v5792 = vld [vmem:[%s5 + $0xd0] sm:$0xff]
      %v5793 = vld [vmem:[%s5 + $0xd8] sm:$0xff]
      %v5794 = vld [vmem:[%s5 + $0xe0] sm:$0xff]
      %v5795 = vld [vmem:[%s5 + $0xe8] sm:$0xff]
      %v5796 = vld [vmem:[%s5 + $0xf0] sm:$0xff]
      %v5797 = vld [vmem:[%s5 + $0xf8] sm:$0xff]
      %v5798 = vld [vmem:[%s5 + $0x100] sm:$0xff]
      %v5799 = vld [vmem:[%s5 + $0x108] sm:$0xff]
      %v5800 = vld [vmem:[%s5 + $0x110] sm:$0xff]
      %v5801 = vld [vmem:[%s5 + $0x118] sm:$0xff]
      %v5802 = vld [vmem:[%s5 + $0x120] sm:$0xff]
      %v5803 = vld [vmem:[%s5 + $0x128] sm:$0xff]
      %v5804 = vld [vmem:[%s5 + $0x130] sm:$0xff]
      %v5805 = vld [vmem:[%s5 + $0x138] sm:$0xff]
      %v5806 = vld [vmem:[%s5 + $0x140] sm:$0xff]
      %v5807 = vld [vmem:[%s5 + $0x148] sm:$0xff]
      %v5808 = vld [vmem:[%s5 + $0x150] sm:$0xff]
      %v5809 = vld [vmem:[%s5 + $0x158] sm:$0xff]
      %v5810 = vld [vmem:[%s5 + $0x160] sm:$0xff]
      %v5811 = vld [vmem:[%s5 + $0x168] sm:$0xff]
      %v5812 = vld [vmem:[%s5 + $0x170] sm:$0xff]
      %v5813 = vld [vmem:[%s5 + $0x178] sm:$0xff]
      %v5814 = vld [vmem:[%s5 + $0x180] sm:$0xff]
      %v5815 = vld [vmem:[%s5 + $0x188] sm:$0xff]
      %v5816 = vld [vmem:[%s5 + $0x190] sm:$0xff]
      %v5817 = vld [vmem:[%s5 + $0x198] sm:$0xff]
      %v5818 = vld [vmem:[%s5 + $0x1a0] sm:$0xff]
      %v5819 = vld [vmem:[%s5 + $0x1a8] sm:$0xff]
      %v5820 = vld [vmem:[%s5 + $0x1b0] sm:$0xff]
      %v5821 = vld [vmem:[%s5 + $0x1b8] sm:$0xff]
      %v5822 = vld [vmem:[%s5 + $0x1c0] sm:$0xff]
      %v5823 = vld [vmem:[%s5 + $0x1c8] sm:$0xff]
      %v5824 = vld [vmem:[%s5 + $0x1d0] sm:$0xff]
      %v5825 = vld [vmem:[%s5 + $0x1d8] sm:$0xff]
      %v5826 = vld [vmem:[%s5 + $0x1e0] sm:$0xff]
      %v5827 = vld [vmem:[%s5 + $0x1e8] sm:$0xff]
      %v5828 = vld [vmem:[%s5 + $0x1f0] sm:$0xff]
      %v5829 = vld [vmem:[%s5 + $0x1f8] sm:$0xff]
      %v5830 = vld [vmem:[%s6] sm:$0xff]
      %v5831 = vld [vmem:[%s6 + $0x8] sm:$0xff]
      %v5832 = vld [vmem:[%s6 + $0x10] sm:$0xff]
      %v5833 = vld [vmem:[%s6 + $0x18] sm:$0xff]
      %5835 = vset.pattern.permute.xlu0 0
      %5836 = vperm.xlu0 %5835, %v5830
      %v5837 = vpop.permute.xlu0 %5836
      %5840 = vset.pattern.permute.xlu0 0
      %5841 = vperm.xlu0 %5840, %v5831
      %v5842 = vpop.permute.xlu0 %5841
      %5845 = vset.pattern.permute.xlu0 0
      %5846 = vperm.xlu0 %5845, %v5832
      %v5847 = vpop.permute.xlu0 %5846
      %5850 = vset.pattern.permute.xlu0 0
      %5851 = vperm.xlu0 %5850, %v5833
      %v5852 = vpop.permute.xlu0 %5851
      %5854 = vmatpush.msra.mxu0 %v5284
      %5855 = vmatpush.msra.mxu0 %v5282
      %5856 = vmatpush.msra.mxu0 %v5280
      %5857 = vmatpush.msra.mxu0 %v5278
      %5858 = vmatpush.msra.mxu0 %v5276
      %5859 = vmatpush.msra.mxu0 %v5274
      %5860 = vmatpush.msra.mxu0 %v5272
      %5861 = vmatpush.msra.mxu0 %v5270
      %5862 = vmatpush.msra.mxu0 %v5268
      %5863 = vmatpush.msra.mxu0 %v5266
      %5864 = vmatpush.msra.mxu0 %v5264
      %5865 = vmatpush.msra.mxu0 %v5262
      %5866 = vmatpush.msra.mxu0 %v5260
      %5867 = vmatpush.msra.mxu0 %v5258
      %5868 = vmatpush.msra.mxu0 %v5256
      %5869 = vmatpush.msra.mxu0 %v5254
      %5870 = vmatmul.f32.gmra.mxu0 %v5766
      %v5871 = vpop.f32.mrf.mxu0
      %v5872 = vadd.f32 %v5837, %v5871
      %5873 = vmatmul.f32.gmra.mxu0 %v5782
      %v5874 = vpop.f32.mrf.mxu0
      %v5875 = vadd.f32 %v5842, %v5874
      %5876 = vmatmul.f32.gmra.mxu0 %v5798
      %v5877 = vpop.f32.mrf.mxu0
      %v5878 = vadd.f32 %v5847, %v5877
      %5879 = vmatmul.f32.gmra.mxu0 %v5814
      %v5880 = vpop.f32.mrf.mxu0
      %v5881 = vadd.f32 %v5852, %v5880
      %5882 = vdwg.mxu0
      %5883 = vmatpush.msra.mxu0 %v5316
      %5884 = vmatpush.msra.mxu0 %v5314
      %5885 = vmatpush.msra.mxu0 %v5312
      %5886 = vmatpush.msra.mxu0 %v5310
      %5887 = vmatpush.msra.mxu0 %v5308
      %5888 = vmatpush.msra.mxu0 %v5306
      %5889 = vmatpush.msra.mxu0 %v5304
      %5890 = vmatpush.msra.mxu0 %v5302
      %5891 = vmatpush.msra.mxu0 %v5300
      %5892 = vmatpush.msra.mxu0 %v5298
      %5893 = vmatpush.msra.mxu0 %v5296
      %5894 = vmatpush.msra.mxu0 %v5294
      %5895 = vmatpush.msra.mxu0 %v5292
      %5896 = vmatpush.msra.mxu0 %v5290
      %5897 = vmatpush.msra.mxu0 %v5288
      %5898 = vmatpush.msra.mxu0 %v5286
      %5899 = vmatmul.f32.gmra.mxu0 %v5767
      %v5900 = vpop.f32.mrf.mxu0
      %v5901 = vadd.f32 %v5872, %v5900
      %5902 = vmatmul.f32.gmra.mxu0 %v5783
      %v5903 = vpop.f32.mrf.mxu0
      %v5904 = vadd.f32 %v5875, %v5903
      %5905 = vmatmul.f32.gmra.mxu0 %v5799
      %v5906 = vpop.f32.mrf.mxu0
      %v5907 = vadd.f32 %v5878, %v5906
      %5908 = vmatmul.f32.gmra.mxu0 %v5815
      %v5909 = vpop.f32.mrf.mxu0
      %v5910 = vadd.f32 %v5881, %v5909
      %5911 = vdwg.mxu0
      %5912 = vmatpush.msra.mxu0 %v5348
      %5913 = vmatpush.msra.mxu0 %v5346
      %5914 = vmatpush.msra.mxu0 %v5344
      %5915 = vmatpush.msra.mxu0 %v5342
      %5916 = vmatpush.msra.mxu0 %v5340
      %5917 = vmatpush.msra.mxu0 %v5338
      %5918 = vmatpush.msra.mxu0 %v5336
      %5919 = vmatpush.msra.mxu0 %v5334
      %5920 = vmatpush.msra.mxu0 %v5332
      %5921 = vmatpush.msra.mxu0 %v5330
      %5922 = vmatpush.msra.mxu0 %v5328
      %5923 = vmatpush.msra.mxu0 %v5326
      %5924 = vmatpush.msra.mxu0 %v5324
      %5925 = vmatpush.msra.mxu0 %v5322
      %5926 = vmatpush.msra.mxu0 %v5320
      %5927 = vmatpush.msra.mxu0 %v5318
      %5928 = vmatmul.f32.gmra.mxu0 %v5768
      %v5929 = vpop.f32.mrf.mxu0
      %v5930 = vadd.f32 %v5901, %v5929
      %5931 = vmatmul.f32.gmra.mxu0 %v5784
      %v5932 = vpop.f32.mrf.mxu0
      %v5933 = vadd.f32 %v5904, %v5932
      %5934 = vmatmul.f32.gmra.mxu0 %v5800
      %v5935 = vpop.f32.mrf.mxu0
      %v5936 = vadd.f32 %v5907, %v5935
      %5937 = vmatmul.f32.gmra.mxu0 %v5816
      %v5938 = vpop.f32.mrf.mxu0
      %v5939 = vadd.f32 %v5910, %v5938
      %5940 = vdwg.mxu0
      %5941 = vmatpush.msra.mxu0 %v5380
      %5942 = vmatpush.msra.mxu0 %v5378
      %5943 = vmatpush.msra.mxu0 %v5376
      %5944 = vmatpush.msra.mxu0 %v5374
      %5945 = vmatpush.msra.mxu0 %v5372
      %5946 = vmatpush.msra.mxu0 %v5370
      %5947 = vmatpush.msra.mxu0 %v5368
      %5948 = vmatpush.msra.mxu0 %v5366
      %5949 = vmatpush.msra.mxu0 %v5364
      %5950 = vmatpush.msra.mxu0 %v5362
      %5951 = vmatpush.msra.mxu0 %v5360
      %5952 = vmatpush.msra.mxu0 %v5358
      %5953 = vmatpush.msra.mxu0 %v5356
      %5954 = vmatpush.msra.mxu0 %v5354
      %5955 = vmatpush.msra.mxu0 %v5352
      %5956 = vmatpush.msra.mxu0 %v5350
      %5957 = vmatmul.f32.gmra.mxu0 %v5769
      %v5958 = vpop.f32.mrf.mxu0
      %v5959 = vadd.f32 %v5930, %v5958
      %5960 = vmatmul.f32.gmra.mxu0 %v5785
      %v5961 = vpop.f32.mrf.mxu0
      %v5962 = vadd.f32 %v5933, %v5961
      %5963 = vmatmul.f32.gmra.mxu0 %v5801
      %v5964 = vpop.f32.mrf.mxu0
      %v5965 = vadd.f32 %v5936, %v5964
      %5966 = vmatmul.f32.gmra.mxu0 %v5817
      %v5967 = vpop.f32.mrf.mxu0
      %v5968 = vadd.f32 %v5939, %v5967
      %5969 = vdwg.mxu0
      %5970 = vmatpush.msra.mxu0 %v5412
      %5971 = vmatpush.msra.mxu0 %v5410
      %5972 = vmatpush.msra.mxu0 %v5408
      %5973 = vmatpush.msra.mxu0 %v5406
      %5974 = vmatpush.msra.mxu0 %v5404
      %5975 = vmatpush.msra.mxu0 %v5402
      %5976 = vmatpush.msra.mxu0 %v5400
      %5977 = vmatpush.msra.mxu0 %v5398
      %5978 = vmatpush.msra.mxu0 %v5396
      %5979 = vmatpush.msra.mxu0 %v5394
      %5980 = vmatpush.msra.mxu0 %v5392
      %5981 = vmatpush.msra.mxu0 %v5390
      %5982 = vmatpush.msra.mxu0 %v5388
      %5983 = vmatpush.msra.mxu0 %v5386
      %5984 = vmatpush.msra.mxu0 %v5384
      %5985 = vmatpush.msra.mxu0 %v5382
      %5986 = vmatmul.f32.gmra.mxu0 %v5770
      %v5987 = vpop.f32.mrf.mxu0
      %v5988 = vadd.f32 %v5959, %v5987
      %5989 = vmatmul.f32.gmra.mxu0 %v5786
      %v5990 = vpop.f32.mrf.mxu0
      %v5991 = vadd.f32 %v5962, %v5990
      %5992 = vmatmul.f32.gmra.mxu0 %v5802
      %v5993 = vpop.f32.mrf.mxu0
      %v5994 = vadd.f32 %v5965, %v5993
      %5995 = vmatmul.f32.gmra.mxu0 %v5818
      %v5996 = vpop.f32.mrf.mxu0
      %v5997 = vadd.f32 %v5968, %v5996
      %5998 = vdwg.mxu0
      %5999 = vmatpush.msra.mxu0 %v5444
      %6000 = vmatpush.msra.mxu0 %v5442
      %6001 = vmatpush.msra.mxu0 %v5440
      %6002 = vmatpush.msra.mxu0 %v5438
      %6003 = vmatpush.msra.mxu0 %v5436
      %6004 = vmatpush.msra.mxu0 %v5434
      %6005 = vmatpush.msra.mxu0 %v5432
      %6006 = vmatpush.msra.mxu0 %v5430
      %6007 = vmatpush.msra.mxu0 %v5428
      %6008 = vmatpush.msra.mxu0 %v5426
      %6009 = vmatpush.msra.mxu0 %v5424
      %6010 = vmatpush.msra.mxu0 %v5422
      %6011 = vmatpush.msra.mxu0 %v5420
      %6012 = vmatpush.msra.mxu0 %v5418
      %6013 = vmatpush.msra.mxu0 %v5416
      %6014 = vmatpush.msra.mxu0 %v5414
      %6015 = vmatmul.f32.gmra.mxu0 %v5771
      %v6016 = vpop.f32.mrf.mxu0
      %v6017 = vadd.f32 %v5988, %v6016
      %6018 = vmatmul.f32.gmra.mxu0 %v5787
      %v6019 = vpop.f32.mrf.mxu0
      %v6020 = vadd.f32 %v5991, %v6019
      %6021 = vmatmul.f32.gmra.mxu0 %v5803
      %v6022 = vpop.f32.mrf.mxu0
      %v6023 = vadd.f32 %v5994, %v6022
      %6024 = vmatmul.f32.gmra.mxu0 %v5819
      %v6025 = vpop.f32.mrf.mxu0
      %v6026 = vadd.f32 %v5997, %v6025
      %6027 = vdwg.mxu0
      %6028 = vmatpush.msra.mxu0 %v5476
      %6029 = vmatpush.msra.mxu0 %v5474
      %6030 = vmatpush.msra.mxu0 %v5472
      %6031 = vmatpush.msra.mxu0 %v5470
      %6032 = vmatpush.msra.mxu0 %v5468
      %6033 = vmatpush.msra.mxu0 %v5466
      %6034 = vmatpush.msra.mxu0 %v5464
      %6035 = vmatpush.msra.mxu0 %v5462
      %6036 = vmatpush.msra.mxu0 %v5460
      %6037 = vmatpush.msra.mxu0 %v5458
      %6038 = vmatpush.msra.mxu0 %v5456
      %6039 = vmatpush.msra.mxu0 %v5454
      %6040 = vmatpush.msra.mxu0 %v5452
      %6041 = vmatpush.msra.mxu0 %v5450
      %6042 = vmatpush.msra.mxu0 %v5448
      %6043 = vmatpush.msra.mxu0 %v5446
      %6044 = vmatmul.f32.gmra.mxu0 %v5772
      %v6045 = vpop.f32.mrf.mxu0
      %v6046 = vadd.f32 %v6017, %v6045
      %6047 = vmatmul.f32.gmra.mxu0 %v5788
      %v6048 = vpop.f32.mrf.mxu0
      %v6049 = vadd.f32 %v6020, %v6048
      %6050 = vmatmul.f32.gmra.mxu0 %v5804
      %v6051 = vpop.f32.mrf.mxu0
      %v6052 = vadd.f32 %v6023, %v6051
      %6053 = vmatmul.f32.gmra.mxu0 %v5820
      %v6054 = vpop.f32.mrf.mxu0
      %v6055 = vadd.f32 %v6026, %v6054
      %6056 = vdwg.mxu0
      %6057 = vmatpush.msra.mxu0 %v5508
      %6058 = vmatpush.msra.mxu0 %v5506
      %6059 = vmatpush.msra.mxu0 %v5504
      %6060 = vmatpush.msra.mxu0 %v5502
      %6061 = vmatpush.msra.mxu0 %v5500
      %6062 = vmatpush.msra.mxu0 %v5498
      %6063 = vmatpush.msra.mxu0 %v5496
      %6064 = vmatpush.msra.mxu0 %v5494
      %6065 = vmatpush.msra.mxu0 %v5492
      %6066 = vmatpush.msra.mxu0 %v5490
      %6067 = vmatpush.msra.mxu0 %v5488
      %6068 = vmatpush.msra.mxu0 %v5486
      %6069 = vmatpush.msra.mxu0 %v5484
      %6070 = vmatpush.msra.mxu0 %v5482
      %6071 = vmatpush.msra.mxu0 %v5480
      %6072 = vmatpush.msra.mxu0 %v5478
      %6073 = vmatmul.f32.gmra.mxu0 %v5773
      %v6074 = vpop.f32.mrf.mxu0
      %v6075 = vadd.f32 %v6046, %v6074
      %6076 = vmatmul.f32.gmra.mxu0 %v5789
      %v6077 = vpop.f32.mrf.mxu0
      %v6078 = vadd.f32 %v6049, %v6077
      %6079 = vmatmul.f32.gmra.mxu0 %v5805
      %v6080 = vpop.f32.mrf.mxu0
      %v6081 = vadd.f32 %v6052, %v6080
      %6082 = vmatmul.f32.gmra.mxu0 %v5821
      %v6083 = vpop.f32.mrf.mxu0
      %v6084 = vadd.f32 %v6055, %v6083
      %6085 = vdwg.mxu0
      %6086 = vmatpush.msra.mxu0 %v5540
      %6087 = vmatpush.msra.mxu0 %v5538
      %6088 = vmatpush.msra.mxu0 %v5536
      %6089 = vmatpush.msra.mxu0 %v5534
      %6090 = vmatpush.msra.mxu0 %v5532
      %6091 = vmatpush.msra.mxu0 %v5530
      %6092 = vmatpush.msra.mxu0 %v5528
      %6093 = vmatpush.msra.mxu0 %v5526
      %6094 = vmatpush.msra.mxu0 %v5524
      %6095 = vmatpush.msra.mxu0 %v5522
      %6096 = vmatpush.msra.mxu0 %v5520
      %6097 = vmatpush.msra.mxu0 %v5518
      %6098 = vmatpush.msra.mxu0 %v5516
      %6099 = vmatpush.msra.mxu0 %v5514
      %6100 = vmatpush.msra.mxu0 %v5512
      %6101 = vmatpush.msra.mxu0 %v5510
      %6102 = vmatmul.f32.gmra.mxu0 %v5774
      %v6103 = vpop.f32.mrf.mxu0
      %v6104 = vadd.f32 %v6075, %v6103
      %6105 = vmatmul.f32.gmra.mxu0 %v5790
      %v6106 = vpop.f32.mrf.mxu0
      %v6107 = vadd.f32 %v6078, %v6106
      %6108 = vmatmul.f32.gmra.mxu0 %v5806
      %v6109 = vpop.f32.mrf.mxu0
      %v6110 = vadd.f32 %v6081, %v6109
      %6111 = vmatmul.f32.gmra.mxu0 %v5822
      %v6112 = vpop.f32.mrf.mxu0
      %v6113 = vadd.f32 %v6084, %v6112
      %6114 = vdwg.mxu0
      %6115 = vmatpush.msra.mxu0 %v5572
      %6116 = vmatpush.msra.mxu0 %v5570
      %6117 = vmatpush.msra.mxu0 %v5568
      %6118 = vmatpush.msra.mxu0 %v5566
      %6119 = vmatpush.msra.mxu0 %v5564
      %6120 = vmatpush.msra.mxu0 %v5562
      %6121 = vmatpush.msra.mxu0 %v5560
      %6122 = vmatpush.msra.mxu0 %v5558
      %6123 = vmatpush.msra.mxu0 %v5556
      %6124 = vmatpush.msra.mxu0 %v5554
      %6125 = vmatpush.msra.mxu0 %v5552
      %6126 = vmatpush.msra.mxu0 %v5550
      %6127 = vmatpush.msra.mxu0 %v5548
      %6128 = vmatpush.msra.mxu0 %v5546
      %6129 = vmatpush.msra.mxu0 %v5544
      %6130 = vmatpush.msra.mxu0 %v5542
      %6131 = vmatmul.f32.gmra.mxu0 %v5775
      %v6132 = vpop.f32.mrf.mxu0
      %v6133 = vadd.f32 %v6104, %v6132
      %6134 = vmatmul.f32.gmra.mxu0 %v5791
      %v6135 = vpop.f32.mrf.mxu0
      %v6136 = vadd.f32 %v6107, %v6135
      %6137 = vmatmul.f32.gmra.mxu0 %v5807
      %v6138 = vpop.f32.mrf.mxu0
      %v6139 = vadd.f32 %v6110, %v6138
      %6140 = vmatmul.f32.gmra.mxu0 %v5823
      %v6141 = vpop.f32.mrf.mxu0
      %v6142 = vadd.f32 %v6113, %v6141
      %6143 = vdwg.mxu0
      %6144 = vmatpush.msra.mxu0 %v5604
      %6145 = vmatpush.msra.mxu0 %v5602
      %6146 = vmatpush.msra.mxu0 %v5600
      %6147 = vmatpush.msra.mxu0 %v5598
      %6148 = vmatpush.msra.mxu0 %v5596
      %6149 = vmatpush.msra.mxu0 %v5594
      %6150 = vmatpush.msra.mxu0 %v5592
      %6151 = vmatpush.msra.mxu0 %v5590
      %6152 = vmatpush.msra.mxu0 %v5588
      %6153 = vmatpush.msra.mxu0 %v5586
      %6154 = vmatpush.msra.mxu0 %v5584
      %6155 = vmatpush.msra.mxu0 %v5582
      %6156 = vmatpush.msra.mxu0 %v5580
      %6157 = vmatpush.msra.mxu0 %v5578
      %6158 = vmatpush.msra.mxu0 %v5576
      %6159 = vmatpush.msra.mxu0 %v5574
      %6160 = vmatmul.f32.gmra.mxu0 %v5776
      %v6161 = vpop.f32.mrf.mxu0
      %v6162 = vadd.f32 %v6133, %v6161
      %6163 = vmatmul.f32.gmra.mxu0 %v5792
      %v6164 = vpop.f32.mrf.mxu0
      %v6165 = vadd.f32 %v6136, %v6164
      %6166 = vmatmul.f32.gmra.mxu0 %v5808
      %v6167 = vpop.f32.mrf.mxu0
      %v6168 = vadd.f32 %v6139, %v6167
      %6169 = vmatmul.f32.gmra.mxu0 %v5824
      %v6170 = vpop.f32.mrf.mxu0
      %v6171 = vadd.f32 %v6142, %v6170
      %6172 = vdwg.mxu0
      %6173 = vmatpush.msra.mxu0 %v5636
      %6174 = vmatpush.msra.mxu0 %v5634
      %6175 = vmatpush.msra.mxu0 %v5632
      %6176 = vmatpush.msra.mxu0 %v5630
      %6177 = vmatpush.msra.mxu0 %v5628
      %6178 = vmatpush.msra.mxu0 %v5626
      %6179 = vmatpush.msra.mxu0 %v5624
      %6180 = vmatpush.msra.mxu0 %v5622
      %6181 = vmatpush.msra.mxu0 %v5620
      %6182 = vmatpush.msra.mxu0 %v5618
      %6183 = vmatpush.msra.mxu0 %v5616
      %6184 = vmatpush.msra.mxu0 %v5614
      %6185 = vmatpush.msra.mxu0 %v5612
      %6186 = vmatpush.msra.mxu0 %v5610
      %6187 = vmatpush.msra.mxu0 %v5608
      %6188 = vmatpush.msra.mxu0 %v5606
      %6189 = vmatmul.f32.gmra.mxu0 %v5777
      %v6190 = vpop.f32.mrf.mxu0
      %v6191 = vadd.f32 %v6162, %v6190
      %6192 = vmatmul.f32.gmra.mxu0 %v5793
      %v6193 = vpop.f32.mrf.mxu0
      %v6194 = vadd.f32 %v6165, %v6193
      %6195 = vmatmul.f32.gmra.mxu0 %v5809
      %v6196 = vpop.f32.mrf.mxu0
      %v6197 = vadd.f32 %v6168, %v6196
      %6198 = vmatmul.f32.gmra.mxu0 %v5825
      %v6199 = vpop.f32.mrf.mxu0
      %v6200 = vadd.f32 %v6171, %v6199
      %6201 = vdwg.mxu0
      %6202 = vmatpush.msra.mxu0 %v5668
      %6203 = vmatpush.msra.mxu0 %v5666
      %6204 = vmatpush.msra.mxu0 %v5664
      %6205 = vmatpush.msra.mxu0 %v5662
      %6206 = vmatpush.msra.mxu0 %v5660
      %6207 = vmatpush.msra.mxu0 %v5658
      %6208 = vmatpush.msra.mxu0 %v5656
      %6209 = vmatpush.msra.mxu0 %v5654
      %6210 = vmatpush.msra.mxu0 %v5652
      %6211 = vmatpush.msra.mxu0 %v5650
      %6212 = vmatpush.msra.mxu0 %v5648
      %6213 = vmatpush.msra.mxu0 %v5646
      %6214 = vmatpush.msra.mxu0 %v5644
      %6215 = vmatpush.msra.mxu0 %v5642
      %6216 = vmatpush.msra.mxu0 %v5640
      %6217 = vmatpush.msra.mxu0 %v5638
      %6218 = vmatmul.f32.gmra.mxu0 %v5778
      %v6219 = vpop.f32.mrf.mxu0
      %v6220 = vadd.f32 %v6191, %v6219
      %6221 = vmatmul.f32.gmra.mxu0 %v5794
      %v6222 = vpop.f32.mrf.mxu0
      %v6223 = vadd.f32 %v6194, %v6222
      %6224 = vmatmul.f32.gmra.mxu0 %v5810
      %v6225 = vpop.f32.mrf.mxu0
      %v6226 = vadd.f32 %v6197, %v6225
      %6227 = vmatmul.f32.gmra.mxu0 %v5826
      %v6228 = vpop.f32.mrf.mxu0
      %v6229 = vadd.f32 %v6200, %v6228
      %6230 = vdwg.mxu0
      %6231 = vmatpush.msra.mxu0 %v5700
      %6232 = vmatpush.msra.mxu0 %v5698
      %6233 = vmatpush.msra.mxu0 %v5696
      %6234 = vmatpush.msra.mxu0 %v5694
      %6235 = vmatpush.msra.mxu0 %v5692
      %6236 = vmatpush.msra.mxu0 %v5690
      %6237 = vmatpush.msra.mxu0 %v5688
      %6238 = vmatpush.msra.mxu0 %v5686
      %6239 = vmatpush.msra.mxu0 %v5684
      %6240 = vmatpush.msra.mxu0 %v5682
      %6241 = vmatpush.msra.mxu0 %v5680
      %6242 = vmatpush.msra.mxu0 %v5678
      %6243 = vmatpush.msra.mxu0 %v5676
      %6244 = vmatpush.msra.mxu0 %v5674
      %6245 = vmatpush.msra.mxu0 %v5672
      %6246 = vmatpush.msra.mxu0 %v5670
      %6247 = vmatmul.f32.gmra.mxu0 %v5779
      %v6248 = vpop.f32.mrf.mxu0
      %v6249 = vadd.f32 %v6220, %v6248
      %6250 = vmatmul.f32.gmra.mxu0 %v5795
      %v6251 = vpop.f32.mrf.mxu0
      %v6252 = vadd.f32 %v6223, %v6251
      %6253 = vmatmul.f32.gmra.mxu0 %v5811
      %v6254 = vpop.f32.mrf.mxu0
      %v6255 = vadd.f32 %v6226, %v6254
      %6256 = vmatmul.f32.gmra.mxu0 %v5827
      %v6257 = vpop.f32.mrf.mxu0
      %v6258 = vadd.f32 %v6229, %v6257
      %6259 = vdwg.mxu0
      %6260 = vmatpush.msra.mxu0 %v5732
      %6261 = vmatpush.msra.mxu0 %v5730
      %6262 = vmatpush.msra.mxu0 %v5728
      %6263 = vmatpush.msra.mxu0 %v5726
      %6264 = vmatpush.msra.mxu0 %v5724
      %6265 = vmatpush.msra.mxu0 %v5722
      %6266 = vmatpush.msra.mxu0 %v5720
      %6267 = vmatpush.msra.mxu0 %v5718
      %6268 = vmatpush.msra.mxu0 %v5716
      %6269 = vmatpush.msra.mxu0 %v5714
      %6270 = vmatpush.msra.mxu0 %v5712
      %6271 = vmatpush.msra.mxu0 %v5710
      %6272 = vmatpush.msra.mxu0 %v5708
      %6273 = vmatpush.msra.mxu0 %v5706
      %6274 = vmatpush.msra.mxu0 %v5704
      %6275 = vmatpush.msra.mxu0 %v5702
      %6276 = vmatmul.f32.gmra.mxu0 %v5780
      %v6277 = vpop.f32.mrf.mxu0
      %v6278 = vadd.f32 %v6249, %v6277
      %6279 = vmatmul.f32.gmra.mxu0 %v5796
      %v6280 = vpop.f32.mrf.mxu0
      %v6281 = vadd.f32 %v6252, %v6280
      %6282 = vmatmul.f32.gmra.mxu0 %v5812
      %v6283 = vpop.f32.mrf.mxu0
      %v6284 = vadd.f32 %v6255, %v6283
      %6285 = vmatmul.f32.gmra.mxu0 %v5828
      %v6286 = vpop.f32.mrf.mxu0
      %v6287 = vadd.f32 %v6258, %v6286
      %6288 = vdwg.mxu0
      %6289 = vmatpush.msra.mxu0 %v5764
      %6290 = vmatpush.msra.mxu0 %v5762
      %6291 = vmatpush.msra.mxu0 %v5760
      %6292 = vmatpush.msra.mxu0 %v5758
      %6293 = vmatpush.msra.mxu0 %v5756
      %6294 = vmatpush.msra.mxu0 %v5754
      %6295 = vmatpush.msra.mxu0 %v5752
      %6296 = vmatpush.msra.mxu0 %v5750
      %6297 = vmatpush.msra.mxu0 %v5748
      %6298 = vmatpush.msra.mxu0 %v5746
      %6299 = vmatpush.msra.mxu0 %v5744
      %6300 = vmatpush.msra.mxu0 %v5742
      %6301 = vmatpush.msra.mxu0 %v5740
      %6302 = vmatpush.msra.mxu0 %v5738
      %6303 = vmatpush.msra.mxu0 %v5736
      %6304 = vmatpush.msra.mxu0 %v5734
      %6305 = vmatmul.f32.gmra.mxu0 %v5781
      %v6306 = vpop.f32.mrf.mxu0
      %v6307 = vadd.f32 %v6278, %v6306
      %6308 = vmatmul.f32.gmra.mxu0 %v5797
      %v6309 = vpop.f32.mrf.mxu0
      %v6310 = vadd.f32 %v6281, %v6309
      %6311 = vmatmul.f32.gmra.mxu0 %v5813
      %v6312 = vpop.f32.mrf.mxu0
      %v6313 = vadd.f32 %v6284, %v6312
      %6314 = vmatmul.f32.gmra.mxu0 %v5829
      %v6315 = vpop.f32.mrf.mxu0
      %v6316 = vadd.f32 %v6287, %v6315
      %6317 = vdwg.mxu0
      %6318 = vmatpush.msra.mxu0 %v5285
      %6319 = vmatpush.msra.mxu0 %v5283
      %6320 = vmatpush.msra.mxu0 %v5281
      %6321 = vmatpush.msra.mxu0 %v5279
      %6322 = vmatpush.msra.mxu0 %v5277
      %6323 = vmatpush.msra.mxu0 %v5275
      %6324 = vmatpush.msra.mxu0 %v5273
      %6325 = vmatpush.msra.mxu0 %v5271
      %6326 = vmatpush.msra.mxu0 %v5269
      %6327 = vmatpush.msra.mxu0 %v5267
      %6328 = vmatpush.msra.mxu0 %v5265
      %6329 = vmatpush.msra.mxu0 %v5263
      %6330 = vmatpush.msra.mxu0 %v5261
      %6331 = vmatpush.msra.mxu0 %v5259
      %6332 = vmatpush.msra.mxu0 %v5257
      %6333 = vmatpush.msra.mxu0 %v5255
      %6334 = vmatmul.f32.gmra.mxu0 %v5766
      %v6335 = vpop.f32.mrf.mxu0
      %v6336 = vadd.f32 %v5837, %v6335
      %6337 = vmatmul.f32.gmra.mxu0 %v5782
      %v6338 = vpop.f32.mrf.mxu0
      %v6339 = vadd.f32 %v5842, %v6338
      %6340 = vmatmul.f32.gmra.mxu0 %v5798
      %v6341 = vpop.f32.mrf.mxu0
      %v6342 = vadd.f32 %v5847, %v6341
      %6343 = vmatmul.f32.gmra.mxu0 %v5814
      %v6344 = vpop.f32.mrf.mxu0
      %v6345 = vadd.f32 %v5852, %v6344
      %6346 = vdwg.mxu0
      %6347 = vmatpush.msra.mxu0 %v5317
      %6348 = vmatpush.msra.mxu0 %v5315
      %6349 = vmatpush.msra.mxu0 %v5313
      %6350 = vmatpush.msra.mxu0 %v5311
      %6351 = vmatpush.msra.mxu0 %v5309
      %6352 = vmatpush.msra.mxu0 %v5307
      %6353 = vmatpush.msra.mxu0 %v5305
      %6354 = vmatpush.msra.mxu0 %v5303
      %6355 = vmatpush.msra.mxu0 %v5301
      %6356 = vmatpush.msra.mxu0 %v5299
      %6357 = vmatpush.msra.mxu0 %v5297
      %6358 = vmatpush.msra.mxu0 %v5295
      %6359 = vmatpush.msra.mxu0 %v5293
      %6360 = vmatpush.msra.mxu0 %v5291
      %6361 = vmatpush.msra.mxu0 %v5289
      %6362 = vmatpush.msra.mxu0 %v5287
      %6363 = vmatmul.f32.gmra.mxu0 %v5767
      %v6364 = vpop.f32.mrf.mxu0
      %v6365 = vadd.f32 %v6336, %v6364
      %6366 = vmatmul.f32.gmra.mxu0 %v5783
      %v6367 = vpop.f32.mrf.mxu0
      %v6368 = vadd.f32 %v6339, %v6367
      %6369 = vmatmul.f32.gmra.mxu0 %v5799
      %v6370 = vpop.f32.mrf.mxu0
      %v6371 = vadd.f32 %v6342, %v6370
      %6372 = vmatmul.f32.gmra.mxu0 %v5815
      %v6373 = vpop.f32.mrf.mxu0
      %v6374 = vadd.f32 %v6345, %v6373
      %6375 = vdwg.mxu0
      %6376 = vmatpush.msra.mxu0 %v5349
      %6377 = vmatpush.msra.mxu0 %v5347
      %6378 = vmatpush.msra.mxu0 %v5345
      %6379 = vmatpush.msra.mxu0 %v5343
      %6380 = vmatpush.msra.mxu0 %v5341
      %6381 = vmatpush.msra.mxu0 %v5339
      %6382 = vmatpush.msra.mxu0 %v5337
      %6383 = vmatpush.msra.mxu0 %v5335
      %6384 = vmatpush.msra.mxu0 %v5333
      %6385 = vmatpush.msra.mxu0 %v5331
      %6386 = vmatpush.msra.mxu0 %v5329
      %6387 = vmatpush.msra.mxu0 %v5327
      %6388 = vmatpush.msra.mxu0 %v5325
      %6389 = vmatpush.msra.mxu0 %v5323
      %6390 = vmatpush.msra.mxu0 %v5321
      %6391 = vmatpush.msra.mxu0 %v5319
      %6392 = vmatmul.f32.gmra.mxu0 %v5768
      %v6393 = vpop.f32.mrf.mxu0
      %v6394 = vadd.f32 %v6365, %v6393
      %6395 = vmatmul.f32.gmra.mxu0 %v5784
      %v6396 = vpop.f32.mrf.mxu0
      %v6397 = vadd.f32 %v6368, %v6396
      %6398 = vmatmul.f32.gmra.mxu0 %v5800
      %v6399 = vpop.f32.mrf.mxu0
      %v6400 = vadd.f32 %v6371, %v6399
      %6401 = vmatmul.f32.gmra.mxu0 %v5816
      %v6402 = vpop.f32.mrf.mxu0
      %v6403 = vadd.f32 %v6374, %v6402
      %6404 = vdwg.mxu0
      %6405 = vmatpush.msra.mxu0 %v5381
      %6406 = vmatpush.msra.mxu0 %v5379
      %6407 = vmatpush.msra.mxu0 %v5377
      %6408 = vmatpush.msra.mxu0 %v5375
      %6409 = vmatpush.msra.mxu0 %v5373
      %6410 = vmatpush.msra.mxu0 %v5371
      %6411 = vmatpush.msra.mxu0 %v5369
      %6412 = vmatpush.msra.mxu0 %v5367
      %6413 = vmatpush.msra.mxu0 %v5365
      %6414 = vmatpush.msra.mxu0 %v5363
      %6415 = vmatpush.msra.mxu0 %v5361
      %6416 = vmatpush.msra.mxu0 %v5359
      %6417 = vmatpush.msra.mxu0 %v5357
      %6418 = vmatpush.msra.mxu0 %v5355
      %6419 = vmatpush.msra.mxu0 %v5353
      %6420 = vmatpush.msra.mxu0 %v5351
      %6421 = vmatmul.f32.gmra.mxu0 %v5769
      %v6422 = vpop.f32.mrf.mxu0
      %v6423 = vadd.f32 %v6394, %v6422
      %6424 = vmatmul.f32.gmra.mxu0 %v5785
      %v6425 = vpop.f32.mrf.mxu0
      %v6426 = vadd.f32 %v6397, %v6425
      %6427 = vmatmul.f32.gmra.mxu0 %v5801
      %v6428 = vpop.f32.mrf.mxu0
      %v6429 = vadd.f32 %v6400, %v6428
      %6430 = vmatmul.f32.gmra.mxu0 %v5817
      %v6431 = vpop.f32.mrf.mxu0
      %v6432 = vadd.f32 %v6403, %v6431
      %6433 = vdwg.mxu0
      %6434 = vmatpush.msra.mxu0 %v5413
      %6435 = vmatpush.msra.mxu0 %v5411
      %6436 = vmatpush.msra.mxu0 %v5409
      %6437 = vmatpush.msra.mxu0 %v5407
      %6438 = vmatpush.msra.mxu0 %v5405
      %6439 = vmatpush.msra.mxu0 %v5403
      %6440 = vmatpush.msra.mxu0 %v5401
      %6441 = vmatpush.msra.mxu0 %v5399
      %6442 = vmatpush.msra.mxu0 %v5397
      %6443 = vmatpush.msra.mxu0 %v5395
      %6444 = vmatpush.msra.mxu0 %v5393
      %6445 = vmatpush.msra.mxu0 %v5391
      %6446 = vmatpush.msra.mxu0 %v5389
      %6447 = vmatpush.msra.mxu0 %v5387
      %6448 = vmatpush.msra.mxu0 %v5385
      %6449 = vmatpush.msra.mxu0 %v5383
      %6450 = vmatmul.f32.gmra.mxu0 %v5770
      %v6451 = vpop.f32.mrf.mxu0
      %v6452 = vadd.f32 %v6423, %v6451
      %6453 = vmatmul.f32.gmra.mxu0 %v5786
      %v6454 = vpop.f32.mrf.mxu0
      %v6455 = vadd.f32 %v6426, %v6454
      %6456 = vmatmul.f32.gmra.mxu0 %v5802
      %v6457 = vpop.f32.mrf.mxu0
      %v6458 = vadd.f32 %v6429, %v6457
      %6459 = vmatmul.f32.gmra.mxu0 %v5818
      %v6460 = vpop.f32.mrf.mxu0
      %v6461 = vadd.f32 %v6432, %v6460
      %6462 = vdwg.mxu0
      %6463 = vmatpush.msra.mxu0 %v5445
      %6464 = vmatpush.msra.mxu0 %v5443
      %6465 = vmatpush.msra.mxu0 %v5441
      %6466 = vmatpush.msra.mxu0 %v5439
      %6467 = vmatpush.msra.mxu0 %v5437
      %6468 = vmatpush.msra.mxu0 %v5435
      %6469 = vmatpush.msra.mxu0 %v5433
      %6470 = vmatpush.msra.mxu0 %v5431
      %6471 = vmatpush.msra.mxu0 %v5429
      %6472 = vmatpush.msra.mxu0 %v5427
      %6473 = vmatpush.msra.mxu0 %v5425
      %6474 = vmatpush.msra.mxu0 %v5423
      %6475 = vmatpush.msra.mxu0 %v5421
      %6476 = vmatpush.msra.mxu0 %v5419
      %6477 = vmatpush.msra.mxu0 %v5417
      %6478 = vmatpush.msra.mxu0 %v5415
      %6479 = vmatmul.f32.gmra.mxu0 %v5771
      %v6480 = vpop.f32.mrf.mxu0
      %v6481 = vadd.f32 %v6452, %v6480
      %6482 = vmatmul.f32.gmra.mxu0 %v5787
      %v6483 = vpop.f32.mrf.mxu0
      %v6484 = vadd.f32 %v6455, %v6483
      %6485 = vmatmul.f32.gmra.mxu0 %v5803
      %v6486 = vpop.f32.mrf.mxu0
      %v6487 = vadd.f32 %v6458, %v6486
      %6488 = vmatmul.f32.gmra.mxu0 %v5819
      %v6489 = vpop.f32.mrf.mxu0
      %v6490 = vadd.f32 %v6461, %v6489
      %6491 = vdwg.mxu0
      %6492 = vmatpush.msra.mxu0 %v5477
      %6493 = vmatpush.msra.mxu0 %v5475
      %6494 = vmatpush.msra.mxu0 %v5473
      %6495 = vmatpush.msra.mxu0 %v5471
      %6496 = vmatpush.msra.mxu0 %v5469
      %6497 = vmatpush.msra.mxu0 %v5467
      %6498 = vmatpush.msra.mxu0 %v5465
      %6499 = vmatpush.msra.mxu0 %v5463
      %6500 = vmatpush.msra.mxu0 %v5461
      %6501 = vmatpush.msra.mxu0 %v5459
      %6502 = vmatpush.msra.mxu0 %v5457
      %6503 = vmatpush.msra.mxu0 %v5455
      %6504 = vmatpush.msra.mxu0 %v5453
      %6505 = vmatpush.msra.mxu0 %v5451
      %6506 = vmatpush.msra.mxu0 %v5449
      %6507 = vmatpush.msra.mxu0 %v5447
      %6508 = vmatmul.f32.gmra.mxu0 %v5772
      %v6509 = vpop.f32.mrf.mxu0
      %v6510 = vadd.f32 %v6481, %v6509
      %6511 = vmatmul.f32.gmra.mxu0 %v5788
      %v6512 = vpop.f32.mrf.mxu0
      %v6513 = vadd.f32 %v6484, %v6512
      %6514 = vmatmul.f32.gmra.mxu0 %v5804
      %v6515 = vpop.f32.mrf.mxu0
      %v6516 = vadd.f32 %v6487, %v6515
      %6517 = vmatmul.f32.gmra.mxu0 %v5820
      %v6518 = vpop.f32.mrf.mxu0
      %v6519 = vadd.f32 %v6490, %v6518
      %6520 = vdwg.mxu0
      %6521 = vmatpush.msra.mxu0 %v5509
      %6522 = vmatpush.msra.mxu0 %v5507
      %6523 = vmatpush.msra.mxu0 %v5505
      %6524 = vmatpush.msra.mxu0 %v5503
      %6525 = vmatpush.msra.mxu0 %v5501
      %6526 = vmatpush.msra.mxu0 %v5499
      %6527 = vmatpush.msra.mxu0 %v5497
      %6528 = vmatpush.msra.mxu0 %v5495
      %6529 = vmatpush.msra.mxu0 %v5493
      %6530 = vmatpush.msra.mxu0 %v5491
      %6531 = vmatpush.msra.mxu0 %v5489
      %6532 = vmatpush.msra.mxu0 %v5487
      %6533 = vmatpush.msra.mxu0 %v5485
      %6534 = vmatpush.msra.mxu0 %v5483
      %6535 = vmatpush.msra.mxu0 %v5481
      %6536 = vmatpush.msra.mxu0 %v5479
      %6537 = vmatmul.f32.gmra.mxu0 %v5773
      %v6538 = vpop.f32.mrf.mxu0
      %v6539 = vadd.f32 %v6510, %v6538
      %6540 = vmatmul.f32.gmra.mxu0 %v5789
      %v6541 = vpop.f32.mrf.mxu0
      %v6542 = vadd.f32 %v6513, %v6541
      %6543 = vmatmul.f32.gmra.mxu0 %v5805
      %v6544 = vpop.f32.mrf.mxu0
      %v6545 = vadd.f32 %v6516, %v6544
      %6546 = vmatmul.f32.gmra.mxu0 %v5821
      %v6547 = vpop.f32.mrf.mxu0
      %v6548 = vadd.f32 %v6519, %v6547
      %6549 = vdwg.mxu0
      %6550 = vmatpush.msra.mxu0 %v5541
      %6551 = vmatpush.msra.mxu0 %v5539
      %6552 = vmatpush.msra.mxu0 %v5537
      %6553 = vmatpush.msra.mxu0 %v5535
      %6554 = vmatpush.msra.mxu0 %v5533
      %6555 = vmatpush.msra.mxu0 %v5531
      %6556 = vmatpush.msra.mxu0 %v5529
      %6557 = vmatpush.msra.mxu0 %v5527
      %6558 = vmatpush.msra.mxu0 %v5525
      %6559 = vmatpush.msra.mxu0 %v5523
      %6560 = vmatpush.msra.mxu0 %v5521
      %6561 = vmatpush.msra.mxu0 %v5519
      %6562 = vmatpush.msra.mxu0 %v5517
      %6563 = vmatpush.msra.mxu0 %v5515
      %6564 = vmatpush.msra.mxu0 %v5513
      %6565 = vmatpush.msra.mxu0 %v5511
      %6566 = vmatmul.f32.gmra.mxu0 %v5774
      %v6567 = vpop.f32.mrf.mxu0
      %v6568 = vadd.f32 %v6539, %v6567
      %6569 = vmatmul.f32.gmra.mxu0 %v5790
      %v6570 = vpop.f32.mrf.mxu0
      %v6571 = vadd.f32 %v6542, %v6570
      %6572 = vmatmul.f32.gmra.mxu0 %v5806
      %v6573 = vpop.f32.mrf.mxu0
      %v6574 = vadd.f32 %v6545, %v6573
      %6575 = vmatmul.f32.gmra.mxu0 %v5822
      %v6576 = vpop.f32.mrf.mxu0
      %v6577 = vadd.f32 %v6548, %v6576
      %6578 = vdwg.mxu0
      %6579 = vmatpush.msra.mxu0 %v5573
      %6580 = vmatpush.msra.mxu0 %v5571
      %6581 = vmatpush.msra.mxu0 %v5569
      %6582 = vmatpush.msra.mxu0 %v5567
      %6583 = vmatpush.msra.mxu0 %v5565
      %6584 = vmatpush.msra.mxu0 %v5563
      %6585 = vmatpush.msra.mxu0 %v5561
      %6586 = vmatpush.msra.mxu0 %v5559
      %6587 = vmatpush.msra.mxu0 %v5557
      %6588 = vmatpush.msra.mxu0 %v5555
      %6589 = vmatpush.msra.mxu0 %v5553
      %6590 = vmatpush.msra.mxu0 %v5551
      %6591 = vmatpush.msra.mxu0 %v5549
      %6592 = vmatpush.msra.mxu0 %v5547
      %6593 = vmatpush.msra.mxu0 %v5545
      %6594 = vmatpush.msra.mxu0 %v5543
      %6595 = vmatmul.f32.gmra.mxu0 %v5775
      %v6596 = vpop.f32.mrf.mxu0
      %v6597 = vadd.f32 %v6568, %v6596
      %6598 = vmatmul.f32.gmra.mxu0 %v5791
      %v6599 = vpop.f32.mrf.mxu0
      %v6600 = vadd.f32 %v6571, %v6599
      %6601 = vmatmul.f32.gmra.mxu0 %v5807
      %v6602 = vpop.f32.mrf.mxu0
      %v6603 = vadd.f32 %v6574, %v6602
      %6604 = vmatmul.f32.gmra.mxu0 %v5823
      %v6605 = vpop.f32.mrf.mxu0
      %v6606 = vadd.f32 %v6577, %v6605
      %6607 = vdwg.mxu0
      %6608 = vmatpush.msra.mxu0 %v5605
      %6609 = vmatpush.msra.mxu0 %v5603
      %6610 = vmatpush.msra.mxu0 %v5601
      %6611 = vmatpush.msra.mxu0 %v5599
      %6612 = vmatpush.msra.mxu0 %v5597
      %6613 = vmatpush.msra.mxu0 %v5595
      %6614 = vmatpush.msra.mxu0 %v5593
      %6615 = vmatpush.msra.mxu0 %v5591
      %6616 = vmatpush.msra.mxu0 %v5589
      %6617 = vmatpush.msra.mxu0 %v5587
      %6618 = vmatpush.msra.mxu0 %v5585
      %6619 = vmatpush.msra.mxu0 %v5583
      %6620 = vmatpush.msra.mxu0 %v5581
      %6621 = vmatpush.msra.mxu0 %v5579
      %6622 = vmatpush.msra.mxu0 %v5577
      %6623 = vmatpush.msra.mxu0 %v5575
      %6624 = vmatmul.f32.gmra.mxu0 %v5776
      %v6625 = vpop.f32.mrf.mxu0
      %v6626 = vadd.f32 %v6597, %v6625
      %6627 = vmatmul.f32.gmra.mxu0 %v5792
      %v6628 = vpop.f32.mrf.mxu0
      %v6629 = vadd.f32 %v6600, %v6628
      %6630 = vmatmul.f32.gmra.mxu0 %v5808
      %v6631 = vpop.f32.mrf.mxu0
      %v6632 = vadd.f32 %v6603, %v6631
      %6633 = vmatmul.f32.gmra.mxu0 %v5824
      %v6634 = vpop.f32.mrf.mxu0
      %v6635 = vadd.f32 %v6606, %v6634
      %6636 = vdwg.mxu0
      %6637 = vmatpush.msra.mxu0 %v5637
      %6638 = vmatpush.msra.mxu0 %v5635
      %6639 = vmatpush.msra.mxu0 %v5633
      %6640 = vmatpush.msra.mxu0 %v5631
      %6641 = vmatpush.msra.mxu0 %v5629
      %6642 = vmatpush.msra.mxu0 %v5627
      %6643 = vmatpush.msra.mxu0 %v5625
      %6644 = vmatpush.msra.mxu0 %v5623
      %6645 = vmatpush.msra.mxu0 %v5621
      %6646 = vmatpush.msra.mxu0 %v5619
      %6647 = vmatpush.msra.mxu0 %v5617
      %6648 = vmatpush.msra.mxu0 %v5615
      %6649 = vmatpush.msra.mxu0 %v5613
      %6650 = vmatpush.msra.mxu0 %v5611
      %6651 = vmatpush.msra.mxu0 %v5609
      %6652 = vmatpush.msra.mxu0 %v5607
      %6653 = vmatmul.f32.gmra.mxu0 %v5777
      %v6654 = vpop.f32.mrf.mxu0
      %v6655 = vadd.f32 %v6626, %v6654
      %6656 = vmatmul.f32.gmra.mxu0 %v5793
      %v6657 = vpop.f32.mrf.mxu0
      %v6658 = vadd.f32 %v6629, %v6657
      %6659 = vmatmul.f32.gmra.mxu0 %v5809
      %v6660 = vpop.f32.mrf.mxu0
      %v6661 = vadd.f32 %v6632, %v6660
      %6662 = vmatmul.f32.gmra.mxu0 %v5825
      %v6663 = vpop.f32.mrf.mxu0
      %v6664 = vadd.f32 %v6635, %v6663
      %6665 = vdwg.mxu0
      %6666 = vmatpush.msra.mxu0 %v5669
      %6667 = vmatpush.msra.mxu0 %v5667
      %6668 = vmatpush.msra.mxu0 %v5665
      %6669 = vmatpush.msra.mxu0 %v5663
      %6670 = vmatpush.msra.mxu0 %v5661
      %6671 = vmatpush.msra.mxu0 %v5659
      %6672 = vmatpush.msra.mxu0 %v5657
      %6673 = vmatpush.msra.mxu0 %v5655
      %6674 = vmatpush.msra.mxu0 %v5653
      %6675 = vmatpush.msra.mxu0 %v5651
      %6676 = vmatpush.msra.mxu0 %v5649
      %6677 = vmatpush.msra.mxu0 %v5647
      %6678 = vmatpush.msra.mxu0 %v5645
      %6679 = vmatpush.msra.mxu0 %v5643
      %6680 = vmatpush.msra.mxu0 %v5641
      %6681 = vmatpush.msra.mxu0 %v5639
      %6682 = vmatmul.f32.gmra.mxu0 %v5778
      %v6683 = vpop.f32.mrf.mxu0
      %v6684 = vadd.f32 %v6655, %v6683
      %6685 = vmatmul.f32.gmra.mxu0 %v5794
      %v6686 = vpop.f32.mrf.mxu0
      %v6687 = vadd.f32 %v6658, %v6686
      %6688 = vmatmul.f32.gmra.mxu0 %v5810
      %v6689 = vpop.f32.mrf.mxu0
      %v6690 = vadd.f32 %v6661, %v6689
      %6691 = vmatmul.f32.gmra.mxu0 %v5826
      %v6692 = vpop.f32.mrf.mxu0
      %v6693 = vadd.f32 %v6664, %v6692
      %6694 = vdwg.mxu0
      %6695 = vmatpush.msra.mxu0 %v5701
      %6696 = vmatpush.msra.mxu0 %v5699
      %6697 = vmatpush.msra.mxu0 %v5697
      %6698 = vmatpush.msra.mxu0 %v5695
      %6699 = vmatpush.msra.mxu0 %v5693
      %6700 = vmatpush.msra.mxu0 %v5691
      %6701 = vmatpush.msra.mxu0 %v5689
      %6702 = vmatpush.msra.mxu0 %v5687
      %6703 = vmatpush.msra.mxu0 %v5685
      %6704 = vmatpush.msra.mxu0 %v5683
      %6705 = vmatpush.msra.mxu0 %v5681
      %6706 = vmatpush.msra.mxu0 %v5679
      %6707 = vmatpush.msra.mxu0 %v5677
      %6708 = vmatpush.msra.mxu0 %v5675
      %6709 = vmatpush.msra.mxu0 %v5673
      %6710 = vmatpush.msra.mxu0 %v5671
      %6711 = vmatmul.f32.gmra.mxu0 %v5779
      %v6712 = vpop.f32.mrf.mxu0
      %v6713 = vadd.f32 %v6684, %v6712
      %6714 = vmatmul.f32.gmra.mxu0 %v5795
      %v6715 = vpop.f32.mrf.mxu0
      %v6716 = vadd.f32 %v6687, %v6715
      %6717 = vmatmul.f32.gmra.mxu0 %v5811
      %v6718 = vpop.f32.mrf.mxu0
      %v6719 = vadd.f32 %v6690, %v6718
      %6720 = vmatmul.f32.gmra.mxu0 %v5827
      %v6721 = vpop.f32.mrf.mxu0
      %v6722 = vadd.f32 %v6693, %v6721
      %6723 = vdwg.mxu0
      %6724 = vmatpush.msra.mxu0 %v5733
      %6725 = vmatpush.msra.mxu0 %v5731
      %6726 = vmatpush.msra.mxu0 %v5729
      %6727 = vmatpush.msra.mxu0 %v5727
      %6728 = vmatpush.msra.mxu0 %v5725
      %6729 = vmatpush.msra.mxu0 %v5723
      %6730 = vmatpush.msra.mxu0 %v5721
      %6731 = vmatpush.msra.mxu0 %v5719
      %6732 = vmatpush.msra.mxu0 %v5717
      %6733 = vmatpush.msra.mxu0 %v5715
      %6734 = vmatpush.msra.mxu0 %v5713
      %6735 = vmatpush.msra.mxu0 %v5711
      %6736 = vmatpush.msra.mxu0 %v5709
      %6737 = vmatpush.msra.mxu0 %v5707
      %6738 = vmatpush.msra.mxu0 %v5705
      %6739 = vmatpush.msra.mxu0 %v5703
      %6740 = vmatmul.f32.gmra.mxu0 %v5780
      %v6741 = vpop.f32.mrf.mxu0
      %v6742 = vadd.f32 %v6713, %v6741
      %6743 = vmatmul.f32.gmra.mxu0 %v5796
      %v6744 = vpop.f32.mrf.mxu0
      %v6745 = vadd.f32 %v6716, %v6744
      %6746 = vmatmul.f32.gmra.mxu0 %v5812
      %v6747 = vpop.f32.mrf.mxu0
      %v6748 = vadd.f32 %v6719, %v6747
      %6749 = vmatmul.f32.gmra.mxu0 %v5828
      %v6750 = vpop.f32.mrf.mxu0
      %v6751 = vadd.f32 %v6722, %v6750
      %6752 = vdwg.mxu0
      %6753 = vmatpush.msra.mxu0 %v5765
      %6754 = vmatpush.msra.mxu0 %v5763
      %6755 = vmatpush.msra.mxu0 %v5761
      %6756 = vmatpush.msra.mxu0 %v5759
      %6757 = vmatpush.msra.mxu0 %v5757
      %6758 = vmatpush.msra.mxu0 %v5755
      %6759 = vmatpush.msra.mxu0 %v5753
      %6760 = vmatpush.msra.mxu0 %v5751
      %6761 = vmatpush.msra.mxu0 %v5749
      %6762 = vmatpush.msra.mxu0 %v5747
      %6763 = vmatpush.msra.mxu0 %v5745
      %6764 = vmatpush.msra.mxu0 %v5743
      %6765 = vmatpush.msra.mxu0 %v5741
      %6766 = vmatpush.msra.mxu0 %v5739
      %6767 = vmatpush.msra.mxu0 %v5737
      %6768 = vmatpush.msra.mxu0 %v5735
      %6769 = vmatmul.f32.gmra.mxu0 %v5781
      %v6770 = vpop.f32.mrf.mxu0
      %v6771 = vadd.f32 %v6742, %v6770
      %6772 = vmatmul.f32.gmra.mxu0 %v5797
      %v6773 = vpop.f32.mrf.mxu0
      %v6774 = vadd.f32 %v6745, %v6773
      %6775 = vmatmul.f32.gmra.mxu0 %v5813
      %v6776 = vpop.f32.mrf.mxu0
      %v6777 = vadd.f32 %v6748, %v6776
      %6778 = vmatmul.f32.gmra.mxu0 %v5829
      %v6779 = vpop.f32.mrf.mxu0
      %v6780 = vadd.f32 %v6751, %v6779
      %6781 = vdwg.mxu0
      %v6782 = vmax.f32 %v6307, 0.0
      %v6783 = vmax.f32 %v6771, 0.0
      %v6784 = vmax.f32 %v6310, 0.0
      %v6785 = vmax.f32 %v6774, 0.0
      %v6786 = vmax.f32 %v6313, 0.0
      %v6787 = vmax.f32 %v6777, 0.0
      %v6788 = vmax.f32 %v6316, 0.0
      %v6789 = vmax.f32 %v6780, 0.0
      %v6790 = vld [vmem:[%s7] sm:$0x1]
      %v6791 = vld [vmem:[#allocation2] sm:$0x1]
      %6793 = vset.pattern.permute.xlu0 0
      %6794 = vperm.xlu0 %6793, %v6791
      %v6795 = vpop.permute.xlu0 %6794
      %v6797 = vperm.slane %v6795, 0
      %vm6798 = vcmask 261120
      %v6800 = vsel %vm6798, %v6790, 0
      %6802 = vmatpush.msra.mxu0 0.0
      %6803 = vmatpush.msra.mxu0 0.0
      %6804 = vmatpush.msra.mxu0 0.0
      %6805 = vmatpush.msra.mxu0 0.0
      %6806 = vmatpush.msra.mxu0 0.0
      %6807 = vmatpush.msra.mxu0 0.0
      %6808 = vmatpush.msra.mxu0 0.0
      %6809 = vmatpush.msra.mxu0 0.0
      %6810 = vmatpush.msra.mxu0 0.0
      %6811 = vmatpush.msra.mxu0 0.0
      %6812 = vmatpush.msra.mxu0 0.0
      %6813 = vmatpush.msra.mxu0 0.0
      %6814 = vmatpush.msra.mxu0 %v6788
      %6815 = vmatpush.msra.mxu0 %v6786
      %6816 = vmatpush.msra.mxu0 %v6784
      %6817 = vmatpush.msra.mxu0 %v6782
      %6818 = vmatmul.f32.gmra.mxu0 %v6800
      %v6819 = vpop.f32.mrf.mxu0
      %v6820 = vadd.f32 %v6797, %v6819
      %6821 = vdwg.mxu0
      %6822 = vmatpush.msra.mxu0 0.0
      %6823 = vmatpush.msra.mxu0 0.0
      %6824 = vmatpush.msra.mxu0 0.0
      %6825 = vmatpush.msra.mxu0 0.0
      %6826 = vmatpush.msra.mxu0 0.0
      %6827 = vmatpush.msra.mxu0 0.0
      %6828 = vmatpush.msra.mxu0 0.0
      %6829 = vmatpush.msra.mxu0 0.0
      %6830 = vmatpush.msra.mxu0 0.0
      %6831 = vmatpush.msra.mxu0 0.0
      %6832 = vmatpush.msra.mxu0 0.0
      %6833 = vmatpush.msra.mxu0 0.0
      %6834 = vmatpush.msra.mxu0 %v6789
      %6835 = vmatpush.msra.mxu0 %v6787
      %6836 = vmatpush.msra.mxu0 %v6785
      %6837 = vmatpush.msra.mxu0 %v6783
      %6838 = vmatmul.f32.gmra.mxu0 %v6800
      %v6839 = vpop.f32.mrf.mxu0
      %v6840 = vadd.f32 %v6797, %v6839
      %6841 = vdwg.mxu0
      %v6844 = vrot.slane %v6840, 7
      %vm6845 = vcmask 1040384
      %v6846 = vsel %vm6845, %v6820, %v6844
      %v6848 = vlaneseq
      %vm6849 = vcmp.ge.s32.totalorder %v6848, 0
      %vm6850 = vcmp.lt.s32.totalorder %v6848, 256
      %vm6851 = vmand %vm6849, %vm6850
      %6852 = vst.msk [vmem:[%s411] sm:$0x3] %vm6851, %v6846
      %s6853 = smul.u32 2, %s29
      %p6854 = scmp.lt.s32.totalorder %s28, 1
      %s6855 = scalar_select %p6854, %s28, 1
      %p6856 = scmp.lt.s32.totalorder %s6853, 1
      %s6857 = scalar_select %p6856, %s6853, 1
      %s6858 = smul.addr %s6855, 2
      %s6859 = sadd.s32 %s6857, %s6858
      %s6860 = scalar_lea.vmem %s9, %s6859
      %s6861 = smul.u32 2, %s29
      %p6862 = scmp.lt.s32.totalorder %s28, 1
      %s6863 = scalar_select %p6862, %s28, 1
      %p6864 = scmp.lt.s32.totalorder %s6861, 1
      %s6865 = scalar_select %p6864, %s6861, 1
      %s6866 = smul.addr %s6863, 512
      %s6867 = sadd.s32 %s6865, %s6866
      %s6868 = smul.addr %s6867, 8
      %s6869 = scalar_lea.vmem %s10, %s6868
      // Predicated region
      $region57: #{pix_transform_forward.1} parent=55 // pred_check
        %p6870 = pneg %p252
      $region58: #{pix_transform_forward.1} parent=55 // pred_check_branch
        %6872 = sbr.rel (%p6870) target = $region60
      $region59: #{pix_transform_forward.1} parent=55 // pred_region
        %s6873 = smul.u32 2, %s29
      $region60: #{pix_transform_forward.1} parent=55 // pred_fallthru
        _
      // Predicated region
      $region61: #{pix_transform_forward.1} parent=55 // pred_check
        %p6874 = pneg %p280
      $region62: #{pix_transform_forward.1} parent=55 // pred_check_branch
        %6876 = sbr.rel (%p6874) target = $region64
      $region63: #{pix_transform_forward.1} parent=55 // pred_region
        %s6877 = smul.u32 2, %s29
      $region64: #{pix_transform_forward.1} parent=55 // pred_fallthru
        _
    $region56: #{pix_transform_forward.1} parent=5 // pred_fallthru
      _
    %p6878 = scmp.le.s32.totalorder 2, %s19
    // Predicated region
    $region65: #{pix_transform_forward.1} parent=5 // pred_check
      %p6879 = pneg %p6878
    $region66: #{pix_transform_forward.1} parent=5 // pred_check_branch
      %6881 = sbr.rel (%p6879) target = $region68
    $region67: #{pix_transform_forward.1} parent=5 // pred_region
      %s6882 = ssub.s32 %s19, 2
      // Predicated region
      $region69: #{pix_transform_forward.1} parent=67 // pred_check
        %p6883 = pneg %p258
      $region70: #{pix_transform_forward.1} parent=67 // pred_check_branch
        %6885 = sbr.rel (%p6883) target = $region72
      $region71: #{pix_transform_forward.1} parent=67 // pred_region
        %s6886 = smul.u32 2, %s31
        %p6887 = scmp.lt.s32.totalorder %s30, 1
        %s6888 = scalar_select %p6887, %s30, 1
        %p6889 = scmp.lt.s32.totalorder %s6886, 1
        %s6890 = scalar_select %p6889, %s6886, 1
        %s6891 = smul.addr %s6888, 2
        %s6892 = sadd.s32 %s6890, %s6891
        %s6893 = scalar_lea.vmem %s9, %s6892
      $region72: #{pix_transform_forward.1} parent=67 // pred_fallthru
        _
      // Predicated region
      $region73: #{pix_transform_forward.1} parent=67 // pred_check
        %p6894 = pneg %p286
      $region74: #{pix_transform_forward.1} parent=67 // pred_check_branch
        %6896 = sbr.rel (%p6894) target = $region76
      $region75: #{pix_transform_forward.1} parent=67 // pred_region
        %s6897 = smul.u32 2, %s31
        %p6898 = scmp.lt.s32.totalorder %s30, 1
        %s6899 = scalar_select %p6898, %s30, 1
        %p6900 = scmp.lt.s32.totalorder %s6897, 1
        %s6901 = scalar_select %p6900, %s6897, 1
        %s6902 = smul.addr %s6899, 512
        %s6903 = sadd.s32 %s6901, %s6902
        %s6904 = smul.addr %s6903, 8
        %s6905 = scalar_lea.vmem %s10, %s6904
      $region76: #{pix_transform_forward.1} parent=67 // pred_fallthru
        _
    $region68: #{pix_transform_forward.1} parent=5 // pred_fallthru
      _
  $region6: #{pix_transform_forward.1} parent=0 // loop_footer
    %s23 = sadd.s32 1, %s19
  $region7: #{pix_transform_forward.1} parent=0 // loop_footer_branch
    %18 = sbr.rel target = $region3
  $region8: #{pix_transform_forward.1} parent=0 // loop_exit
    _

</llo_original>
